<compile_context>
chip_gen: v6e
topology: v6e:2x2x1
jax: 0.10.0
libtpu: 0.0.40
codegen_flags: <defaults>
</compile_context>

<pallas_src>
import jax
import jax.numpy as jnp
import numpy as np
from jax.experimental import pallas as pl
from jax.experimental.pallas import tpu as pltpu


# --------------------------------------------------------------------------- #
# Fused kernel:  num_layers x LSTM  +  FC head, one batch block per grid step
# --------------------------------------------------------------------------- #
def _make_fused_lstm_kernel(num_layers, T, H, L):
    def kernel(x_ref, *refs):
        # refs layout: [wih, whh, b] * num_layers, w1, b1, w2, b2, out_ref, hseq_scr
        lstm_refs = refs[: 3 * num_layers]
        w1_ref, b1_ref, w2_ref, b2_ref = refs[3 * num_layers: 3 * num_layers + 4]
        out_ref = refs[3 * num_layers + 4]
        hseq_scr = refs[3 * num_layers + 5]          # (Bb, T, H) VMEM scratch

        Bb = x_ref.shape[0]

        # ------------------------- LSTM layer stack ------------------------ #
        for layer in range(num_layers):
            wih_ref = lstm_refs[3 * layer + 0]       # (Din_l, 4H) = W_ih^T
            whh_ref = lstm_refs[3 * layer + 1]       # (H,    4H) = W_hh^T
            b_ref = lstm_refs[3 * layer + 2]         # (1,    4H) = b_ih + b_hh

            if layer == 0:
                src = x_ref[...]                     # (Bb, T, Din)
            else:
                src = hseq_scr[...]                  # (Bb, T, H)
            din_l = src.shape[-1]

            # Hoisted input projection: one batched MXU matmul over all T*Bb
            # rows instead of T tiny per-step matmuls (plus the bias add).
            gx = (
                jnp.dot(src.reshape(Bb * T, din_l), wih_ref[...],
                        preferred_element_type=jnp.float32)
                + b_ref[...]
            ).reshape(Bb, T, 4 * H)

            whh = whh_ref[...]

            h = jnp.zeros((Bb, H), jnp.float32)
            c = jnp.zeros((Bb, H), jnp.float32)

            # Fully unrolled recurrence: only h @ W_hh^T is on the serial
            # critical path; all indices below are static.
            for t in range(T):
                gates = gx[:, t, :] + jnp.dot(
                    h, whh, preferred_element_type=jnp.float32)   # (Bb, 4H)
                i_g = jax.nn.sigmoid(gates[:, 0 * H:1 * H])
                f_g = jax.nn.sigmoid(gates[:, 1 * H:2 * H])
                g_g = jnp.tanh(gates[:, 2 * H:3 * H])
                o_g = jax.nn.sigmoid(gates[:, 3 * H:4 * H])
                c = f_g * c + i_g * g_g
                h = o_g * jnp.tanh(c)
                hseq_scr[:, t, :] = h                # VMEM only, never HBM

        # -------------------- fused FC head on last L steps ---------------- #
        feat = hseq_scr[:, T - L:T, :].reshape(Bb * L, H)
        hid = jnp.dot(feat, w1_ref[...],
                      preferred_element_type=jnp.float32) + b1_ref[...]
        hid = jnp.maximum(hid, 0.0)
        y = jnp.dot(hid, w2_ref[...],
                    preferred_element_type=jnp.float32) + b2_ref[...]
        out_ref[...] = y.reshape(Bb, L, y.shape[-1])

    return kernel


# --------------------------------------------------------------------------- #
# Wrapper
# --------------------------------------------------------------------------- #
def lstm_model_forward(x, params, output_length):
    """Pallas forward of LSTMmodel (unidirectional, batch_first=True)."""
    x = x.astype(jnp.float32)
    B, T, Din = x.shape
    lstm_params = params["lstm"]
    num_layers = len(lstm_params)
    H = lstm_params[0][1].shape[0]
    w1_t, b1, w2_t, b2 = params["fc"]
    O = w2_t.shape[1]
    L = output_length

    # Batch-parallel grid: 2 blocks when the batch splits evenly (feeds both
    # TensorCores on v7x; a cheap sequential loop elsewhere).
    nb = 2 if (B % 2 == 0 and B >= 2) else 1
    bb = B // nb

    kernel = _make_fused_lstm_kernel(num_layers, T, H, L)

    lstm_args = []
    in_specs = [pl.BlockSpec((bb, T, Din), lambda b: (b, 0, 0))]
    for (wih_t, whh_t, b2d) in lstm_params:
        lstm_args += [wih_t, whh_t, b2d]
        in_specs += [
            pl.BlockSpec(wih_t.shape, lambda b: (0, 0)),
            pl.BlockSpec(whh_t.shape, lambda b: (0, 0)),
            pl.BlockSpec(b2d.shape, lambda b: (0, 0)),
        ]
    fc_args = [w1_t, b1, w2_t, b2]
    in_specs += [
        pl.BlockSpec(w1_t.shape, lambda b: (0, 0)),
        pl.BlockSpec(b1.shape, lambda b: (0, 0)),
        pl.BlockSpec(w2_t.shape, lambda b: (0, 0)),
        pl.BlockSpec(b2.shape, lambda b: (0, 0)),
    ]

    # Advisory cost estimate for the XLA scheduler.
    flops = 0
    for (wih_t, _, _) in lstm_params:
        din_l = wih_t.shape[0]
        flops += 2 * B * T * din_l * 4 * H        # hoisted input projection
        flops += 2 * B * T * H * 4 * H            # recurrent matmuls
    flops += 2 * B * L * H * H + 2 * B * L * H * O
    transcendentals = num_layers * T * B * 5 * H  # 4 gate activations + tanh(c)
    bytes_accessed = 4 * (
        int(x.size) + B * L * O
        + sum(int(w.size) for lw in lstm_params for w in lw)
        + int(w1_t.size) + int(b1.size) + int(w2_t.size) + int(b2.size)
    )

    y = pl.pallas_call(
        kernel,
        out_shape=jax.ShapeDtypeStruct((B, L, O), jnp.float32),
        grid=(nb,),
        in_specs=in_specs,
        out_specs=pl.BlockSpec((bb, L, O), lambda b: (b, 0, 0)),
        scratch_shapes=[pltpu.VMEM((bb, T, H), jnp.float32)],
        compiler_params=pltpu.CompilerParams(
            dimension_semantics=("parallel",),
        ),
        cost_estimate=pl.CostEstimate(
            flops=int(flops),
            transcendentals=int(transcendentals),
            bytes_accessed=int(bytes_accessed),
        ),
    )(x, *lstm_args, *fc_args)
    return y


# --------------------------------------------------------------------------- #
# Deterministic parameter init (mirrors torch shapes; synthetic weights)
# --------------------------------------------------------------------------- #
def init_params(key, input_size, hidden_size, num_layers, output_size):
    H = hidden_size
    k_lstm = 1.0 / np.sqrt(H)
    params = {"lstm": [], "fc": None}
    keys = jax.random.split(key, 4 * num_layers + 4)
    ki = 0
    for layer in range(num_layers):
        din = input_size if layer == 0 else H
        w_ih = jax.random.uniform(keys[ki + 0], (4 * H, din), jnp.float32, -k_lstm, k_lstm)
        w_hh = jax.random.uniform(keys[ki + 1], (4 * H, H), jnp.float32, -k_lstm, k_lstm)
        b_ih = jax.random.uniform(keys[ki + 2], (4 * H,), jnp.float32, -k_lstm, k_lstm)
        b_hh = jax.random.uniform(keys[ki + 3], (4 * H,), jnp.float32, -k_lstm, k_lstm)
        ki += 4
        params["lstm"].append((w_ih.T, w_hh.T, (b_ih + b_hh).reshape(1, 4 * H)))

    k_fc = 1.0 / np.sqrt(H)
    w1 = jax.random.uniform(keys[ki + 0], (H, H), jnp.float32, -k_fc, k_fc)
    b1 = jax.random.uniform(keys[ki + 1], (H,), jnp.float32, -k_fc, k_fc)
    w2 = jax.random.uniform(keys[ki + 2], (output_size, H), jnp.float32, -k_fc, k_fc)
    b2 = jax.random.uniform(keys[ki + 3], (output_size,), jnp.float32, -k_fc, k_fc)
    params["fc"] = (w1.T, b1.reshape(1, H), w2.T, b2.reshape(1, output_size))
    return params


# --------------------------------------------------------------------------- #
# Pure-JAX reference (correctness check)
# --------------------------------------------------------------------------- #
def ref_forward(x, params, output_length):
    h_seq = x.astype(jnp.float32)
    for (wih_t, whh_t, b2d) in params["lstm"]:
        B = h_seq.shape[0]
        H = whh_t.shape[0]
        h = jnp.zeros((B, H), jnp.float32)
        c = jnp.zeros((B, H), jnp.float32)
        outs = []
        for t in range(h_seq.shape[1]):
            gates = h_seq[:, t, :] @ wih_t + h @ whh_t + b2d
            i_g = jax.nn.sigmoid(gates[:, 0 * H:1 * H])
            f_g = jax.nn.sigmoid(gates[:, 1 * H:2 * H])
            g_g = jnp.tanh(gates[:, 2 * H:3 * H])
            o_g = jax.nn.sigmoid(gates[:, 3 * H:4 * H])
            c = f_g * c + i_g * g_g
            h = o_g * jnp.tanh(c)
            outs.append(h)
        h_seq = jnp.stack(outs, axis=1)
    out = h_seq[:, -output_length:, :]
    w1_t, b1, w2_t, b2 = params["fc"]
    h = jnp.maximum(out @ w1_t + b1[0], 0.0)
    return h @ w2_t + b2[0]


# --------------------------------------------------------------------------- #
if __name__ == "__main__":
    B, T = 2, 8
    input_size, hidden_size, num_layers = 16, 32, 2
    output_size, output_length = 4, 1

    root = jax.random.PRNGKey(0)
    k_x, k_p = jax.random.split(root)
    x = jax.random.normal(k_x, (B, T, input_size), jnp.float32)
    params = init_params(k_p, input_size, hidden_size, num_layers, output_size)

    y = lstm_model_forward(x, params, output_length)
    y = jax.block_until_ready(y)

    y_ref = ref_forward(x, params, output_length)
    np.testing.assert_allclose(np.asarray(y), np.asarray(y_ref), rtol=1e-4, atol=1e-4)
    assert y.shape == (B, output_length, output_size)

    print("KERNEL_OK")
</pallas_src>

<mosaic_0001>
module attributes {stable_mosaic.version = 11 : i64} {
  func.func @kernel(%arg0: i32, %arg1: memref<1x8x16xf32, #tpu.memory_space<vmem>>, %arg2: memref<16x128xf32, #tpu.memory_space<vmem>>, %arg3: memref<32x128xf32, #tpu.memory_space<vmem>>, %arg4: memref<1x128xf32, #tpu.memory_space<vmem>>, %arg5: memref<32x128xf32, #tpu.memory_space<vmem>>, %arg6: memref<32x128xf32, #tpu.memory_space<vmem>>, %arg7: memref<1x128xf32, #tpu.memory_space<vmem>>, %arg8: memref<32x32xf32, #tpu.memory_space<vmem>>, %arg9: memref<1x32xf32, #tpu.memory_space<vmem>>, %arg10: memref<32x4xf32, #tpu.memory_space<vmem>>, %arg11: memref<1x4xf32, #tpu.memory_space<vmem>>, %arg12: memref<1x1x4xf32, #tpu.memory_space<vmem>>, %arg13: memref<1x8x32xf32, #tpu.memory_space<vmem>>) attributes {dimension_semantics = [#tpu.dimension_semantics<parallel>], iteration_bounds = array<i64: 2>, scalar_prefetch = 0 : i64, scratch_operands = 1 : i64, tpu.core_type = #tpu.core_type<tc>, window_params = [{transform_indices = @transform_0, window_bounds = array<i64: 1, 8, 16>}, {pipeline_mode = #tpu.pipeline_mode<synchronous>, transform_indices = @transform_1, window_bounds = array<i64: 16, 128>}, {pipeline_mode = #tpu.pipeline_mode<synchronous>, transform_indices = @transform_2, window_bounds = array<i64: 32, 128>}, {pipeline_mode = #tpu.pipeline_mode<synchronous>, transform_indices = @transform_3, window_bounds = array<i64: 1, 128>}, {pipeline_mode = #tpu.pipeline_mode<synchronous>, transform_indices = @transform_4, window_bounds = array<i64: 32, 128>}, {pipeline_mode = #tpu.pipeline_mode<synchronous>, transform_indices = @transform_5, window_bounds = array<i64: 32, 128>}, {pipeline_mode = #tpu.pipeline_mode<synchronous>, transform_indices = @transform_6, window_bounds = array<i64: 1, 128>}, {pipeline_mode = #tpu.pipeline_mode<synchronous>, transform_indices = @transform_7, window_bounds = array<i64: 32, 32>}, {pipeline_mode = #tpu.pipeline_mode<synchronous>, transform_indices = @transform_8, window_bounds = array<i64: 1, 32>}, {pipeline_mode = #tpu.pipeline_mode<synchronous>, transform_indices = @transform_9, window_bounds = array<i64: 32, 4>}, {pipeline_mode = #tpu.pipeline_mode<synchronous>, transform_indices = @transform_10, window_bounds = array<i64: 1, 4>}, {transform_indices = @transform_11, window_bounds = array<i64: 1, 1, 4>}]} {
    %c0 = arith.constant 0 : index
    %c0_0 = arith.constant 0 : index
    %c0_1 = arith.constant 0 : index
    %0 = vector.load %arg1[%c0, %c0_0, %c0_1] : memref<1x8x16xf32, #tpu.memory_space<vmem>>, vector<1x8x16xf32>
    %1 = vector.shape_cast %0 : vector<1x8x16xf32> to vector<8x16xf32>
    %c0_2 = arith.constant 0 : index
    %c0_3 = arith.constant 0 : index
    %2 = vector.load %arg2[%c0_2, %c0_3] : memref<16x128xf32, #tpu.memory_space<vmem>>, vector<16x128xf32>
    %cst = arith.constant dense<0.000000e+00> : vector<8x128xf32>
    %3 = tpu.matmul %1, %2, %cst {dimension_numbers = #tpu.dot_dimension_numbers<[1], [0], [0], [1], [0, 0, 1, 1], [], []>} : vector<8x16xf32>, vector<16x128xf32>, vector<8x128xf32> -> vector<8x128xf32>
    %c0_4 = arith.constant 0 : index
    %c0_5 = arith.constant 0 : index
    %4 = vector.load %arg4[%c0_4, %c0_5] : memref<1x128xf32, #tpu.memory_space<vmem>>, vector<1x128xf32>
    %5 = vector.broadcast %4 : vector<1x128xf32> to vector<8x128xf32>
    %6 = arith.addf %3, %5 : vector<8x128xf32>
    %7 = vector.shape_cast %6 : vector<8x128xf32> to vector<1x8x128xf32>
    %c0_6 = arith.constant 0 : index
    %c0_7 = arith.constant 0 : index
    %8 = vector.load %arg3[%c0_6, %c0_7] : memref<32x128xf32, #tpu.memory_space<vmem>>, vector<32x128xf32>
    %cst_8 = arith.constant 0.000000e+00 : f32
    %9 = vector.broadcast %cst_8 : f32 to vector<1x32xf32>
    %cst_9 = arith.constant 0.000000e+00 : f32
    %10 = vector.broadcast %cst_9 : f32 to vector<1x32xf32>
    %11 = vector.extract_strided_slice %7 {offsets = [0, 0, 0], sizes = [1, 1, 128], strides = [1, 1, 1]} : vector<1x8x128xf32> to vector<1x1x128xf32>
    %12 = vector.shape_cast %11 : vector<1x1x128xf32> to vector<1x128xf32>
    %cst_10 = arith.constant dense<0.000000e+00> : vector<1x128xf32>
    %13 = tpu.matmul %9, %8, %cst_10 {dimension_numbers = #tpu.dot_dimension_numbers<[1], [0], [0], [1], [0, 0, 1, 1], [], []>} : vector<1x32xf32>, vector<32x128xf32>, vector<1x128xf32> -> vector<1x128xf32>
    %14 = arith.addf %12, %13 : vector<1x128xf32>
    %15 = vector.extract_strided_slice %14 {offsets = [0, 0], sizes = [1, 32], strides = [1, 1]} : vector<1x128xf32> to vector<1x32xf32>
    %16 = arith.negf %15 : vector<1x32xf32>
    %17 = math.exp %16 : vector<1x32xf32>
    %cst_11 = arith.constant 1.000000e+00 : f32
    %18 = vector.broadcast %cst_11 : f32 to vector<1x32xf32>
    %19 = arith.addf %18, %17 : vector<1x32xf32>
    %20 = arith.divf %18, %19 : vector<1x32xf32>
    %21 = vector.extract_strided_slice %14 {offsets = [0, 32], sizes = [1, 32], strides = [1, 1]} : vector<1x128xf32> to vector<1x32xf32>
    %22 = arith.negf %21 : vector<1x32xf32>
    %23 = math.exp %22 : vector<1x32xf32>
    %cst_12 = arith.constant 1.000000e+00 : f32
    %24 = vector.broadcast %cst_12 : f32 to vector<1x32xf32>
    %25 = arith.addf %24, %23 : vector<1x32xf32>
    %26 = arith.divf %24, %25 : vector<1x32xf32>
    %27 = vector.extract_strided_slice %14 {offsets = [0, 64], sizes = [1, 32], strides = [1, 1]} : vector<1x128xf32> to vector<1x32xf32>
    %28 = math.tanh %27 : vector<1x32xf32>
    %29 = vector.extract_strided_slice %14 {offsets = [0, 96], sizes = [1, 32], strides = [1, 1]} : vector<1x128xf32> to vector<1x32xf32>
    %30 = arith.negf %29 : vector<1x32xf32>
    %31 = math.exp %30 : vector<1x32xf32>
    %cst_13 = arith.constant 1.000000e+00 : f32
    %32 = vector.broadcast %cst_13 : f32 to vector<1x32xf32>
    %33 = arith.addf %32, %31 : vector<1x32xf32>
    %34 = arith.divf %32, %33 : vector<1x32xf32>
    %35 = arith.mulf %26, %10 : vector<1x32xf32>
    %36 = arith.mulf %20, %28 : vector<1x32xf32>
    %37 = arith.addf %35, %36 : vector<1x32xf32>
    %38 = math.tanh %37 : vector<1x32xf32>
    %39 = arith.mulf %34, %38 : vector<1x32xf32>
    %c0_14 = arith.constant 0 : index
    %c0_15 = arith.constant 0 : index
    %c0_16 = arith.constant 0 : index
    %40 = vector.load %arg13[%c0_14, %c0_15, %c0_16] : memref<1x8x32xf32, #tpu.memory_space<vmem>>, vector<1x1x32xf32>
    %41 = vector.shape_cast %40 : vector<1x1x32xf32> to vector<1x32xf32>
    %42 = vector.shape_cast %39 : vector<1x32xf32> to vector<1x1x32xf32>
    tpu.vector_store %arg13[%c0_14, %c0_15, %c0_16], %42 {strides = array<i32>} : memref<1x8x32xf32, #tpu.memory_space<vmem>>, vector<1x1x32xf32>,
    %43 = vector.extract_strided_slice %7 {offsets = [0, 1, 0], sizes = [1, 1, 128], strides = [1, 1, 1]} : vector<1x8x128xf32> to vector<1x1x128xf32>
    %44 = vector.shape_cast %43 : vector<1x1x128xf32> to vector<1x128xf32>
    %cst_17 = arith.constant dense<0.000000e+00> : vector<1x128xf32>
    %45 = tpu.matmul %39, %8, %cst_17 {dimension_numbers = #tpu.dot_dimension_numbers<[1], [0], [0], [1], [0, 0, 1, 1], [], []>} : vector<1x32xf32>, vector<32x128xf32>, vector<1x128xf32> -> vector<1x128xf32>
    %46 = arith.addf %44, %45 : vector<1x128xf32>
    %47 = vector.extract_strided_slice %46 {offsets = [0, 0], sizes = [1, 32], strides = [1, 1]} : vector<1x128xf32> to vector<1x32xf32>
    %48 = arith.negf %47 : vector<1x32xf32>
    %49 = math.exp %48 : vector<1x32xf32>
    %cst_18 = arith.constant 1.000000e+00 : f32
    %50 = vector.broadcast %cst_18 : f32 to vector<1x32xf32>
    %51 = arith.addf %50, %49 : vector<1x32xf32>
    %52 = arith.divf %50, %51 : vector<1x32xf32>
    %53 = vector.extract_strided_slice %46 {offsets = [0, 32], sizes = [1, 32], strides = [1, 1]} : vector<1x128xf32> to vector<1x32xf32>
    %54 = arith.negf %53 : vector<1x32xf32>
    %55 = math.exp %54 : vector<1x32xf32>
    %cst_19 = arith.constant 1.000000e+00 : f32
    %56 = vector.broadcast %cst_19 : f32 to vector<1x32xf32>
    %57 = arith.addf %56, %55 : vector<1x32xf32>
    %58 = arith.divf %56, %57 : vector<1x32xf32>
    %59 = vector.extract_strided_slice %46 {offsets = [0, 64], sizes = [1, 32], strides = [1, 1]} : vector<1x128xf32> to vector<1x32xf32>
    %60 = math.tanh %59 : vector<1x32xf32>
    %61 = vector.extract_strided_slice %46 {offsets = [0, 96], sizes = [1, 32], strides = [1, 1]} : vector<1x128xf32> to vector<1x32xf32>
    %62 = arith.negf %61 : vector<1x32xf32>
    %63 = math.exp %62 : vector<1x32xf32>
    %cst_20 = arith.constant 1.000000e+00 : f32
    %64 = vector.broadcast %cst_20 : f32 to vector<1x32xf32>
    %65 = arith.addf %64, %63 : vector<1x32xf32>
    %66 = arith.divf %64, %65 : vector<1x32xf32>
    %67 = arith.mulf %58, %37 : vector<1x32xf32>
    %68 = arith.mulf %52, %60 : vector<1x32xf32>
    %69 = arith.addf %67, %68 : vector<1x32xf32>
    %70 = math.tanh %69 : vector<1x32xf32>
    %71 = arith.mulf %66, %70 : vector<1x32xf32>
    %c0_21 = arith.constant 0 : index
    %c1 = arith.constant 1 : index
    %c0_22 = arith.constant 0 : index
    %72 = vector.load %arg13[%c0_21, %c1, %c0_22] : memref<1x8x32xf32, #tpu.memory_space<vmem>>, vector<1x1x32xf32>
    %73 = vector.shape_cast %72 : vector<1x1x32xf32> to vector<1x32xf32>
    %74 = vector.shape_cast %71 : vector<1x32xf32> to vector<1x1x32xf32>
    tpu.vector_store %arg13[%c0_21, %c1, %c0_22], %74 {strides = array<i32>} : memref<1x8x32xf32, #tpu.memory_space<vmem>>, vector<1x1x32xf32>,
    %75 = vector.extract_strided_slice %7 {offsets = [0, 2, 0], sizes = [1, 1, 128], strides = [1, 1, 1]} : vector<1x8x128xf32> to vector<1x1x128xf32>
    %76 = vector.shape_cast %75 : vector<1x1x128xf32> to vector<1x128xf32>
    %cst_23 = arith.constant dense<0.000000e+00> : vector<1x128xf32>
    %77 = tpu.matmul %71, %8, %cst_23 {dimension_numbers = #tpu.dot_dimension_numbers<[1], [0], [0], [1], [0, 0, 1, 1], [], []>} : vector<1x32xf32>, vector<32x128xf32>, vector<1x128xf32> -> vector<1x128xf32>
    %78 = arith.addf %76, %77 : vector<1x128xf32>
    %79 = vector.extract_strided_slice %78 {offsets = [0, 0], sizes = [1, 32], strides = [1, 1]} : vector<1x128xf32> to vector<1x32xf32>
    %80 = arith.negf %79 : vector<1x32xf32>
    %81 = math.exp %80 : vector<1x32xf32>
    %cst_24 = arith.constant 1.000000e+00 : f32
    %82 = vector.broadcast %cst_24 : f32 to vector<1x32xf32>
    %83 = arith.addf %82, %81 : vector<1x32xf32>
    %84 = arith.divf %82, %83 : vector<1x32xf32>
    %85 = vector.extract_strided_slice %78 {offsets = [0, 32], sizes = [1, 32], strides = [1, 1]} : vector<1x128xf32> to vector<1x32xf32>
    %86 = arith.negf %85 : vector<1x32xf32>
    %87 = math.exp %86 : vector<1x32xf32>
    %cst_25 = arith.constant 1.000000e+00 : f32
    %88 = vector.broadcast %cst_25 : f32 to vector<1x32xf32>
    %89 = arith.addf %88, %87 : vector<1x32xf32>
    %90 = arith.divf %88, %89 : vector<1x32xf32>
    %91 = vector.extract_strided_slice %78 {offsets = [0, 64], sizes = [1, 32], strides = [1, 1]} : vector<1x128xf32> to vector<1x32xf32>
    %92 = math.tanh %91 : vector<1x32xf32>
    %93 = vector.extract_strided_slice %78 {offsets = [0, 96], sizes = [1, 32], strides = [1, 1]} : vector<1x128xf32> to vector<1x32xf32>
    %94 = arith.negf %93 : vector<1x32xf32>
    %95 = math.exp %94 : vector<1x32xf32>
    %cst_26 = arith.constant 1.000000e+00 : f32
    %96 = vector.broadcast %cst_26 : f32 to vector<1x32xf32>
    %97 = arith.addf %96, %95 : vector<1x32xf32>
    %98 = arith.divf %96, %97 : vector<1x32xf32>
    %99 = arith.mulf %90, %69 : vector<1x32xf32>
    %100 = arith.mulf %84, %92 : vector<1x32xf32>
    %101 = arith.addf %99, %100 : vector<1x32xf32>
    %102 = math.tanh %101 : vector<1x32xf32>
    %103 = arith.mulf %98, %102 : vector<1x32xf32>
    %c0_27 = arith.constant 0 : index
    %c2 = arith.constant 2 : index
    %c0_28 = arith.constant 0 : index
    %104 = vector.load %arg13[%c0_27, %c2, %c0_28] : memref<1x8x32xf32, #tpu.memory_space<vmem>>, vector<1x1x32xf32>
    %105 = vector.shape_cast %104 : vector<1x1x32xf32> to vector<1x32xf32>
    %106 = vector.shape_cast %103 : vector<1x32xf32> to vector<1x1x32xf32>
    tpu.vector_store %arg13[%c0_27, %c2, %c0_28], %106 {strides = array<i32>} : memref<1x8x32xf32, #tpu.memory_space<vmem>>, vector<1x1x32xf32>,
    %107 = vector.extract_strided_slice %7 {offsets = [0, 3, 0], sizes = [1, 1, 128], strides = [1, 1, 1]} : vector<1x8x128xf32> to vector<1x1x128xf32>
    %108 = vector.shape_cast %107 : vector<1x1x128xf32> to vector<1x128xf32>
    %cst_29 = arith.constant dense<0.000000e+00> : vector<1x128xf32>
    %109 = tpu.matmul %103, %8, %cst_29 {dimension_numbers = #tpu.dot_dimension_numbers<[1], [0], [0], [1], [0, 0, 1, 1], [], []>} : vector<1x32xf32>, vector<32x128xf32>, vector<1x128xf32> -> vector<1x128xf32>
    %110 = arith.addf %108, %109 : vector<1x128xf32>
    %111 = vector.extract_strided_slice %110 {offsets = [0, 0], sizes = [1, 32], strides = [1, 1]} : vector<1x128xf32> to vector<1x32xf32>
    %112 = arith.negf %111 : vector<1x32xf32>
    %113 = math.exp %112 : vector<1x32xf32>
    %cst_30 = arith.constant 1.000000e+00 : f32
    %114 = vector.broadcast %cst_30 : f32 to vector<1x32xf32>
    %115 = arith.addf %114, %113 : vector<1x32xf32>
    %116 = arith.divf %114, %115 : vector<1x32xf32>
    %117 = vector.extract_strided_slice %110 {offsets = [0, 32], sizes = [1, 32], strides = [1, 1]} : vector<1x128xf32> to vector<1x32xf32>
    %118 = arith.negf %117 : vector<1x32xf32>
    %119 = math.exp %118 : vector<1x32xf32>
    %cst_31 = arith.constant 1.000000e+00 : f32
    %120 = vector.broadcast %cst_31 : f32 to vector<1x32xf32>
    %121 = arith.addf %120, %119 : vector<1x32xf32>
    %122 = arith.divf %120, %121 : vector<1x32xf32>
    %123 = vector.extract_strided_slice %110 {offsets = [0, 64], sizes = [1, 32], strides = [1, 1]} : vector<1x128xf32> to vector<1x32xf32>
    %124 = math.tanh %123 : vector<1x32xf32>
    %125 = vector.extract_strided_slice %110 {offsets = [0, 96], sizes = [1, 32], strides = [1, 1]} : vector<1x128xf32> to vector<1x32xf32>
    %126 = arith.negf %125 : vector<1x32xf32>
    %127 = math.exp %126 : vector<1x32xf32>
    %cst_32 = arith.constant 1.000000e+00 : f32
    %128 = vector.broadcast %cst_32 : f32 to vector<1x32xf32>
    %129 = arith.addf %128, %127 : vector<1x32xf32>
    %130 = arith.divf %128, %129 : vector<1x32xf32>
    %131 = arith.mulf %122, %101 : vector<1x32xf32>
    %132 = arith.mulf %116, %124 : vector<1x32xf32>
    %133 = arith.addf %131, %132 : vector<1x32xf32>
    %134 = math.tanh %133 : vector<1x32xf32>
    %135 = arith.mulf %130, %134 : vector<1x32xf32>
    %c0_33 = arith.constant 0 : index
    %c3 = arith.constant 3 : index
    %c0_34 = arith.constant 0 : index
    %136 = vector.load %arg13[%c0_33, %c3, %c0_34] : memref<1x8x32xf32, #tpu.memory_space<vmem>>, vector<1x1x32xf32>
    %137 = vector.shape_cast %136 : vector<1x1x32xf32> to vector<1x32xf32>
    %138 = vector.shape_cast %135 : vector<1x32xf32> to vector<1x1x32xf32>
    tpu.vector_store %arg13[%c0_33, %c3, %c0_34], %138 {strides = array<i32>} : memref<1x8x32xf32, #tpu.memory_space<vmem>>, vector<1x1x32xf32>,
    %139 = vector.extract_strided_slice %7 {offsets = [0, 4, 0], sizes = [1, 1, 128], strides = [1, 1, 1]} : vector<1x8x128xf32> to vector<1x1x128xf32>
    %140 = vector.shape_cast %139 : vector<1x1x128xf32> to vector<1x128xf32>
    %cst_35 = arith.constant dense<0.000000e+00> : vector<1x128xf32>
    %141 = tpu.matmul %135, %8, %cst_35 {dimension_numbers = #tpu.dot_dimension_numbers<[1], [0], [0], [1], [0, 0, 1, 1], [], []>} : vector<1x32xf32>, vector<32x128xf32>, vector<1x128xf32> -> vector<1x128xf32>
    %142 = arith.addf %140, %141 : vector<1x128xf32>
    %143 = vector.extract_strided_slice %142 {offsets = [0, 0], sizes = [1, 32], strides = [1, 1]} : vector<1x128xf32> to vector<1x32xf32>
    %144 = arith.negf %143 : vector<1x32xf32>
    %145 = math.exp %144 : vector<1x32xf32>
    %cst_36 = arith.constant 1.000000e+00 : f32
    %146 = vector.broadcast %cst_36 : f32 to vector<1x32xf32>
    %147 = arith.addf %146, %145 : vector<1x32xf32>
    %148 = arith.divf %146, %147 : vector<1x32xf32>
    %149 = vector.extract_strided_slice %142 {offsets = [0, 32], sizes = [1, 32], strides = [1, 1]} : vector<1x128xf32> to vector<1x32xf32>
    %150 = arith.negf %149 : vector<1x32xf32>
    %151 = math.exp %150 : vector<1x32xf32>
    %cst_37 = arith.constant 1.000000e+00 : f32
    %152 = vector.broadcast %cst_37 : f32 to vector<1x32xf32>
    %153 = arith.addf %152, %151 : vector<1x32xf32>
    %154 = arith.divf %152, %153 : vector<1x32xf32>
    %155 = vector.extract_strided_slice %142 {offsets = [0, 64], sizes = [1, 32], strides = [1, 1]} : vector<1x128xf32> to vector<1x32xf32>
    %156 = math.tanh %155 : vector<1x32xf32>
    %157 = vector.extract_strided_slice %142 {offsets = [0, 96], sizes = [1, 32], strides = [1, 1]} : vector<1x128xf32> to vector<1x32xf32>
    %158 = arith.negf %157 : vector<1x32xf32>
    %159 = math.exp %158 : vector<1x32xf32>
    %cst_38 = arith.constant 1.000000e+00 : f32
    %160 = vector.broadcast %cst_38 : f32 to vector<1x32xf32>
    %161 = arith.addf %160, %159 : vector<1x32xf32>
    %162 = arith.divf %160, %161 : vector<1x32xf32>
    %163 = arith.mulf %154, %133 : vector<1x32xf32>
    %164 = arith.mulf %148, %156 : vector<1x32xf32>
    %165 = arith.addf %163, %164 : vector<1x32xf32>
    %166 = math.tanh %165 : vector<1x32xf32>
    %167 = arith.mulf %162, %166 : vector<1x32xf32>
    %c0_39 = arith.constant 0 : index
    %c4 = arith.constant 4 : index
    %c0_40 = arith.constant 0 : index
    %168 = vector.load %arg13[%c0_39, %c4, %c0_40] : memref<1x8x32xf32, #tpu.memory_space<vmem>>, vector<1x1x32xf32>
    %169 = vector.shape_cast %168 : vector<1x1x32xf32> to vector<1x32xf32>
    %170 = vector.shape_cast %167 : vector<1x32xf32> to vector<1x1x32xf32>
    tpu.vector_store %arg13[%c0_39, %c4, %c0_40], %170 {strides = array<i32>} : memref<1x8x32xf32, #tpu.memory_space<vmem>>, vector<1x1x32xf32>,
    %171 = vector.extract_strided_slice %7 {offsets = [0, 5, 0], sizes = [1, 1, 128], strides = [1, 1, 1]} : vector<1x8x128xf32> to vector<1x1x128xf32>
    %172 = vector.shape_cast %171 : vector<1x1x128xf32> to vector<1x128xf32>
    %cst_41 = arith.constant dense<0.000000e+00> : vector<1x128xf32>
    %173 = tpu.matmul %167, %8, %cst_41 {dimension_numbers = #tpu.dot_dimension_numbers<[1], [0], [0], [1], [0, 0, 1, 1], [], []>} : vector<1x32xf32>, vector<32x128xf32>, vector<1x128xf32> -> vector<1x128xf32>
    %174 = arith.addf %172, %173 : vector<1x128xf32>
    %175 = vector.extract_strided_slice %174 {offsets = [0, 0], sizes = [1, 32], strides = [1, 1]} : vector<1x128xf32> to vector<1x32xf32>
    %176 = arith.negf %175 : vector<1x32xf32>
    %177 = math.exp %176 : vector<1x32xf32>
    %cst_42 = arith.constant 1.000000e+00 : f32
    %178 = vector.broadcast %cst_42 : f32 to vector<1x32xf32>
    %179 = arith.addf %178, %177 : vector<1x32xf32>
    %180 = arith.divf %178, %179 : vector<1x32xf32>
    %181 = vector.extract_strided_slice %174 {offsets = [0, 32], sizes = [1, 32], strides = [1, 1]} : vector<1x128xf32> to vector<1x32xf32>
    %182 = arith.negf %181 : vector<1x32xf32>
    %183 = math.exp %182 : vector<1x32xf32>
    %cst_43 = arith.constant 1.000000e+00 : f32
    %184 = vector.broadcast %cst_43 : f32 to vector<1x32xf32>
    %185 = arith.addf %184, %183 : vector<1x32xf32>
    %186 = arith.divf %184, %185 : vector<1x32xf32>
    %187 = vector.extract_strided_slice %174 {offsets = [0, 64], sizes = [1, 32], strides = [1, 1]} : vector<1x128xf32> to vector<1x32xf32>
    %188 = math.tanh %187 : vector<1x32xf32>
    %189 = vector.extract_strided_slice %174 {offsets = [0, 96], sizes = [1, 32], strides = [1, 1]} : vector<1x128xf32> to vector<1x32xf32>
    %190 = arith.negf %189 : vector<1x32xf32>
    %191 = math.exp %190 : vector<1x32xf32>
    %cst_44 = arith.constant 1.000000e+00 : f32
    %192 = vector.broadcast %cst_44 : f32 to vector<1x32xf32>
    %193 = arith.addf %192, %191 : vector<1x32xf32>
    %194 = arith.divf %192, %193 : vector<1x32xf32>
    %195 = arith.mulf %186, %165 : vector<1x32xf32>
    %196 = arith.mulf %180, %188 : vector<1x32xf32>
    %197 = arith.addf %195, %196 : vector<1x32xf32>
    %198 = math.tanh %197 : vector<1x32xf32>
    %199 = arith.mulf %194, %198 : vector<1x32xf32>
    %c0_45 = arith.constant 0 : index
    %c5 = arith.constant 5 : index
    %c0_46 = arith.constant 0 : index
    %200 = vector.load %arg13[%c0_45, %c5, %c0_46] : memref<1x8x32xf32, #tpu.memory_space<vmem>>, vector<1x1x32xf32>
    %201 = vector.shape_cast %200 : vector<1x1x32xf32> to vector<1x32xf32>
    %202 = vector.shape_cast %199 : vector<1x32xf32> to vector<1x1x32xf32>
    tpu.vector_store %arg13[%c0_45, %c5, %c0_46], %202 {strides = array<i32>} : memref<1x8x32xf32, #tpu.memory_space<vmem>>, vector<1x1x32xf32>,
    %203 = vector.extract_strided_slice %7 {offsets = [0, 6, 0], sizes = [1, 1, 128], strides = [1, 1, 1]} : vector<1x8x128xf32> to vector<1x1x128xf32>
    %204 = vector.shape_cast %203 : vector<1x1x128xf32> to vector<1x128xf32>
    %cst_47 = arith.constant dense<0.000000e+00> : vector<1x128xf32>
    %205 = tpu.matmul %199, %8, %cst_47 {dimension_numbers = #tpu.dot_dimension_numbers<[1], [0], [0], [1], [0, 0, 1, 1], [], []>} : vector<1x32xf32>, vector<32x128xf32>, vector<1x128xf32> -> vector<1x128xf32>
    %206 = arith.addf %204, %205 : vector<1x128xf32>
    %207 = vector.extract_strided_slice %206 {offsets = [0, 0], sizes = [1, 32], strides = [1, 1]} : vector<1x128xf32> to vector<1x32xf32>
    %208 = arith.negf %207 : vector<1x32xf32>
    %209 = math.exp %208 : vector<1x32xf32>
    %cst_48 = arith.constant 1.000000e+00 : f32
    %210 = vector.broadcast %cst_48 : f32 to vector<1x32xf32>
    %211 = arith.addf %210, %209 : vector<1x32xf32>
    %212 = arith.divf %210, %211 : vector<1x32xf32>
    %213 = vector.extract_strided_slice %206 {offsets = [0, 32], sizes = [1, 32], strides = [1, 1]} : vector<1x128xf32> to vector<1x32xf32>
    %214 = arith.negf %213 : vector<1x32xf32>
    %215 = math.exp %214 : vector<1x32xf32>
    %cst_49 = arith.constant 1.000000e+00 : f32
    %216 = vector.broadcast %cst_49 : f32 to vector<1x32xf32>
    %217 = arith.addf %216, %215 : vector<1x32xf32>
    %218 = arith.divf %216, %217 : vector<1x32xf32>
    %219 = vector.extract_strided_slice %206 {offsets = [0, 64], sizes = [1, 32], strides = [1, 1]} : vector<1x128xf32> to vector<1x32xf32>
    %220 = math.tanh %219 : vector<1x32xf32>
    %221 = vector.extract_strided_slice %206 {offsets = [0, 96], sizes = [1, 32], strides = [1, 1]} : vector<1x128xf32> to vector<1x32xf32>
    %222 = arith.negf %221 : vector<1x32xf32>
    %223 = math.exp %222 : vector<1x32xf32>
    %cst_50 = arith.constant 1.000000e+00 : f32
    %224 = vector.broadcast %cst_50 : f32 to vector<1x32xf32>
    %225 = arith.addf %224, %223 : vector<1x32xf32>
    %226 = arith.divf %224, %225 : vector<1x32xf32>
    %227 = arith.mulf %218, %197 : vector<1x32xf32>
    %228 = arith.mulf %212, %220 : vector<1x32xf32>
    %229 = arith.addf %227, %228 : vector<1x32xf32>
    %230 = math.tanh %229 : vector<1x32xf32>
    %231 = arith.mulf %226, %230 : vector<1x32xf32>
    %c0_51 = arith.constant 0 : index
    %c6 = arith.constant 6 : index
    %c0_52 = arith.constant 0 : index
    %232 = vector.load %arg13[%c0_51, %c6, %c0_52] : memref<1x8x32xf32, #tpu.memory_space<vmem>>, vector<1x1x32xf32>
    %233 = vector.shape_cast %232 : vector<1x1x32xf32> to vector<1x32xf32>
    %234 = vector.shape_cast %231 : vector<1x32xf32> to vector<1x1x32xf32>
    tpu.vector_store %arg13[%c0_51, %c6, %c0_52], %234 {strides = array<i32>} : memref<1x8x32xf32, #tpu.memory_space<vmem>>, vector<1x1x32xf32>,
    %235 = vector.extract_strided_slice %7 {offsets = [0, 7, 0], sizes = [1, 1, 128], strides = [1, 1, 1]} : vector<1x8x128xf32> to vector<1x1x128xf32>
    %236 = vector.shape_cast %235 : vector<1x1x128xf32> to vector<1x128xf32>
    %cst_53 = arith.constant dense<0.000000e+00> : vector<1x128xf32>
    %237 = tpu.matmul %231, %8, %cst_53 {dimension_numbers = #tpu.dot_dimension_numbers<[1], [0], [0], [1], [0, 0, 1, 1], [], []>} : vector<1x32xf32>, vector<32x128xf32>, vector<1x128xf32> -> vector<1x128xf32>
    %238 = arith.addf %236, %237 : vector<1x128xf32>
    %239 = vector.extract_strided_slice %238 {offsets = [0, 0], sizes = [1, 32], strides = [1, 1]} : vector<1x128xf32> to vector<1x32xf32>
    %240 = arith.negf %239 : vector<1x32xf32>
    %241 = math.exp %240 : vector<1x32xf32>
    %cst_54 = arith.constant 1.000000e+00 : f32
    %242 = vector.broadcast %cst_54 : f32 to vector<1x32xf32>
    %243 = arith.addf %242, %241 : vector<1x32xf32>
    %244 = arith.divf %242, %243 : vector<1x32xf32>
    %245 = vector.extract_strided_slice %238 {offsets = [0, 32], sizes = [1, 32], strides = [1, 1]} : vector<1x128xf32> to vector<1x32xf32>
    %246 = arith.negf %245 : vector<1x32xf32>
    %247 = math.exp %246 : vector<1x32xf32>
    %cst_55 = arith.constant 1.000000e+00 : f32
    %248 = vector.broadcast %cst_55 : f32 to vector<1x32xf32>
    %249 = arith.addf %248, %247 : vector<1x32xf32>
    %250 = arith.divf %248, %249 : vector<1x32xf32>
    %251 = vector.extract_strided_slice %238 {offsets = [0, 64], sizes = [1, 32], strides = [1, 1]} : vector<1x128xf32> to vector<1x32xf32>
    %252 = math.tanh %251 : vector<1x32xf32>
    %253 = vector.extract_strided_slice %238 {offsets = [0, 96], sizes = [1, 32], strides = [1, 1]} : vector<1x128xf32> to vector<1x32xf32>
    %254 = arith.negf %253 : vector<1x32xf32>
    %255 = math.exp %254 : vector<1x32xf32>
    %cst_56 = arith.constant 1.000000e+00 : f32
    %256 = vector.broadcast %cst_56 : f32 to vector<1x32xf32>
    %257 = arith.addf %256, %255 : vector<1x32xf32>
    %258 = arith.divf %256, %257 : vector<1x32xf32>
    %259 = arith.mulf %250, %229 : vector<1x32xf32>
    %260 = arith.mulf %244, %252 : vector<1x32xf32>
    %261 = arith.addf %259, %260 : vector<1x32xf32>
    %262 = math.tanh %261 : vector<1x32xf32>
    %263 = arith.mulf %258, %262 : vector<1x32xf32>
    %c0_57 = arith.constant 0 : index
    %c7 = arith.constant 7 : index
    %c0_58 = arith.constant 0 : index
    %264 = vector.load %arg13[%c0_57, %c7, %c0_58] : memref<1x8x32xf32, #tpu.memory_space<vmem>>, vector<1x1x32xf32>
    %265 = vector.shape_cast %264 : vector<1x1x32xf32> to vector<1x32xf32>
    %266 = vector.shape_cast %263 : vector<1x32xf32> to vector<1x1x32xf32>
    tpu.vector_store %arg13[%c0_57, %c7, %c0_58], %266 {strides = array<i32>} : memref<1x8x32xf32, #tpu.memory_space<vmem>>, vector<1x1x32xf32>,
    %c0_59 = arith.constant 0 : index
    %c0_60 = arith.constant 0 : index
    %c0_61 = arith.constant 0 : index
    %267 = vector.load %arg13[%c0_59, %c0_60, %c0_61] : memref<1x8x32xf32, #tpu.memory_space<vmem>>, vector<1x8x32xf32>
    %268 = vector.shape_cast %267 : vector<1x8x32xf32> to vector<8x32xf32>
    %c0_62 = arith.constant 0 : index
    %c0_63 = arith.constant 0 : index
    %269 = vector.load %arg5[%c0_62, %c0_63] : memref<32x128xf32, #tpu.memory_space<vmem>>, vector<32x128xf32>
    %cst_64 = arith.constant dense<0.000000e+00> : vector<8x128xf32>
    %270 = tpu.matmul %268, %269, %cst_64 {dimension_numbers = #tpu.dot_dimension_numbers<[1], [0], [0], [1], [0, 0, 1, 1], [], []>} : vector<8x32xf32>, vector<32x128xf32>, vector<8x128xf32> -> vector<8x128xf32>
    %c0_65 = arith.constant 0 : index
    %c0_66 = arith.constant 0 : index
    %271 = vector.load %arg7[%c0_65, %c0_66] : memref<1x128xf32, #tpu.memory_space<vmem>>, vector<1x128xf32>
    %272 = vector.broadcast %271 : vector<1x128xf32> to vector<8x128xf32>
    %273 = arith.addf %270, %272 : vector<8x128xf32>
    %274 = vector.shape_cast %273 : vector<8x128xf32> to vector<1x8x128xf32>
    %c0_67 = arith.constant 0 : index
    %c0_68 = arith.constant 0 : index
    %275 = vector.load %arg6[%c0_67, %c0_68] : memref<32x128xf32, #tpu.memory_space<vmem>>, vector<32x128xf32>
    %cst_69 = arith.constant 0.000000e+00 : f32
    %276 = vector.broadcast %cst_69 : f32 to vector<1x32xf32>
    %cst_70 = arith.constant 0.000000e+00 : f32
    %277 = vector.broadcast %cst_70 : f32 to vector<1x32xf32>
    %278 = vector.extract_strided_slice %274 {offsets = [0, 0, 0], sizes = [1, 1, 128], strides = [1, 1, 1]} : vector<1x8x128xf32> to vector<1x1x128xf32>
    %279 = vector.shape_cast %278 : vector<1x1x128xf32> to vector<1x128xf32>
    %cst_71 = arith.constant dense<0.000000e+00> : vector<1x128xf32>
    %280 = tpu.matmul %276, %275, %cst_71 {dimension_numbers = #tpu.dot_dimension_numbers<[1], [0], [0], [1], [0, 0, 1, 1], [], []>} : vector<1x32xf32>, vector<32x128xf32>, vector<1x128xf32> -> vector<1x128xf32>
    %281 = arith.addf %279, %280 : vector<1x128xf32>
    %282 = vector.extract_strided_slice %281 {offsets = [0, 0], sizes = [1, 32], strides = [1, 1]} : vector<1x128xf32> to vector<1x32xf32>
    %283 = arith.negf %282 : vector<1x32xf32>
    %284 = math.exp %283 : vector<1x32xf32>
    %cst_72 = arith.constant 1.000000e+00 : f32
    %285 = vector.broadcast %cst_72 : f32 to vector<1x32xf32>
    %286 = arith.addf %285, %284 : vector<1x32xf32>
    %287 = arith.divf %285, %286 : vector<1x32xf32>
    %288 = vector.extract_strided_slice %281 {offsets = [0, 32], sizes = [1, 32], strides = [1, 1]} : vector<1x128xf32> to vector<1x32xf32>
    %289 = arith.negf %288 : vector<1x32xf32>
    %290 = math.exp %289 : vector<1x32xf32>
    %cst_73 = arith.constant 1.000000e+00 : f32
    %291 = vector.broadcast %cst_73 : f32 to vector<1x32xf32>
    %292 = arith.addf %291, %290 : vector<1x32xf32>
    %293 = arith.divf %291, %292 : vector<1x32xf32>
    %294 = vector.extract_strided_slice %281 {offsets = [0, 64], sizes = [1, 32], strides = [1, 1]} : vector<1x128xf32> to vector<1x32xf32>
    %295 = math.tanh %294 : vector<1x32xf32>
    %296 = vector.extract_strided_slice %281 {offsets = [0, 96], sizes = [1, 32], strides = [1, 1]} : vector<1x128xf32> to vector<1x32xf32>
    %297 = arith.negf %296 : vector<1x32xf32>
    %298 = math.exp %297 : vector<1x32xf32>
    %cst_74 = arith.constant 1.000000e+00 : f32
    %299 = vector.broadcast %cst_74 : f32 to vector<1x32xf32>
    %300 = arith.addf %299, %298 : vector<1x32xf32>
    %301 = arith.divf %299, %300 : vector<1x32xf32>
    %302 = arith.mulf %293, %277 : vector<1x32xf32>
    %303 = arith.mulf %287, %295 : vector<1x32xf32>
    %304 = arith.addf %302, %303 : vector<1x32xf32>
    %305 = math.tanh %304 : vector<1x32xf32>
    %306 = arith.mulf %301, %305 : vector<1x32xf32>
    %c0_75 = arith.constant 0 : index
    %c0_76 = arith.constant 0 : index
    %c0_77 = arith.constant 0 : index
    %307 = vector.load %arg13[%c0_75, %c0_76, %c0_77] : memref<1x8x32xf32, #tpu.memory_space<vmem>>, vector<1x1x32xf32>
    %308 = vector.shape_cast %307 : vector<1x1x32xf32> to vector<1x32xf32>
    %309 = vector.shape_cast %306 : vector<1x32xf32> to vector<1x1x32xf32>
    tpu.vector_store %arg13[%c0_75, %c0_76, %c0_77], %309 {strides = array<i32>} : memref<1x8x32xf32, #tpu.memory_space<vmem>>, vector<1x1x32xf32>,
    %310 = vector.extract_strided_slice %274 {offsets = [0, 1, 0], sizes = [1, 1, 128], strides = [1, 1, 1]} : vector<1x8x128xf32> to vector<1x1x128xf32>
    %311 = vector.shape_cast %310 : vector<1x1x128xf32> to vector<1x128xf32>
    %cst_78 = arith.constant dense<0.000000e+00> : vector<1x128xf32>
    %312 = tpu.matmul %306, %275, %cst_78 {dimension_numbers = #tpu.dot_dimension_numbers<[1], [0], [0], [1], [0, 0, 1, 1], [], []>} : vector<1x32xf32>, vector<32x128xf32>, vector<1x128xf32> -> vector<1x128xf32>
    %313 = arith.addf %311, %312 : vector<1x128xf32>
    %314 = vector.extract_strided_slice %313 {offsets = [0, 0], sizes = [1, 32], strides = [1, 1]} : vector<1x128xf32> to vector<1x32xf32>
    %315 = arith.negf %314 : vector<1x32xf32>
    %316 = math.exp %315 : vector<1x32xf32>
    %cst_79 = arith.constant 1.000000e+00 : f32
    %317 = vector.broadcast %cst_79 : f32 to vector<1x32xf32>
    %318 = arith.addf %317, %316 : vector<1x32xf32>
    %319 = arith.divf %317, %318 : vector<1x32xf32>
    %320 = vector.extract_strided_slice %313 {offsets = [0, 32], sizes = [1, 32], strides = [1, 1]} : vector<1x128xf32> to vector<1x32xf32>
    %321 = arith.negf %320 : vector<1x32xf32>
    %322 = math.exp %321 : vector<1x32xf32>
    %cst_80 = arith.constant 1.000000e+00 : f32
    %323 = vector.broadcast %cst_80 : f32 to vector<1x32xf32>
    %324 = arith.addf %323, %322 : vector<1x32xf32>
    %325 = arith.divf %323, %324 : vector<1x32xf32>
    %326 = vector.extract_strided_slice %313 {offsets = [0, 64], sizes = [1, 32], strides = [1, 1]} : vector<1x128xf32> to vector<1x32xf32>
    %327 = math.tanh %326 : vector<1x32xf32>
    %328 = vector.extract_strided_slice %313 {offsets = [0, 96], sizes = [1, 32], strides = [1, 1]} : vector<1x128xf32> to vector<1x32xf32>
    %329 = arith.negf %328 : vector<1x32xf32>
    %330 = math.exp %329 : vector<1x32xf32>
    %cst_81 = arith.constant 1.000000e+00 : f32
    %331 = vector.broadcast %cst_81 : f32 to vector<1x32xf32>
    %332 = arith.addf %331, %330 : vector<1x32xf32>
    %333 = arith.divf %331, %332 : vector<1x32xf32>
    %334 = arith.mulf %325, %304 : vector<1x32xf32>
    %335 = arith.mulf %319, %327 : vector<1x32xf32>
    %336 = arith.addf %334, %335 : vector<1x32xf32>
    %337 = math.tanh %336 : vector<1x32xf32>
    %338 = arith.mulf %333, %337 : vector<1x32xf32>
    %c0_82 = arith.constant 0 : index
    %c1_83 = arith.constant 1 : index
    %c0_84 = arith.constant 0 : index
    %339 = vector.load %arg13[%c0_82, %c1_83, %c0_84] : memref<1x8x32xf32, #tpu.memory_space<vmem>>, vector<1x1x32xf32>
    %340 = vector.shape_cast %339 : vector<1x1x32xf32> to vector<1x32xf32>
    %341 = vector.shape_cast %338 : vector<1x32xf32> to vector<1x1x32xf32>
    tpu.vector_store %arg13[%c0_82, %c1_83, %c0_84], %341 {strides = array<i32>} : memref<1x8x32xf32, #tpu.memory_space<vmem>>, vector<1x1x32xf32>,
    %342 = vector.extract_strided_slice %274 {offsets = [0, 2, 0], sizes = [1, 1, 128], strides = [1, 1, 1]} : vector<1x8x128xf32> to vector<1x1x128xf32>
    %343 = vector.shape_cast %342 : vector<1x1x128xf32> to vector<1x128xf32>
    %cst_85 = arith.constant dense<0.000000e+00> : vector<1x128xf32>
    %344 = tpu.matmul %338, %275, %cst_85 {dimension_numbers = #tpu.dot_dimension_numbers<[1], [0], [0], [1], [0, 0, 1, 1], [], []>} : vector<1x32xf32>, vector<32x128xf32>, vector<1x128xf32> -> vector<1x128xf32>
    %345 = arith.addf %343, %344 : vector<1x128xf32>
    %346 = vector.extract_strided_slice %345 {offsets = [0, 0], sizes = [1, 32], strides = [1, 1]} : vector<1x128xf32> to vector<1x32xf32>
    %347 = arith.negf %346 : vector<1x32xf32>
    %348 = math.exp %347 : vector<1x32xf32>
    %cst_86 = arith.constant 1.000000e+00 : f32
    %349 = vector.broadcast %cst_86 : f32 to vector<1x32xf32>
    %350 = arith.addf %349, %348 : vector<1x32xf32>
    %351 = arith.divf %349, %350 : vector<1x32xf32>
    %352 = vector.extract_strided_slice %345 {offsets = [0, 32], sizes = [1, 32], strides = [1, 1]} : vector<1x128xf32> to vector<1x32xf32>
    %353 = arith.negf %352 : vector<1x32xf32>
    %354 = math.exp %353 : vector<1x32xf32>
    %cst_87 = arith.constant 1.000000e+00 : f32
    %355 = vector.broadcast %cst_87 : f32 to vector<1x32xf32>
    %356 = arith.addf %355, %354 : vector<1x32xf32>
    %357 = arith.divf %355, %356 : vector<1x32xf32>
    %358 = vector.extract_strided_slice %345 {offsets = [0, 64], sizes = [1, 32], strides = [1, 1]} : vector<1x128xf32> to vector<1x32xf32>
    %359 = math.tanh %358 : vector<1x32xf32>
    %360 = vector.extract_strided_slice %345 {offsets = [0, 96], sizes = [1, 32], strides = [1, 1]} : vector<1x128xf32> to vector<1x32xf32>
    %361 = arith.negf %360 : vector<1x32xf32>
    %362 = math.exp %361 : vector<1x32xf32>
    %cst_88 = arith.constant 1.000000e+00 : f32
    %363 = vector.broadcast %cst_88 : f32 to vector<1x32xf32>
    %364 = arith.addf %363, %362 : vector<1x32xf32>
    %365 = arith.divf %363, %364 : vector<1x32xf32>
    %366 = arith.mulf %357, %336 : vector<1x32xf32>
    %367 = arith.mulf %351, %359 : vector<1x32xf32>
    %368 = arith.addf %366, %367 : vector<1x32xf32>
    %369 = math.tanh %368 : vector<1x32xf32>
    %370 = arith.mulf %365, %369 : vector<1x32xf32>
    %c0_89 = arith.constant 0 : index
    %c2_90 = arith.constant 2 : index
    %c0_91 = arith.constant 0 : index
    %371 = vector.load %arg13[%c0_89, %c2_90, %c0_91] : memref<1x8x32xf32, #tpu.memory_space<vmem>>, vector<1x1x32xf32>
    %372 = vector.shape_cast %371 : vector<1x1x32xf32> to vector<1x32xf32>
    %373 = vector.shape_cast %370 : vector<1x32xf32> to vector<1x1x32xf32>
    tpu.vector_store %arg13[%c0_89, %c2_90, %c0_91], %373 {strides = array<i32>} : memref<1x8x32xf32, #tpu.memory_space<vmem>>, vector<1x1x32xf32>,
    %374 = vector.extract_strided_slice %274 {offsets = [0, 3, 0], sizes = [1, 1, 128], strides = [1, 1, 1]} : vector<1x8x128xf32> to vector<1x1x128xf32>
    %375 = vector.shape_cast %374 : vector<1x1x128xf32> to vector<1x128xf32>
    %cst_92 = arith.constant dense<0.000000e+00> : vector<1x128xf32>
    %376 = tpu.matmul %370, %275, %cst_92 {dimension_numbers = #tpu.dot_dimension_numbers<[1], [0], [0], [1], [0, 0, 1, 1], [], []>} : vector<1x32xf32>, vector<32x128xf32>, vector<1x128xf32> -> vector<1x128xf32>
    %377 = arith.addf %375, %376 : vector<1x128xf32>
    %378 = vector.extract_strided_slice %377 {offsets = [0, 0], sizes = [1, 32], strides = [1, 1]} : vector<1x128xf32> to vector<1x32xf32>
    %379 = arith.negf %378 : vector<1x32xf32>
    %380 = math.exp %379 : vector<1x32xf32>
    %cst_93 = arith.constant 1.000000e+00 : f32
    %381 = vector.broadcast %cst_93 : f32 to vector<1x32xf32>
    %382 = arith.addf %381, %380 : vector<1x32xf32>
    %383 = arith.divf %381, %382 : vector<1x32xf32>
    %384 = vector.extract_strided_slice %377 {offsets = [0, 32], sizes = [1, 32], strides = [1, 1]} : vector<1x128xf32> to vector<1x32xf32>
    %385 = arith.negf %384 : vector<1x32xf32>
    %386 = math.exp %385 : vector<1x32xf32>
    %cst_94 = arith.constant 1.000000e+00 : f32
    %387 = vector.broadcast %cst_94 : f32 to vector<1x32xf32>
    %388 = arith.addf %387, %386 : vector<1x32xf32>
    %389 = arith.divf %387, %388 : vector<1x32xf32>
    %390 = vector.extract_strided_slice %377 {offsets = [0, 64], sizes = [1, 32], strides = [1, 1]} : vector<1x128xf32> to vector<1x32xf32>
    %391 = math.tanh %390 : vector<1x32xf32>
    %392 = vector.extract_strided_slice %377 {offsets = [0, 96], sizes = [1, 32], strides = [1, 1]} : vector<1x128xf32> to vector<1x32xf32>
    %393 = arith.negf %392 : vector<1x32xf32>
    %394 = math.exp %393 : vector<1x32xf32>
    %cst_95 = arith.constant 1.000000e+00 : f32
    %395 = vector.broadcast %cst_95 : f32 to vector<1x32xf32>
    %396 = arith.addf %395, %394 : vector<1x32xf32>
    %397 = arith.divf %395, %396 : vector<1x32xf32>
    %398 = arith.mulf %389, %368 : vector<1x32xf32>
    %399 = arith.mulf %383, %391 : vector<1x32xf32>
    %400 = arith.addf %398, %399 : vector<1x32xf32>
    %401 = math.tanh %400 : vector<1x32xf32>
    %402 = arith.mulf %397, %401 : vector<1x32xf32>
    %c0_96 = arith.constant 0 : index
    %c3_97 = arith.constant 3 : index
    %c0_98 = arith.constant 0 : index
    %403 = vector.load %arg13[%c0_96, %c3_97, %c0_98] : memref<1x8x32xf32, #tpu.memory_space<vmem>>, vector<1x1x32xf32>
    %404 = vector.shape_cast %403 : vector<1x1x32xf32> to vector<1x32xf32>
    %405 = vector.shape_cast %402 : vector<1x32xf32> to vector<1x1x32xf32>
    tpu.vector_store %arg13[%c0_96, %c3_97, %c0_98], %405 {strides = array<i32>} : memref<1x8x32xf32, #tpu.memory_space<vmem>>, vector<1x1x32xf32>,
    %406 = vector.extract_strided_slice %274 {offsets = [0, 4, 0], sizes = [1, 1, 128], strides = [1, 1, 1]} : vector<1x8x128xf32> to vector<1x1x128xf32>
    %407 = vector.shape_cast %406 : vector<1x1x128xf32> to vector<1x128xf32>
    %cst_99 = arith.constant dense<0.000000e+00> : vector<1x128xf32>
    %408 = tpu.matmul %402, %275, %cst_99 {dimension_numbers = #tpu.dot_dimension_numbers<[1], [0], [0], [1], [0, 0, 1, 1], [], []>} : vector<1x32xf32>, vector<32x128xf32>, vector<1x128xf32> -> vector<1x128xf32>
    %409 = arith.addf %407, %408 : vector<1x128xf32>
    %410 = vector.extract_strided_slice %409 {offsets = [0, 0], sizes = [1, 32], strides = [1, 1]} : vector<1x128xf32> to vector<1x32xf32>
    %411 = arith.negf %410 : vector<1x32xf32>
    %412 = math.exp %411 : vector<1x32xf32>
    %cst_100 = arith.constant 1.000000e+00 : f32
    %413 = vector.broadcast %cst_100 : f32 to vector<1x32xf32>
    %414 = arith.addf %413, %412 : vector<1x32xf32>
    %415 = arith.divf %413, %414 : vector<1x32xf32>
    %416 = vector.extract_strided_slice %409 {offsets = [0, 32], sizes = [1, 32], strides = [1, 1]} : vector<1x128xf32> to vector<1x32xf32>
    %417 = arith.negf %416 : vector<1x32xf32>
    %418 = math.exp %417 : vector<1x32xf32>
    %cst_101 = arith.constant 1.000000e+00 : f32
    %419 = vector.broadcast %cst_101 : f32 to vector<1x32xf32>
    %420 = arith.addf %419, %418 : vector<1x32xf32>
    %421 = arith.divf %419, %420 : vector<1x32xf32>
    %422 = vector.extract_strided_slice %409 {offsets = [0, 64], sizes = [1, 32], strides = [1, 1]} : vector<1x128xf32> to vector<1x32xf32>
    %423 = math.tanh %422 : vector<1x32xf32>
    %424 = vector.extract_strided_slice %409 {offsets = [0, 96], sizes = [1, 32], strides = [1, 1]} : vector<1x128xf32> to vector<1x32xf32>
    %425 = arith.negf %424 : vector<1x32xf32>
    %426 = math.exp %425 : vector<1x32xf32>
    %cst_102 = arith.constant 1.000000e+00 : f32
    %427 = vector.broadcast %cst_102 : f32 to vector<1x32xf32>
    %428 = arith.addf %427, %426 : vector<1x32xf32>
    %429 = arith.divf %427, %428 : vector<1x32xf32>
    %430 = arith.mulf %421, %400 : vector<1x32xf32>
    %431 = arith.mulf %415, %423 : vector<1x32xf32>
    %432 = arith.addf %430, %431 : vector<1x32xf32>
    %433 = math.tanh %432 : vector<1x32xf32>
    %434 = arith.mulf %429, %433 : vector<1x32xf32>
    %c0_103 = arith.constant 0 : index
    %c4_104 = arith.constant 4 : index
    %c0_105 = arith.constant 0 : index
    %435 = vector.load %arg13[%c0_103, %c4_104, %c0_105] : memref<1x8x32xf32, #tpu.memory_space<vmem>>, vector<1x1x32xf32>
    %436 = vector.shape_cast %435 : vector<1x1x32xf32> to vector<1x32xf32>
    %437 = vector.shape_cast %434 : vector<1x32xf32> to vector<1x1x32xf32>
    tpu.vector_store %arg13[%c0_103, %c4_104, %c0_105], %437 {strides = array<i32>} : memref<1x8x32xf32, #tpu.memory_space<vmem>>, vector<1x1x32xf32>,
    %438 = vector.extract_strided_slice %274 {offsets = [0, 5, 0], sizes = [1, 1, 128], strides = [1, 1, 1]} : vector<1x8x128xf32> to vector<1x1x128xf32>
    %439 = vector.shape_cast %438 : vector<1x1x128xf32> to vector<1x128xf32>
    %cst_106 = arith.constant dense<0.000000e+00> : vector<1x128xf32>
    %440 = tpu.matmul %434, %275, %cst_106 {dimension_numbers = #tpu.dot_dimension_numbers<[1], [0], [0], [1], [0, 0, 1, 1], [], []>} : vector<1x32xf32>, vector<32x128xf32>, vector<1x128xf32> -> vector<1x128xf32>
    %441 = arith.addf %439, %440 : vector<1x128xf32>
    %442 = vector.extract_strided_slice %441 {offsets = [0, 0], sizes = [1, 32], strides = [1, 1]} : vector<1x128xf32> to vector<1x32xf32>
    %443 = arith.negf %442 : vector<1x32xf32>
    %444 = math.exp %443 : vector<1x32xf32>
    %cst_107 = arith.constant 1.000000e+00 : f32
    %445 = vector.broadcast %cst_107 : f32 to vector<1x32xf32>
    %446 = arith.addf %445, %444 : vector<1x32xf32>
    %447 = arith.divf %445, %446 : vector<1x32xf32>
    %448 = vector.extract_strided_slice %441 {offsets = [0, 32], sizes = [1, 32], strides = [1, 1]} : vector<1x128xf32> to vector<1x32xf32>
    %449 = arith.negf %448 : vector<1x32xf32>
    %450 = math.exp %449 : vector<1x32xf32>
    %cst_108 = arith.constant 1.000000e+00 : f32
    %451 = vector.broadcast %cst_108 : f32 to vector<1x32xf32>
    %452 = arith.addf %451, %450 : vector<1x32xf32>
    %453 = arith.divf %451, %452 : vector<1x32xf32>
    %454 = vector.extract_strided_slice %441 {offsets = [0, 64], sizes = [1, 32], strides = [1, 1]} : vector<1x128xf32> to vector<1x32xf32>
    %455 = math.tanh %454 : vector<1x32xf32>
    %456 = vector.extract_strided_slice %441 {offsets = [0, 96], sizes = [1, 32], strides = [1, 1]} : vector<1x128xf32> to vector<1x32xf32>
    %457 = arith.negf %456 : vector<1x32xf32>
    %458 = math.exp %457 : vector<1x32xf32>
    %cst_109 = arith.constant 1.000000e+00 : f32
    %459 = vector.broadcast %cst_109 : f32 to vector<1x32xf32>
    %460 = arith.addf %459, %458 : vector<1x32xf32>
    %461 = arith.divf %459, %460 : vector<1x32xf32>
    %462 = arith.mulf %453, %432 : vector<1x32xf32>
    %463 = arith.mulf %447, %455 : vector<1x32xf32>
    %464 = arith.addf %462, %463 : vector<1x32xf32>
    %465 = math.tanh %464 : vector<1x32xf32>
    %466 = arith.mulf %461, %465 : vector<1x32xf32>
    %c0_110 = arith.constant 0 : index
    %c5_111 = arith.constant 5 : index
    %c0_112 = arith.constant 0 : index
    %467 = vector.load %arg13[%c0_110, %c5_111, %c0_112] : memref<1x8x32xf32, #tpu.memory_space<vmem>>, vector<1x1x32xf32>
    %468 = vector.shape_cast %467 : vector<1x1x32xf32> to vector<1x32xf32>
    %469 = vector.shape_cast %466 : vector<1x32xf32> to vector<1x1x32xf32>
    tpu.vector_store %arg13[%c0_110, %c5_111, %c0_112], %469 {strides = array<i32>} : memref<1x8x32xf32, #tpu.memory_space<vmem>>, vector<1x1x32xf32>,
    %470 = vector.extract_strided_slice %274 {offsets = [0, 6, 0], sizes = [1, 1, 128], strides = [1, 1, 1]} : vector<1x8x128xf32> to vector<1x1x128xf32>
    %471 = vector.shape_cast %470 : vector<1x1x128xf32> to vector<1x128xf32>
    %cst_113 = arith.constant dense<0.000000e+00> : vector<1x128xf32>
    %472 = tpu.matmul %466, %275, %cst_113 {dimension_numbers = #tpu.dot_dimension_numbers<[1], [0], [0], [1], [0, 0, 1, 1], [], []>} : vector<1x32xf32>, vector<32x128xf32>, vector<1x128xf32> -> vector<1x128xf32>
    %473 = arith.addf %471, %472 : vector<1x128xf32>
    %474 = vector.extract_strided_slice %473 {offsets = [0, 0], sizes = [1, 32], strides = [1, 1]} : vector<1x128xf32> to vector<1x32xf32>
    %475 = arith.negf %474 : vector<1x32xf32>
    %476 = math.exp %475 : vector<1x32xf32>
    %cst_114 = arith.constant 1.000000e+00 : f32
    %477 = vector.broadcast %cst_114 : f32 to vector<1x32xf32>
    %478 = arith.addf %477, %476 : vector<1x32xf32>
    %479 = arith.divf %477, %478 : vector<1x32xf32>
    %480 = vector.extract_strided_slice %473 {offsets = [0, 32], sizes = [1, 32], strides = [1, 1]} : vector<1x128xf32> to vector<1x32xf32>
    %481 = arith.negf %480 : vector<1x32xf32>
    %482 = math.exp %481 : vector<1x32xf32>
    %cst_115 = arith.constant 1.000000e+00 : f32
    %483 = vector.broadcast %cst_115 : f32 to vector<1x32xf32>
    %484 = arith.addf %483, %482 : vector<1x32xf32>
    %485 = arith.divf %483, %484 : vector<1x32xf32>
    %486 = vector.extract_strided_slice %473 {offsets = [0, 64], sizes = [1, 32], strides = [1, 1]} : vector<1x128xf32> to vector<1x32xf32>
    %487 = math.tanh %486 : vector<1x32xf32>
    %488 = vector.extract_strided_slice %473 {offsets = [0, 96], sizes = [1, 32], strides = [1, 1]} : vector<1x128xf32> to vector<1x32xf32>
    %489 = arith.negf %488 : vector<1x32xf32>
    %490 = math.exp %489 : vector<1x32xf32>
    %cst_116 = arith.constant 1.000000e+00 : f32
    %491 = vector.broadcast %cst_116 : f32 to vector<1x32xf32>
    %492 = arith.addf %491, %490 : vector<1x32xf32>
    %493 = arith.divf %491, %492 : vector<1x32xf32>
    %494 = arith.mulf %485, %464 : vector<1x32xf32>
    %495 = arith.mulf %479, %487 : vector<1x32xf32>
    %496 = arith.addf %494, %495 : vector<1x32xf32>
    %497 = math.tanh %496 : vector<1x32xf32>
    %498 = arith.mulf %493, %497 : vector<1x32xf32>
    %c0_117 = arith.constant 0 : index
    %c6_118 = arith.constant 6 : index
    %c0_119 = arith.constant 0 : index
    %499 = vector.load %arg13[%c0_117, %c6_118, %c0_119] : memref<1x8x32xf32, #tpu.memory_space<vmem>>, vector<1x1x32xf32>
    %500 = vector.shape_cast %499 : vector<1x1x32xf32> to vector<1x32xf32>
    %501 = vector.shape_cast %498 : vector<1x32xf32> to vector<1x1x32xf32>
    tpu.vector_store %arg13[%c0_117, %c6_118, %c0_119], %501 {strides = array<i32>} : memref<1x8x32xf32, #tpu.memory_space<vmem>>, vector<1x1x32xf32>,
    %502 = vector.extract_strided_slice %274 {offsets = [0, 7, 0], sizes = [1, 1, 128], strides = [1, 1, 1]} : vector<1x8x128xf32> to vector<1x1x128xf32>
    %503 = vector.shape_cast %502 : vector<1x1x128xf32> to vector<1x128xf32>
    %cst_120 = arith.constant dense<0.000000e+00> : vector<1x128xf32>
    %504 = tpu.matmul %498, %275, %cst_120 {dimension_numbers = #tpu.dot_dimension_numbers<[1], [0], [0], [1], [0, 0, 1, 1], [], []>} : vector<1x32xf32>, vector<32x128xf32>, vector<1x128xf32> -> vector<1x128xf32>
    %505 = arith.addf %503, %504 : vector<1x128xf32>
    %506 = vector.extract_strided_slice %505 {offsets = [0, 0], sizes = [1, 32], strides = [1, 1]} : vector<1x128xf32> to vector<1x32xf32>
    %507 = arith.negf %506 : vector<1x32xf32>
    %508 = math.exp %507 : vector<1x32xf32>
    %cst_121 = arith.constant 1.000000e+00 : f32
    %509 = vector.broadcast %cst_121 : f32 to vector<1x32xf32>
    %510 = arith.addf %509, %508 : vector<1x32xf32>
    %511 = arith.divf %509, %510 : vector<1x32xf32>
    %512 = vector.extract_strided_slice %505 {offsets = [0, 32], sizes = [1, 32], strides = [1, 1]} : vector<1x128xf32> to vector<1x32xf32>
    %513 = arith.negf %512 : vector<1x32xf32>
    %514 = math.exp %513 : vector<1x32xf32>
    %cst_122 = arith.constant 1.000000e+00 : f32
    %515 = vector.broadcast %cst_122 : f32 to vector<1x32xf32>
    %516 = arith.addf %515, %514 : vector<1x32xf32>
    %517 = arith.divf %515, %516 : vector<1x32xf32>
    %518 = vector.extract_strided_slice %505 {offsets = [0, 64], sizes = [1, 32], strides = [1, 1]} : vector<1x128xf32> to vector<1x32xf32>
    %519 = math.tanh %518 : vector<1x32xf32>
    %520 = vector.extract_strided_slice %505 {offsets = [0, 96], sizes = [1, 32], strides = [1, 1]} : vector<1x128xf32> to vector<1x32xf32>
    %521 = arith.negf %520 : vector<1x32xf32>
    %522 = math.exp %521 : vector<1x32xf32>
    %cst_123 = arith.constant 1.000000e+00 : f32
    %523 = vector.broadcast %cst_123 : f32 to vector<1x32xf32>
    %524 = arith.addf %523, %522 : vector<1x32xf32>
    %525 = arith.divf %523, %524 : vector<1x32xf32>
    %526 = arith.mulf %517, %496 : vector<1x32xf32>
    %527 = arith.mulf %511, %519 : vector<1x32xf32>
    %528 = arith.addf %526, %527 : vector<1x32xf32>
    %529 = math.tanh %528 : vector<1x32xf32>
    %530 = arith.mulf %525, %529 : vector<1x32xf32>
    %c0_124 = arith.constant 0 : index
    %c7_125 = arith.constant 7 : index
    %c0_126 = arith.constant 0 : index
    %531 = vector.load %arg13[%c0_124, %c7_125, %c0_126] : memref<1x8x32xf32, #tpu.memory_space<vmem>>, vector<1x1x32xf32>
    %532 = vector.shape_cast %531 : vector<1x1x32xf32> to vector<1x32xf32>
    %533 = vector.shape_cast %530 : vector<1x32xf32> to vector<1x1x32xf32>
    tpu.vector_store %arg13[%c0_124, %c7_125, %c0_126], %533 {strides = array<i32>} : memref<1x8x32xf32, #tpu.memory_space<vmem>>, vector<1x1x32xf32>,
    %c0_127 = arith.constant 0 : index
    %c7_128 = arith.constant 7 : index
    %c0_129 = arith.constant 0 : index
    %534 = vector.load %arg13[%c0_127, %c7_128, %c0_129] : memref<1x8x32xf32, #tpu.memory_space<vmem>>, vector<1x1x32xf32>
    %535 = vector.shape_cast %534 : vector<1x1x32xf32> to vector<1x32xf32>
    %c0_130 = arith.constant 0 : index
    %c0_131 = arith.constant 0 : index
    %536 = vector.load %arg8[%c0_130, %c0_131] : memref<32x32xf32, #tpu.memory_space<vmem>>, vector<32x32xf32>
    %cst_132 = arith.constant dense<0.000000e+00> : vector<1x32xf32>
    %537 = tpu.matmul %535, %536, %cst_132 {dimension_numbers = #tpu.dot_dimension_numbers<[1], [0], [0], [1], [0, 0, 1, 1], [], []>} : vector<1x32xf32>, vector<32x32xf32>, vector<1x32xf32> -> vector<1x32xf32>
    %c0_133 = arith.constant 0 : index
    %c0_134 = arith.constant 0 : index
    %538 = vector.load %arg9[%c0_133, %c0_134] : memref<1x32xf32, #tpu.memory_space<vmem>>, vector<1x32xf32>
    %539 = arith.addf %537, %538 : vector<1x32xf32>
    %cst_135 = arith.constant 0.000000e+00 : f32
    %540 = vector.broadcast %cst_135 : f32 to vector<1x32xf32>
    %541 = arith.maximumf %539, %540 : vector<1x32xf32>
    %c0_136 = arith.constant 0 : index
    %c0_137 = arith.constant 0 : index
    %542 = vector.load %arg10[%c0_136, %c0_137] : memref<32x4xf32, #tpu.memory_space<vmem>>, vector<32x4xf32>
    %cst_138 = arith.constant dense<0.000000e+00> : vector<1x4xf32>
    %543 = tpu.matmul %541, %542, %cst_138 {dimension_numbers = #tpu.dot_dimension_numbers<[1], [0], [0], [1], [0, 0, 1, 1], [], []>} : vector<1x32xf32>, vector<32x4xf32>, vector<1x4xf32> -> vector<1x4xf32>
    %c0_139 = arith.constant 0 : index
    %c0_140 = arith.constant 0 : index
    %544 = vector.load %arg11[%c0_139, %c0_140] : memref<1x4xf32, #tpu.memory_space<vmem>>, vector<1x4xf32>
    %545 = arith.addf %543, %544 : vector<1x4xf32>
    %546 = vector.shape_cast %545 : vector<1x4xf32> to vector<1x1x4xf32>
    %c0_141 = arith.constant 0 : index
    %c0_142 = arith.constant 0 : index
    %c0_143 = arith.constant 0 : index
    %547 = vector.load %arg12[%c0_141, %c0_142, %c0_143] : memref<1x1x4xf32, #tpu.memory_space<vmem>>, vector<1x1x4xf32>
    tpu.vector_store %arg12[%c0_141, %c0_142, %c0_143], %546 {strides = array<i32>} : memref<1x1x4xf32, #tpu.memory_space<vmem>>, vector<1x1x4xf32>,
    return
  }
  func.func @transform_0(%arg0: i32) -> (i32, i32, i32) {
    %c0_i32 = arith.constant 0 : i32
    %c0_i32_0 = arith.constant 0 : i32
    %c0_i32_1 = arith.constant 0 : i32
    return %arg0, %c0_i32, %c0_i32_0 : i32, i32, i32
  }
  func.func @transform_1(%arg0: i32) -> (i32, i32) {
    %c0_i32 = arith.constant 0 : i32
    %c0_i32_0 = arith.constant 0 : i32
    %c0_i32_1 = arith.constant 0 : i32
    return %c0_i32, %c0_i32_0 : i32, i32
  }
  func.func @transform_2(%arg0: i32) -> (i32, i32) {
    %c0_i32 = arith.constant 0 : i32
    %c0_i32_0 = arith.constant 0 : i32
    %c0_i32_1 = arith.constant 0 : i32
    return %c0_i32, %c0_i32_0 : i32, i32
  }
  func.func @transform_3(%arg0: i32) -> (i32, i32) {
    %c0_i32 = arith.constant 0 : i32
    %c0_i32_0 = arith.constant 0 : i32
    %c0_i32_1 = arith.constant 0 : i32
    return %c0_i32, %c0_i32_0 : i32, i32
  }
  func.func @transform_4(%arg0: i32) -> (i32, i32) {
    %c0_i32 = arith.constant 0 : i32
    %c0_i32_0 = arith.constant 0 : i32
    %c0_i32_1 = arith.constant 0 : i32
    return %c0_i32, %c0_i32_0 : i32, i32
  }
  func.func @transform_5(%arg0: i32) -> (i32, i32) {
    %c0_i32 = arith.constant 0 : i32
    %c0_i32_0 = arith.constant 0 : i32
    %c0_i32_1 = arith.constant 0 : i32
    return %c0_i32, %c0_i32_0 : i32, i32
  }
  func.func @transform_6(%arg0: i32) -> (i32, i32) {
    %c0_i32 = arith.constant 0 : i32
    %c0_i32_0 = arith.constant 0 : i32
    %c0_i32_1 = arith.constant 0 : i32
    return %c0_i32, %c0_i32_0 : i32, i32
  }
  func.func @transform_7(%arg0: i32) -> (i32, i32) {
    %c0_i32 = arith.constant 0 : i32
    %c0_i32_0 = arith.constant 0 : i32
    %c0_i32_1 = arith.constant 0 : i32
    return %c0_i32, %c0_i32_0 : i32, i32
  }
  func.func @transform_8(%arg0: i32) -> (i32, i32) {
    %c0_i32 = arith.constant 0 : i32
    %c0_i32_0 = arith.constant 0 : i32
    %c0_i32_1 = arith.constant 0 : i32
    return %c0_i32, %c0_i32_0 : i32, i32
  }
  func.func @transform_9(%arg0: i32) -> (i32, i32) {
    %c0_i32 = arith.constant 0 : i32
    %c0_i32_0 = arith.constant 0 : i32
    %c0_i32_1 = arith.constant 0 : i32
    return %c0_i32, %c0_i32_0 : i32, i32
  }
  func.func @transform_10(%arg0: i32) -> (i32, i32) {
    %c0_i32 = arith.constant 0 : i32
    %c0_i32_0 = arith.constant 0 : i32
    %c0_i32_1 = arith.constant 0 : i32
    return %c0_i32, %c0_i32_0 : i32, i32
  }
  func.func @transform_11(%arg0: i32) -> (i32, i32, i32) {
    %c0_i32 = arith.constant 0 : i32
    %c0_i32_0 = arith.constant 0 : i32
    %c0_i32_1 = arith.constant 0 : i32
    return %arg0, %c0_i32, %c0_i32_0 : i32, i32, i32
  }
}

</mosaic_0001>

<llo_original>
// kernel: tpu_custom_call.1
$region0: #{tpu_custom_call.1}
  #allocation0 [shape = 'u32[]', space=smem, size = 0x4, offset = 0x4, fixed_abs, tag = 'smem constant byte address 0x4 - core index']
  #allocation1 [shape = 'u32[144,128]{1,0:T(1,128)}', space=vmem, size = 0x12000, scoped, tag = 'internal scratch']
  #allocation2 [shape = 'f32[1,8,32]{2,1,0:T(8,128)}', space=vmem, size = 0x1000, scoped, tag = 'scratch operand']
  %s0 = inlined_call_operand.hbm [shape: f32[2,8,16], index: 0, kind: input, shape index: {}]
  %s1 = inlined_call_operand.hbm [shape: f32[16,128], index: 1, kind: input, shape index: {}]
  %s2 = inlined_call_operand.vmem [shape: f32[32,128], index: 2, kind: input, shape index: {}]
  %s3 = inlined_call_operand.vmem [shape: f32[1,128], index: 3, kind: input, shape index: {}]
  %s4 = inlined_call_operand.hbm [shape: f32[32,128], index: 4, kind: input, shape index: {}]
  %s5 = inlined_call_operand.hbm [shape: f32[32,128], index: 5, kind: input, shape index: {}]
  %s6 = inlined_call_operand.vmem [shape: f32[1,128], index: 6, kind: input, shape index: {}]
  %s7 = inlined_call_operand.hbm [shape: f32[32,32], index: 7, kind: input, shape index: {}]
  %s8 = inlined_call_operand.vmem [shape: f32[1,32], index: 8, kind: input, shape index: {}]
  %s9 = inlined_call_operand.vmem [shape: f32[32,4], index: 9, kind: input, shape index: {}]
  %s10 = inlined_call_operand.vmem [shape: f32[1,4], index: 10, kind: input, shape index: {}]
  %s11 = inlined_call_operand.hbm [shape: f32[2,1,4], index: 11, kind: output, shape index: {}]
  %s12 = sld [smem:[#allocation0]]
  $region97: #{tpu_custom_call.1} parent=0
    _
  %s14 = ssub.s32 1, %s12
  %s15 = scalar_select 0, %s14, %s12
  $region1: #{tpu_custom_call.1} parent=0
    #allocation3 [shape = 'u8[8192]{0}', space=vmem, size = 0x2000, scoped, tag = 'input window, operand 0']
    #allocation4 [shape = 's32[2]{0}', space=sflag, size = 0x8, scoped, tag = 'scoped memory for tpu_custom_call.1']
    #allocation5 [shape = 's32[2]{0}', space=sflag, size = 0x8, scoped, tag = 'scoped memory for tpu_custom_call.1']
    #allocation6 [shape = 'u8[8192]{0}', space=vmem, size = 0x2000, scoped, tag = 'input window, operand 1, single buffered']
    #allocation7 [shape = 's32[1]{0}', space=sflag, size = 0x4, scoped, tag = 'scoped memory for tpu_custom_call.1']
    #allocation8 [shape = 'u8[16384]{0}', space=vmem, size = 0x4000, scoped, tag = 'input window, operand 4, single buffered']
    #allocation9 [shape = 'u8[16384]{0}', space=vmem, size = 0x4000, scoped, tag = 'input window, operand 5, single buffered']
    #allocation10 [shape = 's32[1]{0}', space=sflag, size = 0x4, scoped, tag = 'scoped memory for tpu_custom_call.1']
    #allocation11 [shape = 'u8[16384]{0}', space=vmem, size = 0x4000, scoped, tag = 'input window, operand 7, single buffered']
    #allocation12 [shape = 'u8[1024]{0}', space=vmem, size = 0x400, scoped, tag = 'output window, operand 0']
    %16 = vsyncpa [#allocation4], 0
    %s17 = scalar_lea.sflag [#allocation4], 1
    %18 = vsyncpa %s17, 0
    %19 = vsyncpa [#allocation7], 0
    %20 = vsyncpa [#allocation10], 0
    %21 = vsyncpa [#allocation5], 0
    %s22 = scalar_lea.sflag [#allocation5], 1
    %23 = vsyncpa %s22, 0
    loop: start=0, step=1, limit=4
    $region2: #{tpu_custom_call.1} parent=1 // loop_pre_header
      _
    $region3: #{tpu_custom_call.1} parent=1 // loop_header
      %s25 = sphi 0, %s29
      %p26 = scmp.ge.s32.totalorder %s25, 4
      %s35 = sphi 0, %s37
      %s38 = sphi 0, %s35
      %s39 = sphi 0, %s38
      %s55 = sphi 0, %s39
      %s59 = sphi 0, %s59
      %s61 = sphi 0, %s59
      %s62 = sphi 0, %s61
      %s76 = sphi 0, %s62
      %s80 = sphi 0, %s80
      %s82 = sphi 0, %s80
      %s83 = sphi 0, %s82
      %s97 = sphi 0, %s83
      %s101 = sphi 0, %s101
      %s103 = sphi 0, %s101
      %s104 = sphi 0, %s103
      %s118 = sphi 0, %s104
      %s122 = sphi 0, %s122
      %s124 = sphi 0, %s122
      %s125 = sphi 0, %s124
      %s139 = sphi 0, %s125
      %s143 = sphi 0, %s143
      %s145 = sphi 0, %s143
      %s146 = sphi 0, %s145
      %s160 = sphi 0, %s146
      %s164 = sphi 0, %s164
      %s166 = sphi 0, %s164
      %s167 = sphi 0, %s166
      %s181 = sphi 0, %s167
      %s185 = sphi 0, %s185
      %s187 = sphi 0, %s185
      %s188 = sphi 0, %s187
      %s202 = sphi 0, %s188
      %s206 = sphi 0, %s206
      %s208 = sphi 0, %s206
      %s209 = sphi 0, %s208
      %s223 = sphi 0, %s209
      %s227 = sphi 0, %s227
      %s229 = sphi 0, %s227
      %s230 = sphi 0, %s229
      %s244 = sphi 0, %s230
      %s248 = sphi 0, %s248
      %s250 = sphi 0, %s248
      %s251 = sphi 0, %s250
      %s265 = sphi 0, %s251
      %s271 = sphi 0, %s273
      %s274 = sphi 0, %s271
      %s275 = sphi 0, %s274
      %s291 = sphi 0, %s275
    $region4: #{tpu_custom_call.1} parent=1 // loop_header_branch
      %28 = sbr.rel (%p26) target = $region8
    $region5: #{tpu_custom_call.1} parent=1 // loop_body
      %s30 = ssub.s32 %s25, 1
      %s31 = ssub.s32 %s25, 2
      %s32 = sadd.s32 %s25, 1
      %s33 = ssub.s32 %s25, %s32
      %p34 = scmp.eq.s32.totalorder %s33, 0
      %s36 = sadd.s32 %s35, 1
      %s37 = scalar_select %p34, %s35, %s36
      %p40 = pneg %p34
      %p41 = scmp.eq.s32.totalorder %s25, 1
      %p42 = por %p40, %p41
      %p43 = scmp.ne.s32.totalorder %s35, %s38
      %p44 = scmp.eq.s32.totalorder %s25, 0
      %p45 = por %p43, %p44
      %p46 = scmp.ne.s32.totalorder %s35, %s38
      %p47 = scmp.eq.s32.totalorder %s30, 1
      %p48 = por %p46, %p47
      %p49 = scmp.ne.s32.totalorder %s38, %s39
      %p50 = scmp.eq.s32.totalorder %s30, 0
      %p51 = por %p49, %p50
      %p52 = scmp.ne.s32.totalorder %s38, %s39
      %p53 = scmp.eq.s32.totalorder %s31, 1
      %p54 = por %p52, %p53
      %p56 = scmp.ne.s32.totalorder %s39, %s55
      %p57 = scmp.eq.s32.totalorder %s31, 0
      %p58 = por %p56, %p57
      %s60 = sadd.s32 %s59, 1
      %p63 = scmp.eq.s32.totalorder %s25, 1
      %p64 = scmp.ne.s32.totalorder %s59, %s61
      %p65 = scmp.eq.s32.totalorder %s25, 0
      %p66 = por %p64, %p65
      %p67 = scmp.ne.s32.totalorder %s59, %s61
      %p68 = scmp.eq.s32.totalorder %s30, 1
      %p69 = por %p67, %p68
      %p70 = scmp.ne.s32.totalorder %s61, %s62
      %p71 = scmp.eq.s32.totalorder %s30, 0
      %p72 = por %p70, %p71
      %p73 = scmp.ne.s32.totalorder %s61, %s62
      %p74 = scmp.eq.s32.totalorder %s31, 1
      %p75 = por %p73, %p74
      %p77 = scmp.ne.s32.totalorder %s62, %s76
      %p78 = scmp.eq.s32.totalorder %s31, 0
      %p79 = por %p77, %p78
      %s81 = sadd.s32 %s80, 1
      %p84 = scmp.eq.s32.totalorder %s25, 1
      %p85 = scmp.ne.s32.totalorder %s80, %s82
      %p86 = scmp.eq.s32.totalorder %s25, 0
      %p87 = por %p85, %p86
      %p88 = scmp.ne.s32.totalorder %s80, %s82
      %p89 = scmp.eq.s32.totalorder %s30, 1
      %p90 = por %p88, %p89
      %p91 = scmp.ne.s32.totalorder %s82, %s83
      %p92 = scmp.eq.s32.totalorder %s30, 0
      %p93 = por %p91, %p92
      %p94 = scmp.ne.s32.totalorder %s82, %s83
      %p95 = scmp.eq.s32.totalorder %s31, 1
      %p96 = por %p94, %p95
      %p98 = scmp.ne.s32.totalorder %s83, %s97
      %p99 = scmp.eq.s32.totalorder %s31, 0
      %p100 = por %p98, %p99
      %s102 = sadd.s32 %s101, 1
      %p105 = scmp.eq.s32.totalorder %s25, 1
      %p106 = scmp.ne.s32.totalorder %s101, %s103
      %p107 = scmp.eq.s32.totalorder %s25, 0
      %p108 = por %p106, %p107
      %p109 = scmp.ne.s32.totalorder %s101, %s103
      %p110 = scmp.eq.s32.totalorder %s30, 1
      %p111 = por %p109, %p110
      %p112 = scmp.ne.s32.totalorder %s103, %s104
      %p113 = scmp.eq.s32.totalorder %s30, 0
      %p114 = por %p112, %p113
      %p115 = scmp.ne.s32.totalorder %s103, %s104
      %p116 = scmp.eq.s32.totalorder %s31, 1
      %p117 = por %p115, %p116
      %p119 = scmp.ne.s32.totalorder %s104, %s118
      %p120 = scmp.eq.s32.totalorder %s31, 0
      %p121 = por %p119, %p120
      %s123 = sadd.s32 %s122, 1
      %p126 = scmp.eq.s32.totalorder %s25, 1
      %p127 = scmp.ne.s32.totalorder %s122, %s124
      %p128 = scmp.eq.s32.totalorder %s25, 0
      %p129 = por %p127, %p128
      %p130 = scmp.ne.s32.totalorder %s122, %s124
      %p131 = scmp.eq.s32.totalorder %s30, 1
      %p132 = por %p130, %p131
      %p133 = scmp.ne.s32.totalorder %s124, %s125
      %p134 = scmp.eq.s32.totalorder %s30, 0
      %p135 = por %p133, %p134
      %p136 = scmp.ne.s32.totalorder %s124, %s125
      %p137 = scmp.eq.s32.totalorder %s31, 1
      %p138 = por %p136, %p137
      %p140 = scmp.ne.s32.totalorder %s125, %s139
      %p141 = scmp.eq.s32.totalorder %s31, 0
      %p142 = por %p140, %p141
      %s144 = sadd.s32 %s143, 1
      %p147 = scmp.eq.s32.totalorder %s25, 1
      %p148 = scmp.ne.s32.totalorder %s143, %s145
      %p149 = scmp.eq.s32.totalorder %s25, 0
      %p150 = por %p148, %p149
      %p151 = scmp.ne.s32.totalorder %s143, %s145
      %p152 = scmp.eq.s32.totalorder %s30, 1
      %p153 = por %p151, %p152
      %p154 = scmp.ne.s32.totalorder %s145, %s146
      %p155 = scmp.eq.s32.totalorder %s30, 0
      %p156 = por %p154, %p155
      %p157 = scmp.ne.s32.totalorder %s145, %s146
      %p158 = scmp.eq.s32.totalorder %s31, 1
      %p159 = por %p157, %p158
      %p161 = scmp.ne.s32.totalorder %s146, %s160
      %p162 = scmp.eq.s32.totalorder %s31, 0
      %p163 = por %p161, %p162
      %s165 = sadd.s32 %s164, 1
      %p168 = scmp.eq.s32.totalorder %s25, 1
      %p169 = scmp.ne.s32.totalorder %s164, %s166
      %p170 = scmp.eq.s32.totalorder %s25, 0
      %p171 = por %p169, %p170
      %p172 = scmp.ne.s32.totalorder %s164, %s166
      %p173 = scmp.eq.s32.totalorder %s30, 1
      %p174 = por %p172, %p173
      %p175 = scmp.ne.s32.totalorder %s166, %s167
      %p176 = scmp.eq.s32.totalorder %s30, 0
      %p177 = por %p175, %p176
      %p178 = scmp.ne.s32.totalorder %s166, %s167
      %p179 = scmp.eq.s32.totalorder %s31, 1
      %p180 = por %p178, %p179
      %p182 = scmp.ne.s32.totalorder %s167, %s181
      %p183 = scmp.eq.s32.totalorder %s31, 0
      %p184 = por %p182, %p183
      %s186 = sadd.s32 %s185, 1
      %p189 = scmp.eq.s32.totalorder %s25, 1
      %p190 = scmp.ne.s32.totalorder %s185, %s187
      %p191 = scmp.eq.s32.totalorder %s25, 0
      %p192 = por %p190, %p191
      %p193 = scmp.ne.s32.totalorder %s185, %s187
      %p194 = scmp.eq.s32.totalorder %s30, 1
      %p195 = por %p193, %p194
      %p196 = scmp.ne.s32.totalorder %s187, %s188
      %p197 = scmp.eq.s32.totalorder %s30, 0
      %p198 = por %p196, %p197
      %p199 = scmp.ne.s32.totalorder %s187, %s188
      %p200 = scmp.eq.s32.totalorder %s31, 1
      %p201 = por %p199, %p200
      %p203 = scmp.ne.s32.totalorder %s188, %s202
      %p204 = scmp.eq.s32.totalorder %s31, 0
      %p205 = por %p203, %p204
      %s207 = sadd.s32 %s206, 1
      %p210 = scmp.eq.s32.totalorder %s25, 1
      %p211 = scmp.ne.s32.totalorder %s206, %s208
      %p212 = scmp.eq.s32.totalorder %s25, 0
      %p213 = por %p211, %p212
      %p214 = scmp.ne.s32.totalorder %s206, %s208
      %p215 = scmp.eq.s32.totalorder %s30, 1
      %p216 = por %p214, %p215
      %p217 = scmp.ne.s32.totalorder %s208, %s209
      %p218 = scmp.eq.s32.totalorder %s30, 0
      %p219 = por %p217, %p218
      %p220 = scmp.ne.s32.totalorder %s208, %s209
      %p221 = scmp.eq.s32.totalorder %s31, 1
      %p222 = por %p220, %p221
      %p224 = scmp.ne.s32.totalorder %s209, %s223
      %p225 = scmp.eq.s32.totalorder %s31, 0
      %p226 = por %p224, %p225
      %s228 = sadd.s32 %s227, 1
      %p231 = scmp.eq.s32.totalorder %s25, 1
      %p232 = scmp.ne.s32.totalorder %s227, %s229
      %p233 = scmp.eq.s32.totalorder %s25, 0
      %p234 = por %p232, %p233
      %p235 = scmp.ne.s32.totalorder %s227, %s229
      %p236 = scmp.eq.s32.totalorder %s30, 1
      %p237 = por %p235, %p236
      %p238 = scmp.ne.s32.totalorder %s229, %s230
      %p239 = scmp.eq.s32.totalorder %s30, 0
      %p240 = por %p238, %p239
      %p241 = scmp.ne.s32.totalorder %s229, %s230
      %p242 = scmp.eq.s32.totalorder %s31, 1
      %p243 = por %p241, %p242
      %p245 = scmp.ne.s32.totalorder %s230, %s244
      %p246 = scmp.eq.s32.totalorder %s31, 0
      %p247 = por %p245, %p246
      %s249 = sadd.s32 %s248, 1
      %p252 = scmp.eq.s32.totalorder %s25, 1
      %p253 = scmp.ne.s32.totalorder %s248, %s250
      %p254 = scmp.eq.s32.totalorder %s25, 0
      %p255 = por %p253, %p254
      %p256 = scmp.ne.s32.totalorder %s248, %s250
      %p257 = scmp.eq.s32.totalorder %s30, 1
      %p258 = por %p256, %p257
      %p259 = scmp.ne.s32.totalorder %s250, %s251
      %p260 = scmp.eq.s32.totalorder %s30, 0
      %p261 = por %p259, %p260
      %p262 = scmp.ne.s32.totalorder %s250, %s251
      %p263 = scmp.eq.s32.totalorder %s31, 1
      %p264 = por %p262, %p263
      %p266 = scmp.ne.s32.totalorder %s251, %s265
      %p267 = scmp.eq.s32.totalorder %s31, 0
      %p268 = por %p266, %p267
      %s269 = ssub.s32 %s25, %s32
      %p270 = scmp.eq.s32.totalorder %s269, 0
      %s272 = sadd.s32 %s271, 1
      %s273 = scalar_select %p270, %s271, %s272
      %p276 = pneg %p270
      %p277 = scmp.eq.s32.totalorder %s25, 1
      %p278 = por %p276, %p277
      %p279 = scmp.ne.s32.totalorder %s271, %s274
      %p280 = scmp.eq.s32.totalorder %s25, 0
      %p281 = por %p279, %p280
      %p282 = scmp.ne.s32.totalorder %s271, %s274
      %p283 = scmp.eq.s32.totalorder %s30, 1
      %p284 = por %p282, %p283
      %p285 = scmp.ne.s32.totalorder %s274, %s275
      %p286 = scmp.eq.s32.totalorder %s30, 0
      %p287 = por %p285, %p286
      %p288 = scmp.ne.s32.totalorder %s274, %s275
      %p289 = scmp.eq.s32.totalorder %s31, 1
      %p290 = por %p288, %p289
      %p292 = scmp.ne.s32.totalorder %s275, %s291
      %p293 = scmp.eq.s32.totalorder %s31, 0
      %p294 = por %p292, %p293
      %p295 = scmp.le.s32.totalorder 1, %s25
      %p296 = scmp.lt.s32.totalorder %s25, 3
      %p297 = pnand %p295, %p296
      %p298 = pneg %p297
      // Predicated region
      $region9: #{tpu_custom_call.1} parent=5 // pred_check
        _
      $region10: #{tpu_custom_call.1} parent=5 // pred_check_branch
        %300 = sbr.rel (%p297) target = $region12
      $region11: #{tpu_custom_call.1} parent=5 // pred_region
        %s301 = ssub.s32 %s25, 1
        // Predicated region
        $region13: #{tpu_custom_call.1} parent=11 // pred_check
          %p302 = pneg %p72
        $region14: #{tpu_custom_call.1} parent=11 // pred_check_branch
          %304 = sbr.rel (%p302) target = $region16
        $region15: #{tpu_custom_call.1} parent=11 // pred_region
          %s306 = ssub.s32 256, 256
          %307 = vsyncadd [#allocation7], %s306
          %s308 = sshll.u32 [#allocation6], 4
          %s309 = int_to_ptr.vmem [resolvable:$true] %s308
          %314 = dma.hbm_to_vmem [thread:$0]  %s1, 256, %s309, [#allocation7], 128, 128, 8
        $region16: #{tpu_custom_call.1} parent=11 // pred_fallthru
          _
        // Predicated region
        $region17: #{tpu_custom_call.1} parent=11 // pred_check
          %p315 = pneg %p93
        $region18: #{tpu_custom_call.1} parent=11 // pred_check_branch
          %317 = sbr.rel (%p315) target = $region20
        $region19: #{tpu_custom_call.1} parent=11 // pred_region
          _
        $region20: #{tpu_custom_call.1} parent=11 // pred_fallthru
          _
        // Predicated region
        $region21: #{tpu_custom_call.1} parent=11 // pred_check
          %p318 = pneg %p114
        $region22: #{tpu_custom_call.1} parent=11 // pred_check_branch
          %320 = sbr.rel (%p318) target = $region24
        $region23: #{tpu_custom_call.1} parent=11 // pred_region
          _
        $region24: #{tpu_custom_call.1} parent=11 // pred_fallthru
          _
        // Predicated region
        $region25: #{tpu_custom_call.1} parent=11 // pred_check
          %p321 = pneg %p135
        $region26: #{tpu_custom_call.1} parent=11 // pred_check_branch
          %323 = sbr.rel (%p321) target = $region28
        $region27: #{tpu_custom_call.1} parent=11 // pred_region
          %s325 = ssub.s32 512, 512
          %326 = vsyncadd [#allocation7], %s325
          %s327 = sshll.u32 [#allocation8], 4
          %s328 = int_to_ptr.vmem [resolvable:$true] %s327
          %333 = dma.hbm_to_vmem [thread:$0]  %s4, 512, %s328, [#allocation7], 128, 128, 8
        $region28: #{tpu_custom_call.1} parent=11 // pred_fallthru
          _
        // Predicated region
        $region29: #{tpu_custom_call.1} parent=11 // pred_check
          %p334 = pneg %p156
        $region30: #{tpu_custom_call.1} parent=11 // pred_check_branch
          %336 = sbr.rel (%p334) target = $region32
        $region31: #{tpu_custom_call.1} parent=11 // pred_region
          %s338 = ssub.s32 512, 512
          %339 = vsyncadd [#allocation10], %s338
          %s340 = sshll.u32 [#allocation9], 4
          %s341 = int_to_ptr.vmem [resolvable:$true] %s340
          %346 = dma.hbm_to_vmem [thread:$0]  %s5, 512, %s341, [#allocation10], 128, 128, 8
        $region32: #{tpu_custom_call.1} parent=11 // pred_fallthru
          _
        // Predicated region
        $region33: #{tpu_custom_call.1} parent=11 // pred_check
          %p347 = pneg %p177
        $region34: #{tpu_custom_call.1} parent=11 // pred_check_branch
          %349 = sbr.rel (%p347) target = $region36
        $region35: #{tpu_custom_call.1} parent=11 // pred_region
          _
        $region36: #{tpu_custom_call.1} parent=11 // pred_fallthru
          _
        // Predicated region
        $region37: #{tpu_custom_call.1} parent=11 // pred_check
          %p350 = pneg %p198
        $region38: #{tpu_custom_call.1} parent=11 // pred_check_branch
          %352 = sbr.rel (%p350) target = $region40
        $region39: #{tpu_custom_call.1} parent=11 // pred_region
          %s354 = ssub.s32 512, 512
          %355 = vsyncadd [#allocation10], %s354
          %s356 = sshll.u32 [#allocation11], 4
          %s357 = int_to_ptr.vmem [resolvable:$true] %s356
          %362 = dma.hbm_to_vmem [thread:$0]  %s7, 512, %s357, [#allocation10], 128, 128, 8
        $region40: #{tpu_custom_call.1} parent=11 // pred_fallthru
          _
        // Predicated region
        $region41: #{tpu_custom_call.1} parent=11 // pred_check
          %p363 = pneg %p219
        $region42: #{tpu_custom_call.1} parent=11 // pred_check_branch
          %365 = sbr.rel (%p363) target = $region44
        $region43: #{tpu_custom_call.1} parent=11 // pred_region
          _
        $region44: #{tpu_custom_call.1} parent=11 // pred_fallthru
          _
        // Predicated region
        $region45: #{tpu_custom_call.1} parent=11 // pred_check
          %p366 = pneg %p240
        $region46: #{tpu_custom_call.1} parent=11 // pred_check_branch
          %368 = sbr.rel (%p366) target = $region48
        $region47: #{tpu_custom_call.1} parent=11 // pred_region
          _
        $region48: #{tpu_custom_call.1} parent=11 // pred_fallthru
          _
        // Predicated region
        $region49: #{tpu_custom_call.1} parent=11 // pred_check
          %p369 = pneg %p261
        $region50: #{tpu_custom_call.1} parent=11 // pred_check_branch
          %371 = sbr.rel (%p369) target = $region52
        $region51: #{tpu_custom_call.1} parent=11 // pred_region
          _
        $region52: #{tpu_custom_call.1} parent=11 // pred_fallthru
          _
      $region12: #{tpu_custom_call.1} parent=5 // pred_fallthru
        _
      %p372 = scmp.lt.s32.totalorder %s25, 2
      // Predicated region
      $region53: #{tpu_custom_call.1} parent=5 // pred_check
        %p373 = pneg %p372
      $region54: #{tpu_custom_call.1} parent=5 // pred_check_branch
        %375 = sbr.rel (%p373) target = $region56
      $region55: #{tpu_custom_call.1} parent=5 // pred_region
        // Predicated region
        $region57: #{tpu_custom_call.1} parent=55 // pred_check
          %p376 = pneg %p45
        $region58: #{tpu_custom_call.1} parent=55 // pred_check_branch
          %378 = sbr.rel (%p376) target = $region60
        $region59: #{tpu_custom_call.1} parent=55 // pred_region
          %s379 = sand.u32 %s35, 1
          %s380 = scalar_lea.sflag [#allocation4], %s379
          %s381 = sand.u32 %s35, 1
          %s382 = smul.addr %s381, 8
          %s383 = scalar_lea.vmem [#allocation3], %s382
          %s385 = ssub.s32 128, 128
          %386 = vsyncadd %s380, %s385
          %s387 = smul.addr %s25, 128
          %s388 = scalar_lea.hbm %s0, %s387
          %s390 = sshll.u32 %s383, 4
          %s391 = int_to_ptr.vmem [resolvable:$true] %s390
          %393 = dma.hbm_to_vmem [thread:$0]  %s388, 128, %s391, %s380
        $region60: #{tpu_custom_call.1} parent=55 // pred_fallthru
          _
      $region56: #{tpu_custom_call.1} parent=5 // pred_fallthru
        _
      %p394 = scmp.le.s32.totalorder 1, %s25
      %p395 = scmp.lt.s32.totalorder %s25, 3
      %p396 = pnand %p394, %p395
      %p397 = pneg %p396
      // Predicated region
      $region61: #{tpu_custom_call.1} parent=5 // pred_check
        _
      $region62: #{tpu_custom_call.1} parent=5 // pred_check_branch
        %399 = sbr.rel (%p396) target = $region64
      $region63: #{tpu_custom_call.1} parent=5 // pred_region
        %s400 = ssub.s32 %s25, 1
        %s401 = sand.u32 %s38, 1
        %s402 = scalar_lea.sflag [#allocation4], %s401
        %s403 = sand.u32 %s38, 1
        %s404 = smul.addr %s403, 8
        %s405 = scalar_lea.vmem [#allocation3], %s404
        // Predicated region
        $region65: #{tpu_custom_call.1} parent=63 // pred_check
          %p406 = pneg %p51
        $region66: #{tpu_custom_call.1} parent=63 // pred_check_branch
          %408 = sbr.rel (%p406) target = $region68
        $region67: #{tpu_custom_call.1} parent=63 // pred_region
          %409 = dma.done %s402, 128
        $region68: #{tpu_custom_call.1} parent=63 // pred_fallthru
          _
        // Predicated region
        $region69: #{tpu_custom_call.1} parent=63 // pred_check
          %p410 = pneg %p72
        $region70: #{tpu_custom_call.1} parent=63 // pred_check_branch
          %412 = sbr.rel (%p410) target = $region72
        $region71: #{tpu_custom_call.1} parent=63 // pred_region
          %413 = dma.done [#allocation7], 256
        $region72: #{tpu_custom_call.1} parent=63 // pred_fallthru
          _
        // Predicated region
        $region73: #{tpu_custom_call.1} parent=63 // pred_check
          %p414 = pneg %p135
        $region74: #{tpu_custom_call.1} parent=63 // pred_check_branch
          %416 = sbr.rel (%p414) target = $region76
        $region75: #{tpu_custom_call.1} parent=63 // pred_region
          %417 = dma.done [#allocation7], 512
        $region76: #{tpu_custom_call.1} parent=63 // pred_fallthru
          _
        // Predicated region
        $region77: #{tpu_custom_call.1} parent=63 // pred_check
          %p418 = pneg %p156
        $region78: #{tpu_custom_call.1} parent=63 // pred_check_branch
          %420 = sbr.rel (%p418) target = $region80
        $region79: #{tpu_custom_call.1} parent=63 // pred_region
          %421 = dma.done [#allocation10], 512
        $region80: #{tpu_custom_call.1} parent=63 // pred_fallthru
          _
        // Predicated region
        $region81: #{tpu_custom_call.1} parent=63 // pred_check
          %p422 = pneg %p198
        $region82: #{tpu_custom_call.1} parent=63 // pred_check_branch
          %424 = sbr.rel (%p422) target = $region84
        $region83: #{tpu_custom_call.1} parent=63 // pred_region
          %425 = dma.done [#allocation10], 512
        $region84: #{tpu_custom_call.1} parent=63 // pred_fallthru
          _
        %s426 = sand.u32 %s38, 1
        %s427 = scalar_lea.sflag [#allocation4], %s426
        %s428 = sand.u32 %s38, 1
        %s429 = smul.addr %s428, 8
        %s430 = scalar_lea.vmem [#allocation3], %s429
        %p431 = pneg %p51
        %p432 = pneg %p48
        %p433 = pneg %p72
        %p434 = pneg %p69
        %p435 = pneg %p93
        %p436 = pneg %p90
        %p437 = pneg %p114
        %p438 = pneg %p111
        %p439 = pneg %p135
        %p440 = pneg %p132
        %p441 = pneg %p156
        %p442 = pneg %p153
        %p443 = pneg %p177
        %p444 = pneg %p174
        %p445 = pneg %p198
        %p446 = pneg %p195
        %p447 = pneg %p219
        %p448 = pneg %p216
        %p449 = pneg %p240
        %p450 = pneg %p237
        %p451 = pneg %p261
        %p452 = pneg %p258
        %p453 = pneg %p287
        %p454 = pneg %p284
        %s455 = sand.u32 %s274, 1
        %s456 = scalar_lea.sflag [#allocation5], %s455
        %s457 = sand.u32 %s274, 1
        %s458 = scalar_lea.vmem [#allocation12], %s457
        %v459 = vld [vmem:[%s405] sm:$0xff]
        %v460 = vld [vmem:[#allocation6] sm:$0xff]
        %v461 = vld [vmem:[#allocation6 + $0x8] sm:$0xff]
        %v462 = vld [vmem:[%s3] sm:$0x1]
        %v464 = vlaneseq
        %v465 = vshrl.u32 %v464, 7
        %v466 = vsub.s32 0, %v465
        %v467 = vrot.slane %v462, %v466
        %vm469 = vcmask 130048
        %v471 = vsel %vm469, %v459, 0
        %473 = vmatprep.subr.mxu0 0.0
        %474 = vmatpush1.msra.mxu0 0.0
        %475 = vmatprep.subr.mxu0 0.0
        %476 = vmatpush1.msra.mxu0 0.0
        %477 = vmatprep.subr.mxu0 0.0
        %478 = vmatpush1.msra.mxu0 0.0
        %479 = vmatprep.subr.mxu0 0.0
        %480 = vmatpush1.msra.mxu0 0.0
        %481 = vmatprep.subr.mxu0 0.0
        %482 = vmatpush1.msra.mxu0 0.0
        %483 = vmatprep.subr.mxu0 0.0
        %484 = vmatpush1.msra.mxu0 0.0
        %485 = vmatprep.subr.mxu0 0.0
        %486 = vmatpush1.msra.mxu0 0.0
        %487 = vmatprep.subr.mxu0 0.0
        %488 = vmatpush1.msra.mxu0 0.0
        %489 = vmatprep.subr.mxu0 0.0
        %490 = vmatpush1.msra.mxu0 0.0
        %491 = vmatprep.subr.mxu0 0.0
        %492 = vmatpush1.msra.mxu0 0.0
        %493 = vmatprep.subr.mxu0 0.0
        %494 = vmatpush1.msra.mxu0 0.0
        %495 = vmatprep.subr.mxu0 0.0
        %496 = vmatpush1.msra.mxu0 0.0
        %497 = vmatprep.subr.mxu0 0.0
        %498 = vmatpush1.msra.mxu0 0.0
        %499 = vmatprep.subr.mxu0 0.0
        %500 = vmatpush1.msra.mxu0 0.0
        %501 = vmatprep.subr.mxu0 0.0
        %502 = vmatpush1.msra.mxu0 %v461
        %503 = vmatprep.subr.mxu0 0.0
        %504 = vmatpush1.msra.mxu0 %v460
        %505 = vmatprep.subr.mxu0 0.0
        %506 = vmatpush2.msra.mxu0 0.0
        %507 = vmatprep.subr.mxu0 0.0
        %508 = vmatpush2.msra.mxu0 0.0
        %509 = vmatprep.subr.mxu0 0.0
        %510 = vmatpush2.msra.mxu0 0.0
        %511 = vmatprep.subr.mxu0 0.0
        %512 = vmatpush2.msra.mxu0 0.0
        %513 = vmatprep.subr.mxu0 0.0
        %514 = vmatpush2.msra.mxu0 0.0
        %515 = vmatprep.subr.mxu0 0.0
        %516 = vmatpush2.msra.mxu0 0.0
        %517 = vmatprep.subr.mxu0 0.0
        %518 = vmatpush2.msra.mxu0 0.0
        %519 = vmatprep.subr.mxu0 0.0
        %520 = vmatpush2.msra.mxu0 0.0
        %521 = vmatprep.subr.mxu0 0.0
        %522 = vmatpush2.msra.mxu0 0.0
        %523 = vmatprep.subr.mxu0 0.0
        %524 = vmatpush2.msra.mxu0 0.0
        %525 = vmatprep.subr.mxu0 0.0
        %526 = vmatpush2.msra.mxu0 0.0
        %527 = vmatprep.subr.mxu0 0.0
        %528 = vmatpush2.msra.mxu0 0.0
        %529 = vmatprep.subr.mxu0 0.0
        %530 = vmatpush2.msra.mxu0 0.0
        %531 = vmatprep.subr.mxu0 0.0
        %532 = vmatpush2.msra.mxu0 0.0
        %533 = vmatprep.subr.mxu0 0.0
        %534 = vmatpush2.msra.mxu0 0.0
        %535 = vmatprep.subr.mxu0 0.0
        %536 = vmatpush2.msra.mxu0 0.0
        %537 = vmatprep.mubr.f32.mxu0 0.0
        %538 = vmatmul.mubr.f32.gmra.mxu0 %v471
        %v539 = vpop.f32.mrf.mxu0
        %v540 = vadd.f32 %v467, %v539
        %v541 = vpop.f32.mrf.mxu0
        %542 = vdwg.mxu0
        %v543 = vld [vmem:[%s2] sm:$0xff]
        %v544 = vld [vmem:[%s2 + $0x8] sm:$0xff]
        %v545 = vld [vmem:[%s2 + $0x10] sm:$0xff]
        %v546 = vld [vmem:[%s2 + $0x18] sm:$0xff]
        %vm547 = vcmask 261120
        %v549 = vsel %vm547, 0.0, 0
        %551 = vmatprep.subr.mxu0 0.0
        %552 = vmatpush1.msra.mxu0 0.0
        %553 = vmatprep.subr.mxu0 0.0
        %554 = vmatpush1.msra.mxu0 0.0
        %555 = vmatprep.subr.mxu0 0.0
        %556 = vmatpush1.msra.mxu0 0.0
        %557 = vmatprep.subr.mxu0 0.0
        %558 = vmatpush1.msra.mxu0 0.0
        %559 = vmatprep.subr.mxu0 0.0
        %560 = vmatpush1.msra.mxu0 0.0
        %561 = vmatprep.subr.mxu0 0.0
        %562 = vmatpush1.msra.mxu0 0.0
        %563 = vmatprep.subr.mxu0 0.0
        %564 = vmatpush1.msra.mxu0 0.0
        %565 = vmatprep.subr.mxu0 0.0
        %566 = vmatpush1.msra.mxu0 0.0
        %567 = vmatprep.subr.mxu0 0.0
        %568 = vmatpush1.msra.mxu0 0.0
        %569 = vmatprep.subr.mxu0 0.0
        %570 = vmatpush1.msra.mxu0 0.0
        %571 = vmatprep.subr.mxu0 0.0
        %572 = vmatpush1.msra.mxu0 0.0
        %573 = vmatprep.subr.mxu0 0.0
        %574 = vmatpush1.msra.mxu0 0.0
        %575 = vmatprep.subr.mxu0 0.0
        %576 = vmatpush1.msra.mxu0 %v546
        %577 = vmatprep.subr.mxu0 0.0
        %578 = vmatpush1.msra.mxu0 %v545
        %579 = vmatprep.subr.mxu0 0.0
        %580 = vmatpush1.msra.mxu0 %v544
        %581 = vmatprep.subr.mxu0 0.0
        %582 = vmatpush1.msra.mxu0 %v543
        %583 = vmatprep.subr.mxu0 0.0
        %584 = vmatpush2.msra.mxu0 0.0
        %585 = vmatprep.subr.mxu0 0.0
        %586 = vmatpush2.msra.mxu0 0.0
        %587 = vmatprep.subr.mxu0 0.0
        %588 = vmatpush2.msra.mxu0 0.0
        %589 = vmatprep.subr.mxu0 0.0
        %590 = vmatpush2.msra.mxu0 0.0
        %591 = vmatprep.subr.mxu0 0.0
        %592 = vmatpush2.msra.mxu0 0.0
        %593 = vmatprep.subr.mxu0 0.0
        %594 = vmatpush2.msra.mxu0 0.0
        %595 = vmatprep.subr.mxu0 0.0
        %596 = vmatpush2.msra.mxu0 0.0
        %597 = vmatprep.subr.mxu0 0.0
        %598 = vmatpush2.msra.mxu0 0.0
        %599 = vmatprep.subr.mxu0 0.0
        %600 = vmatpush2.msra.mxu0 0.0
        %601 = vmatprep.subr.mxu0 0.0
        %602 = vmatpush2.msra.mxu0 0.0
        %603 = vmatprep.subr.mxu0 0.0
        %604 = vmatpush2.msra.mxu0 0.0
        %605 = vmatprep.subr.mxu0 0.0
        %606 = vmatpush2.msra.mxu0 0.0
        %607 = vmatprep.subr.mxu0 0.0
        %608 = vmatpush2.msra.mxu0 0.0
        %609 = vmatprep.subr.mxu0 0.0
        %610 = vmatpush2.msra.mxu0 0.0
        %611 = vmatprep.subr.mxu0 0.0
        %612 = vmatpush2.msra.mxu0 0.0
        %613 = vmatprep.subr.mxu0 0.0
        %614 = vmatpush2.msra.mxu0 0.0
        %615 = vmatprep.mubr.f32.mxu0 0.0
        %616 = vmatmul.mubr.f32.gmra.mxu0 %v549
        %v617 = vpop.f32.mrf.mxu0
        %v618 = vadd.f32 0.0, %v617
        %v619 = vpop.f32.mrf.mxu0
        %620 = vdwg.mxu0
        %v621 = vadd.f32 %v540, %v618
        %v622 = vxor.u32 %v621, 2147483648
        %v623 = vmul.f32 %v622, 1.442695
        %v624 = vpow.pop %v623
        %v625 = vadd.f32 %v624, 1.0
        %v626 = vrcp.pop %v625
        %v627 = vmul.f32 1.0, %v626
        %v628 = vtanh.pop %v621
        %v629 = vmul.f32 %v627, 0.0
        %631 = vrot.lane.b32.xlu0 %v628, 64
        %v632 = vpop.permute.xlu0 %631
        %v634 = vmul.f32 %v627, %v632
        %636 = vrot.lane.b32.xlu0 %v634, 32
        %v637 = vpop.permute.xlu0 %636
        %v639 = vadd.f32 %v629, %v637
        %v640 = vtanh.pop %v639
        %642 = vrot.lane.b32.xlu0 %v640, 64
        %v643 = vpop.permute.xlu0 %642
        %v645 = vmul.f32 %v627, %v643
        %647 = vrot.lane.b32.xlu0 %v645, 32
        %v648 = vpop.permute.xlu0 %647
        %vm650 = vcmask 253952
        %651 = vst.msk [vmem:[#allocation2] sm:$0x1] %vm650, %v648
        %v652 = vsel %vm547, %v648, 0
        %654 = vmatprep.subr.mxu0 0.0
        %655 = vmatpush1.msra.mxu0 0.0
        %656 = vmatprep.subr.mxu0 0.0
        %657 = vmatpush1.msra.mxu0 0.0
        %658 = vmatprep.subr.mxu0 0.0
        %659 = vmatpush1.msra.mxu0 0.0
        %660 = vmatprep.subr.mxu0 0.0
        %661 = vmatpush1.msra.mxu0 0.0
        %662 = vmatprep.subr.mxu0 0.0
        %663 = vmatpush1.msra.mxu0 0.0
        %664 = vmatprep.subr.mxu0 0.0
        %665 = vmatpush1.msra.mxu0 0.0
        %666 = vmatprep.subr.mxu0 0.0
        %667 = vmatpush1.msra.mxu0 0.0
        %668 = vmatprep.subr.mxu0 0.0
        %669 = vmatpush1.msra.mxu0 0.0
        %670 = vmatprep.subr.mxu0 0.0
        %671 = vmatpush1.msra.mxu0 0.0
        %672 = vmatprep.subr.mxu0 0.0
        %673 = vmatpush1.msra.mxu0 0.0
        %674 = vmatprep.subr.mxu0 0.0
        %675 = vmatpush1.msra.mxu0 0.0
        %676 = vmatprep.subr.mxu0 0.0
        %677 = vmatpush1.msra.mxu0 0.0
        %678 = vmatprep.subr.mxu0 0.0
        %679 = vmatpush1.msra.mxu0 %v546
        %680 = vmatprep.subr.mxu0 0.0
        %681 = vmatpush1.msra.mxu0 %v545
        %682 = vmatprep.subr.mxu0 0.0
        %683 = vmatpush1.msra.mxu0 %v544
        %684 = vmatprep.subr.mxu0 0.0
        %685 = vmatpush1.msra.mxu0 %v543
        %686 = vmatprep.subr.mxu0 0.0
        %687 = vmatpush2.msra.mxu0 0.0
        %688 = vmatprep.subr.mxu0 0.0
        %689 = vmatpush2.msra.mxu0 0.0
        %690 = vmatprep.subr.mxu0 0.0
        %691 = vmatpush2.msra.mxu0 0.0
        %692 = vmatprep.subr.mxu0 0.0
        %693 = vmatpush2.msra.mxu0 0.0
        %694 = vmatprep.subr.mxu0 0.0
        %695 = vmatpush2.msra.mxu0 0.0
        %696 = vmatprep.subr.mxu0 0.0
        %697 = vmatpush2.msra.mxu0 0.0
        %698 = vmatprep.subr.mxu0 0.0
        %699 = vmatpush2.msra.mxu0 0.0
        %700 = vmatprep.subr.mxu0 0.0
        %701 = vmatpush2.msra.mxu0 0.0
        %702 = vmatprep.subr.mxu0 0.0
        %703 = vmatpush2.msra.mxu0 0.0
        %704 = vmatprep.subr.mxu0 0.0
        %705 = vmatpush2.msra.mxu0 0.0
        %706 = vmatprep.subr.mxu0 0.0
        %707 = vmatpush2.msra.mxu0 0.0
        %708 = vmatprep.subr.mxu0 0.0
        %709 = vmatpush2.msra.mxu0 0.0
        %710 = vmatprep.subr.mxu0 0.0
        %711 = vmatpush2.msra.mxu0 0.0
        %712 = vmatprep.subr.mxu0 0.0
        %713 = vmatpush2.msra.mxu0 0.0
        %714 = vmatprep.subr.mxu0 0.0
        %715 = vmatpush2.msra.mxu0 0.0
        %716 = vmatprep.subr.mxu0 0.0
        %717 = vmatpush2.msra.mxu0 0.0
        %718 = vmatprep.mubr.f32.mxu0 0.0
        %719 = vmatmul.mubr.f32.gmra.mxu0 %v652
        %v720 = vpop.f32.mrf.mxu0
        %v721 = vadd.f32 0.0, %v720
        %v722 = vpop.f32.mrf.mxu0
        %723 = vdwg.mxu0
        %v725 = vrot.slane %v721, 7
        %v727 = vadd.f32 %v540, %v725
        %v728 = vxor.u32 %v727, 2147483648
        %v729 = vmul.f32 %v728, 1.442695
        %v730 = vpow.pop %v729
        %v731 = vadd.f32 %v730, 1.0
        %v732 = vrcp.pop %v731
        %v733 = vmul.f32 1.0, %v732
        %v734 = vtanh.pop %v727
        %v736 = vrot.slane %v639, 7
        %v738 = vmul.f32 %v733, %v736
        %740 = vrot.lane.b32.xlu0 %v734, 64
        %v741 = vpop.permute.xlu0 %740
        %v743 = vmul.f32 %v733, %v741
        %745 = vrot.lane.b32.xlu0 %v743, 32
        %v746 = vpop.permute.xlu0 %745
        %v748 = vadd.f32 %v738, %v746
        %v749 = vtanh.pop %v748
        %751 = vrot.lane.b32.xlu0 %v749, 64
        %v752 = vpop.permute.xlu0 %751
        %v754 = vmul.f32 %v733, %v752
        %756 = vrot.lane.b32.xlu0 %v754, 32
        %v757 = vpop.permute.xlu0 %756
        %vm759 = vcmask 254977
        %760 = vst.msk [vmem:[#allocation2] sm:$0x2] %vm759, %v757
        %v761 = vrot.slane %v754, 1
        %762 = vrot.lane.b32.xlu0 %v761, 32
        %v763 = vpop.permute.xlu0 %762
        %v764 = vsel %vm547, %v763, 0
        %766 = vmatprep.subr.mxu0 0.0
        %767 = vmatpush1.msra.mxu0 0.0
        %768 = vmatprep.subr.mxu0 0.0
        %769 = vmatpush1.msra.mxu0 0.0
        %770 = vmatprep.subr.mxu0 0.0
        %771 = vmatpush1.msra.mxu0 0.0
        %772 = vmatprep.subr.mxu0 0.0
        %773 = vmatpush1.msra.mxu0 0.0
        %774 = vmatprep.subr.mxu0 0.0
        %775 = vmatpush1.msra.mxu0 0.0
        %776 = vmatprep.subr.mxu0 0.0
        %777 = vmatpush1.msra.mxu0 0.0
        %778 = vmatprep.subr.mxu0 0.0
        %779 = vmatpush1.msra.mxu0 0.0
        %780 = vmatprep.subr.mxu0 0.0
        %781 = vmatpush1.msra.mxu0 0.0
        %782 = vmatprep.subr.mxu0 0.0
        %783 = vmatpush1.msra.mxu0 0.0
        %784 = vmatprep.subr.mxu0 0.0
        %785 = vmatpush1.msra.mxu0 0.0
        %786 = vmatprep.subr.mxu0 0.0
        %787 = vmatpush1.msra.mxu0 0.0
        %788 = vmatprep.subr.mxu0 0.0
        %789 = vmatpush1.msra.mxu0 0.0
        %790 = vmatprep.subr.mxu0 0.0
        %791 = vmatpush1.msra.mxu0 %v546
        %792 = vmatprep.subr.mxu0 0.0
        %793 = vmatpush1.msra.mxu0 %v545
        %794 = vmatprep.subr.mxu0 0.0
        %795 = vmatpush1.msra.mxu0 %v544
        %796 = vmatprep.subr.mxu0 0.0
        %797 = vmatpush1.msra.mxu0 %v543
        %798 = vmatprep.subr.mxu0 0.0
        %799 = vmatpush2.msra.mxu0 0.0
        %800 = vmatprep.subr.mxu0 0.0
        %801 = vmatpush2.msra.mxu0 0.0
        %802 = vmatprep.subr.mxu0 0.0
        %803 = vmatpush2.msra.mxu0 0.0
        %804 = vmatprep.subr.mxu0 0.0
        %805 = vmatpush2.msra.mxu0 0.0
        %806 = vmatprep.subr.mxu0 0.0
        %807 = vmatpush2.msra.mxu0 0.0
        %808 = vmatprep.subr.mxu0 0.0
        %809 = vmatpush2.msra.mxu0 0.0
        %810 = vmatprep.subr.mxu0 0.0
        %811 = vmatpush2.msra.mxu0 0.0
        %812 = vmatprep.subr.mxu0 0.0
        %813 = vmatpush2.msra.mxu0 0.0
        %814 = vmatprep.subr.mxu0 0.0
        %815 = vmatpush2.msra.mxu0 0.0
        %816 = vmatprep.subr.mxu0 0.0
        %817 = vmatpush2.msra.mxu0 0.0
        %818 = vmatprep.subr.mxu0 0.0
        %819 = vmatpush2.msra.mxu0 0.0
        %820 = vmatprep.subr.mxu0 0.0
        %821 = vmatpush2.msra.mxu0 0.0
        %822 = vmatprep.subr.mxu0 0.0
        %823 = vmatpush2.msra.mxu0 0.0
        %824 = vmatprep.subr.mxu0 0.0
        %825 = vmatpush2.msra.mxu0 0.0
        %826 = vmatprep.subr.mxu0 0.0
        %827 = vmatpush2.msra.mxu0 0.0
        %828 = vmatprep.subr.mxu0 0.0
        %829 = vmatpush2.msra.mxu0 0.0
        %830 = vmatprep.mubr.f32.mxu0 0.0
        %831 = vmatmul.mubr.f32.gmra.mxu0 %v764
        %v832 = vpop.f32.mrf.mxu0
        %v833 = vadd.f32 0.0, %v832
        %v834 = vpop.f32.mrf.mxu0
        %835 = vdwg.mxu0
        %v837 = vrot.slane %v833, 6
        %v839 = vadd.f32 %v540, %v837
        %v840 = vxor.u32 %v839, 2147483648
        %v841 = vmul.f32 %v840, 1.442695
        %v842 = vpow.pop %v841
        %v843 = vadd.f32 %v842, 1.0
        %v844 = vrcp.pop %v843
        %v845 = vmul.f32 1.0, %v844
        %v846 = vtanh.pop %v839
        %v848 = vrot.slane %v748, 7
        %v850 = vmul.f32 %v845, %v848
        %852 = vrot.lane.b32.xlu0 %v846, 64
        %v853 = vpop.permute.xlu0 %852
        %v855 = vmul.f32 %v845, %v853
        %857 = vrot.lane.b32.xlu0 %v855, 32
        %v858 = vpop.permute.xlu0 %857
        %v860 = vadd.f32 %v850, %v858
        %v861 = vtanh.pop %v860
        %863 = vrot.lane.b32.xlu0 %v861, 64
        %v864 = vpop.permute.xlu0 %863
        %v866 = vmul.f32 %v845, %v864
        %868 = vrot.lane.b32.xlu0 %v866, 32
        %v869 = vpop.permute.xlu0 %868
        %vm871 = vcmask 256002
        %872 = vst.msk [vmem:[#allocation2] sm:$0x4] %vm871, %v869
        %v873 = vrot.slane %v866, 2
        %874 = vrot.lane.b32.xlu0 %v873, 32
        %v875 = vpop.permute.xlu0 %874
        %v876 = vsel %vm547, %v875, 0
        %878 = vmatprep.subr.mxu0 0.0
        %879 = vmatpush1.msra.mxu0 0.0
        %880 = vmatprep.subr.mxu0 0.0
        %881 = vmatpush1.msra.mxu0 0.0
        %882 = vmatprep.subr.mxu0 0.0
        %883 = vmatpush1.msra.mxu0 0.0
        %884 = vmatprep.subr.mxu0 0.0
        %885 = vmatpush1.msra.mxu0 0.0
        %886 = vmatprep.subr.mxu0 0.0
        %887 = vmatpush1.msra.mxu0 0.0
        %888 = vmatprep.subr.mxu0 0.0
        %889 = vmatpush1.msra.mxu0 0.0
        %890 = vmatprep.subr.mxu0 0.0
        %891 = vmatpush1.msra.mxu0 0.0
        %892 = vmatprep.subr.mxu0 0.0
        %893 = vmatpush1.msra.mxu0 0.0
        %894 = vmatprep.subr.mxu0 0.0
        %895 = vmatpush1.msra.mxu0 0.0
        %896 = vmatprep.subr.mxu0 0.0
        %897 = vmatpush1.msra.mxu0 0.0
        %898 = vmatprep.subr.mxu0 0.0
        %899 = vmatpush1.msra.mxu0 0.0
        %900 = vmatprep.subr.mxu0 0.0
        %901 = vmatpush1.msra.mxu0 0.0
        %902 = vmatprep.subr.mxu0 0.0
        %903 = vmatpush1.msra.mxu0 %v546
        %904 = vmatprep.subr.mxu0 0.0
        %905 = vmatpush1.msra.mxu0 %v545
        %906 = vmatprep.subr.mxu0 0.0
        %907 = vmatpush1.msra.mxu0 %v544
        %908 = vmatprep.subr.mxu0 0.0
        %909 = vmatpush1.msra.mxu0 %v543
        %910 = vmatprep.subr.mxu0 0.0
        %911 = vmatpush2.msra.mxu0 0.0
        %912 = vmatprep.subr.mxu0 0.0
        %913 = vmatpush2.msra.mxu0 0.0
        %914 = vmatprep.subr.mxu0 0.0
        %915 = vmatpush2.msra.mxu0 0.0
        %916 = vmatprep.subr.mxu0 0.0
        %917 = vmatpush2.msra.mxu0 0.0
        %918 = vmatprep.subr.mxu0 0.0
        %919 = vmatpush2.msra.mxu0 0.0
        %920 = vmatprep.subr.mxu0 0.0
        %921 = vmatpush2.msra.mxu0 0.0
        %922 = vmatprep.subr.mxu0 0.0
        %923 = vmatpush2.msra.mxu0 0.0
        %924 = vmatprep.subr.mxu0 0.0
        %925 = vmatpush2.msra.mxu0 0.0
        %926 = vmatprep.subr.mxu0 0.0
        %927 = vmatpush2.msra.mxu0 0.0
        %928 = vmatprep.subr.mxu0 0.0
        %929 = vmatpush2.msra.mxu0 0.0
        %930 = vmatprep.subr.mxu0 0.0
        %931 = vmatpush2.msra.mxu0 0.0
        %932 = vmatprep.subr.mxu0 0.0
        %933 = vmatpush2.msra.mxu0 0.0
        %934 = vmatprep.subr.mxu0 0.0
        %935 = vmatpush2.msra.mxu0 0.0
        %936 = vmatprep.subr.mxu0 0.0
        %937 = vmatpush2.msra.mxu0 0.0
        %938 = vmatprep.subr.mxu0 0.0
        %939 = vmatpush2.msra.mxu0 0.0
        %940 = vmatprep.subr.mxu0 0.0
        %941 = vmatpush2.msra.mxu0 0.0
        %942 = vmatprep.mubr.f32.mxu0 0.0
        %943 = vmatmul.mubr.f32.gmra.mxu0 %v876
        %v944 = vpop.f32.mrf.mxu0
        %v945 = vadd.f32 0.0, %v944
        %v946 = vpop.f32.mrf.mxu0
        %947 = vdwg.mxu0
        %v949 = vrot.slane %v945, 5
        %v951 = vadd.f32 %v540, %v949
        %v952 = vxor.u32 %v951, 2147483648
        %v953 = vmul.f32 %v952, 1.442695
        %v954 = vpow.pop %v953
        %v955 = vadd.f32 %v954, 1.0
        %v956 = vrcp.pop %v955
        %v957 = vmul.f32 1.0, %v956
        %v958 = vtanh.pop %v951
        %v960 = vrot.slane %v860, 7
        %v962 = vmul.f32 %v957, %v960
        %964 = vrot.lane.b32.xlu0 %v958, 64
        %v965 = vpop.permute.xlu0 %964
        %v967 = vmul.f32 %v957, %v965
        %969 = vrot.lane.b32.xlu0 %v967, 32
        %v970 = vpop.permute.xlu0 %969
        %v972 = vadd.f32 %v962, %v970
        %v973 = vtanh.pop %v972
        %975 = vrot.lane.b32.xlu0 %v973, 64
        %v976 = vpop.permute.xlu0 %975
        %v978 = vmul.f32 %v957, %v976
        %980 = vrot.lane.b32.xlu0 %v978, 32
        %v981 = vpop.permute.xlu0 %980
        %vm983 = vcmask 257027
        %984 = vst.msk [vmem:[#allocation2] sm:$0x8] %vm983, %v981
        %v985 = vrot.slane %v978, 3
        %986 = vrot.lane.b32.xlu0 %v985, 32
        %v987 = vpop.permute.xlu0 %986
        %v988 = vsel %vm547, %v987, 0
        %990 = vmatprep.subr.mxu0 0.0
        %991 = vmatpush1.msra.mxu0 0.0
        %992 = vmatprep.subr.mxu0 0.0
        %993 = vmatpush1.msra.mxu0 0.0
        %994 = vmatprep.subr.mxu0 0.0
        %995 = vmatpush1.msra.mxu0 0.0
        %996 = vmatprep.subr.mxu0 0.0
        %997 = vmatpush1.msra.mxu0 0.0
        %998 = vmatprep.subr.mxu0 0.0
        %999 = vmatpush1.msra.mxu0 0.0
        %1000 = vmatprep.subr.mxu0 0.0
        %1001 = vmatpush1.msra.mxu0 0.0
        %1002 = vmatprep.subr.mxu0 0.0
        %1003 = vmatpush1.msra.mxu0 0.0
        %1004 = vmatprep.subr.mxu0 0.0
        %1005 = vmatpush1.msra.mxu0 0.0
        %1006 = vmatprep.subr.mxu0 0.0
        %1007 = vmatpush1.msra.mxu0 0.0
        %1008 = vmatprep.subr.mxu0 0.0
        %1009 = vmatpush1.msra.mxu0 0.0
        %1010 = vmatprep.subr.mxu0 0.0
        %1011 = vmatpush1.msra.mxu0 0.0
        %1012 = vmatprep.subr.mxu0 0.0
        %1013 = vmatpush1.msra.mxu0 0.0
        %1014 = vmatprep.subr.mxu0 0.0
        %1015 = vmatpush1.msra.mxu0 %v546
        %1016 = vmatprep.subr.mxu0 0.0
        %1017 = vmatpush1.msra.mxu0 %v545
        %1018 = vmatprep.subr.mxu0 0.0
        %1019 = vmatpush1.msra.mxu0 %v544
        %1020 = vmatprep.subr.mxu0 0.0
        %1021 = vmatpush1.msra.mxu0 %v543
        %1022 = vmatprep.subr.mxu0 0.0
        %1023 = vmatpush2.msra.mxu0 0.0
        %1024 = vmatprep.subr.mxu0 0.0
        %1025 = vmatpush2.msra.mxu0 0.0
        %1026 = vmatprep.subr.mxu0 0.0
        %1027 = vmatpush2.msra.mxu0 0.0
        %1028 = vmatprep.subr.mxu0 0.0
        %1029 = vmatpush2.msra.mxu0 0.0
        %1030 = vmatprep.subr.mxu0 0.0
        %1031 = vmatpush2.msra.mxu0 0.0
        %1032 = vmatprep.subr.mxu0 0.0
        %1033 = vmatpush2.msra.mxu0 0.0
        %1034 = vmatprep.subr.mxu0 0.0
        %1035 = vmatpush2.msra.mxu0 0.0
        %1036 = vmatprep.subr.mxu0 0.0
        %1037 = vmatpush2.msra.mxu0 0.0
        %1038 = vmatprep.subr.mxu0 0.0
        %1039 = vmatpush2.msra.mxu0 0.0
        %1040 = vmatprep.subr.mxu0 0.0
        %1041 = vmatpush2.msra.mxu0 0.0
        %1042 = vmatprep.subr.mxu0 0.0
        %1043 = vmatpush2.msra.mxu0 0.0
        %1044 = vmatprep.subr.mxu0 0.0
        %1045 = vmatpush2.msra.mxu0 0.0
        %1046 = vmatprep.subr.mxu0 0.0
        %1047 = vmatpush2.msra.mxu0 0.0
        %1048 = vmatprep.subr.mxu0 0.0
        %1049 = vmatpush2.msra.mxu0 0.0
        %1050 = vmatprep.subr.mxu0 0.0
        %1051 = vmatpush2.msra.mxu0 0.0
        %1052 = vmatprep.subr.mxu0 0.0
        %1053 = vmatpush2.msra.mxu0 0.0
        %1054 = vmatprep.mubr.f32.mxu0 0.0
        %1055 = vmatmul.mubr.f32.gmra.mxu0 %v988
        %v1056 = vpop.f32.mrf.mxu0
        %v1057 = vadd.f32 0.0, %v1056
        %v1058 = vpop.f32.mrf.mxu0
        %1059 = vdwg.mxu0
        %v1061 = vrot.slane %v1057, 4
        %v1063 = vadd.f32 %v540, %v1061
        %v1064 = vxor.u32 %v1063, 2147483648
        %v1065 = vmul.f32 %v1064, 1.442695
        %v1066 = vpow.pop %v1065
        %v1067 = vadd.f32 %v1066, 1.0
        %v1068 = vrcp.pop %v1067
        %v1069 = vmul.f32 1.0, %v1068
        %v1070 = vtanh.pop %v1063
        %v1072 = vrot.slane %v972, 7
        %v1074 = vmul.f32 %v1069, %v1072
        %1076 = vrot.lane.b32.xlu0 %v1070, 64
        %v1077 = vpop.permute.xlu0 %1076
        %v1079 = vmul.f32 %v1069, %v1077
        %1081 = vrot.lane.b32.xlu0 %v1079, 32
        %v1082 = vpop.permute.xlu0 %1081
        %v1084 = vadd.f32 %v1074, %v1082
        %v1085 = vtanh.pop %v1084
        %1087 = vrot.lane.b32.xlu0 %v1085, 64
        %v1088 = vpop.permute.xlu0 %1087
        %v1090 = vmul.f32 %v1069, %v1088
        %1092 = vrot.lane.b32.xlu0 %v1090, 32
        %v1093 = vpop.permute.xlu0 %1092
        %vm1095 = vcmask 258052
        %1096 = vst.msk [vmem:[#allocation2] sm:$0x10] %vm1095, %v1093
        %v1097 = vrot.slane %v1090, 4
        %1098 = vrot.lane.b32.xlu0 %v1097, 32
        %v1099 = vpop.permute.xlu0 %1098
        %v1100 = vsel %vm547, %v1099, 0
        %1102 = vmatprep.subr.mxu0 0.0
        %1103 = vmatpush1.msra.mxu0 0.0
        %1104 = vmatprep.subr.mxu0 0.0
        %1105 = vmatpush1.msra.mxu0 0.0
        %1106 = vmatprep.subr.mxu0 0.0
        %1107 = vmatpush1.msra.mxu0 0.0
        %1108 = vmatprep.subr.mxu0 0.0
        %1109 = vmatpush1.msra.mxu0 0.0
        %1110 = vmatprep.subr.mxu0 0.0
        %1111 = vmatpush1.msra.mxu0 0.0
        %1112 = vmatprep.subr.mxu0 0.0
        %1113 = vmatpush1.msra.mxu0 0.0
        %1114 = vmatprep.subr.mxu0 0.0
        %1115 = vmatpush1.msra.mxu0 0.0
        %1116 = vmatprep.subr.mxu0 0.0
        %1117 = vmatpush1.msra.mxu0 0.0
        %1118 = vmatprep.subr.mxu0 0.0
        %1119 = vmatpush1.msra.mxu0 0.0
        %1120 = vmatprep.subr.mxu0 0.0
        %1121 = vmatpush1.msra.mxu0 0.0
        %1122 = vmatprep.subr.mxu0 0.0
        %1123 = vmatpush1.msra.mxu0 0.0
        %1124 = vmatprep.subr.mxu0 0.0
        %1125 = vmatpush1.msra.mxu0 0.0
        %1126 = vmatprep.subr.mxu0 0.0
        %1127 = vmatpush1.msra.mxu0 %v546
        %1128 = vmatprep.subr.mxu0 0.0
        %1129 = vmatpush1.msra.mxu0 %v545
        %1130 = vmatprep.subr.mxu0 0.0
        %1131 = vmatpush1.msra.mxu0 %v544
        %1132 = vmatprep.subr.mxu0 0.0
        %1133 = vmatpush1.msra.mxu0 %v543
        %1134 = vmatprep.subr.mxu0 0.0
        %1135 = vmatpush2.msra.mxu0 0.0
        %1136 = vmatprep.subr.mxu0 0.0
        %1137 = vmatpush2.msra.mxu0 0.0
        %1138 = vmatprep.subr.mxu0 0.0
        %1139 = vmatpush2.msra.mxu0 0.0
        %1140 = vmatprep.subr.mxu0 0.0
        %1141 = vmatpush2.msra.mxu0 0.0
        %1142 = vmatprep.subr.mxu0 0.0
        %1143 = vmatpush2.msra.mxu0 0.0
        %1144 = vmatprep.subr.mxu0 0.0
        %1145 = vmatpush2.msra.mxu0 0.0
        %1146 = vmatprep.subr.mxu0 0.0
        %1147 = vmatpush2.msra.mxu0 0.0
        %1148 = vmatprep.subr.mxu0 0.0
        %1149 = vmatpush2.msra.mxu0 0.0
        %1150 = vmatprep.subr.mxu0 0.0
        %1151 = vmatpush2.msra.mxu0 0.0
        %1152 = vmatprep.subr.mxu0 0.0
        %1153 = vmatpush2.msra.mxu0 0.0
        %1154 = vmatprep.subr.mxu0 0.0
        %1155 = vmatpush2.msra.mxu0 0.0
        %1156 = vmatprep.subr.mxu0 0.0
        %1157 = vmatpush2.msra.mxu0 0.0
        %1158 = vmatprep.subr.mxu0 0.0
        %1159 = vmatpush2.msra.mxu0 0.0
        %1160 = vmatprep.subr.mxu0 0.0
        %1161 = vmatpush2.msra.mxu0 0.0
        %1162 = vmatprep.subr.mxu0 0.0
        %1163 = vmatpush2.msra.mxu0 0.0
        %1164 = vmatprep.subr.mxu0 0.0
        %1165 = vmatpush2.msra.mxu0 0.0
        %1166 = vmatprep.mubr.f32.mxu0 0.0
        %1167 = vmatmul.mubr.f32.gmra.mxu0 %v1100
        %v1168 = vpop.f32.mrf.mxu0
        %v1169 = vadd.f32 0.0, %v1168
        %v1170 = vpop.f32.mrf.mxu0
        %1171 = vdwg.mxu0
        %v1173 = vrot.slane %v1169, 3
        %v1175 = vadd.f32 %v540, %v1173
        %v1176 = vxor.u32 %v1175, 2147483648
        %v1177 = vmul.f32 %v1176, 1.442695
        %v1178 = vpow.pop %v1177
        %v1179 = vadd.f32 %v1178, 1.0
        %v1180 = vrcp.pop %v1179
        %v1181 = vmul.f32 1.0, %v1180
        %v1182 = vtanh.pop %v1175
        %v1184 = vrot.slane %v1084, 7
        %v1186 = vmul.f32 %v1181, %v1184
        %1188 = vrot.lane.b32.xlu0 %v1182, 64
        %v1189 = vpop.permute.xlu0 %1188
        %v1191 = vmul.f32 %v1181, %v1189
        %1193 = vrot.lane.b32.xlu0 %v1191, 32
        %v1194 = vpop.permute.xlu0 %1193
        %v1196 = vadd.f32 %v1186, %v1194
        %v1197 = vtanh.pop %v1196
        %1199 = vrot.lane.b32.xlu0 %v1197, 64
        %v1200 = vpop.permute.xlu0 %1199
        %v1202 = vmul.f32 %v1181, %v1200
        %1204 = vrot.lane.b32.xlu0 %v1202, 32
        %v1205 = vpop.permute.xlu0 %1204
        %vm1207 = vcmask 259077
        %1208 = vst.msk [vmem:[#allocation2] sm:$0x20] %vm1207, %v1205
        %v1209 = vrot.slane %v1202, 5
        %1210 = vrot.lane.b32.xlu0 %v1209, 32
        %v1211 = vpop.permute.xlu0 %1210
        %v1212 = vsel %vm547, %v1211, 0
        %1214 = vmatprep.subr.mxu0 0.0
        %1215 = vmatpush1.msra.mxu0 0.0
        %1216 = vmatprep.subr.mxu0 0.0
        %1217 = vmatpush1.msra.mxu0 0.0
        %1218 = vmatprep.subr.mxu0 0.0
        %1219 = vmatpush1.msra.mxu0 0.0
        %1220 = vmatprep.subr.mxu0 0.0
        %1221 = vmatpush1.msra.mxu0 0.0
        %1222 = vmatprep.subr.mxu0 0.0
        %1223 = vmatpush1.msra.mxu0 0.0
        %1224 = vmatprep.subr.mxu0 0.0
        %1225 = vmatpush1.msra.mxu0 0.0
        %1226 = vmatprep.subr.mxu0 0.0
        %1227 = vmatpush1.msra.mxu0 0.0
        %1228 = vmatprep.subr.mxu0 0.0
        %1229 = vmatpush1.msra.mxu0 0.0
        %1230 = vmatprep.subr.mxu0 0.0
        %1231 = vmatpush1.msra.mxu0 0.0
        %1232 = vmatprep.subr.mxu0 0.0
        %1233 = vmatpush1.msra.mxu0 0.0
        %1234 = vmatprep.subr.mxu0 0.0
        %1235 = vmatpush1.msra.mxu0 0.0
        %1236 = vmatprep.subr.mxu0 0.0
        %1237 = vmatpush1.msra.mxu0 0.0
        %1238 = vmatprep.subr.mxu0 0.0
        %1239 = vmatpush1.msra.mxu0 %v546
        %1240 = vmatprep.subr.mxu0 0.0
        %1241 = vmatpush1.msra.mxu0 %v545
        %1242 = vmatprep.subr.mxu0 0.0
        %1243 = vmatpush1.msra.mxu0 %v544
        %1244 = vmatprep.subr.mxu0 0.0
        %1245 = vmatpush1.msra.mxu0 %v543
        %1246 = vmatprep.subr.mxu0 0.0
        %1247 = vmatpush2.msra.mxu0 0.0
        %1248 = vmatprep.subr.mxu0 0.0
        %1249 = vmatpush2.msra.mxu0 0.0
        %1250 = vmatprep.subr.mxu0 0.0
        %1251 = vmatpush2.msra.mxu0 0.0
        %1252 = vmatprep.subr.mxu0 0.0
        %1253 = vmatpush2.msra.mxu0 0.0
        %1254 = vmatprep.subr.mxu0 0.0
        %1255 = vmatpush2.msra.mxu0 0.0
        %1256 = vmatprep.subr.mxu0 0.0
        %1257 = vmatpush2.msra.mxu0 0.0
        %1258 = vmatprep.subr.mxu0 0.0
        %1259 = vmatpush2.msra.mxu0 0.0
        %1260 = vmatprep.subr.mxu0 0.0
        %1261 = vmatpush2.msra.mxu0 0.0
        %1262 = vmatprep.subr.mxu0 0.0
        %1263 = vmatpush2.msra.mxu0 0.0
        %1264 = vmatprep.subr.mxu0 0.0
        %1265 = vmatpush2.msra.mxu0 0.0
        %1266 = vmatprep.subr.mxu0 0.0
        %1267 = vmatpush2.msra.mxu0 0.0
        %1268 = vmatprep.subr.mxu0 0.0
        %1269 = vmatpush2.msra.mxu0 0.0
        %1270 = vmatprep.subr.mxu0 0.0
        %1271 = vmatpush2.msra.mxu0 0.0
        %1272 = vmatprep.subr.mxu0 0.0
        %1273 = vmatpush2.msra.mxu0 0.0
        %1274 = vmatprep.subr.mxu0 0.0
        %1275 = vmatpush2.msra.mxu0 0.0
        %1276 = vmatprep.subr.mxu0 0.0
        %1277 = vmatpush2.msra.mxu0 0.0
        %1278 = vmatprep.mubr.f32.mxu0 0.0
        %1279 = vmatmul.mubr.f32.gmra.mxu0 %v1212
        %v1280 = vpop.f32.mrf.mxu0
        %v1281 = vadd.f32 0.0, %v1280
        %v1282 = vpop.f32.mrf.mxu0
        %1283 = vdwg.mxu0
        %v1285 = vrot.slane %v1281, 2
        %v1287 = vadd.f32 %v540, %v1285
        %v1288 = vxor.u32 %v1287, 2147483648
        %v1289 = vmul.f32 %v1288, 1.442695
        %v1290 = vpow.pop %v1289
        %v1291 = vadd.f32 %v1290, 1.0
        %v1292 = vrcp.pop %v1291
        %v1293 = vmul.f32 1.0, %v1292
        %v1294 = vtanh.pop %v1287
        %v1296 = vrot.slane %v1196, 7
        %v1298 = vmul.f32 %v1293, %v1296
        %1300 = vrot.lane.b32.xlu0 %v1294, 64
        %v1301 = vpop.permute.xlu0 %1300
        %v1303 = vmul.f32 %v1293, %v1301
        %1305 = vrot.lane.b32.xlu0 %v1303, 32
        %v1306 = vpop.permute.xlu0 %1305
        %v1308 = vadd.f32 %v1298, %v1306
        %v1309 = vtanh.pop %v1308
        %1311 = vrot.lane.b32.xlu0 %v1309, 64
        %v1312 = vpop.permute.xlu0 %1311
        %v1314 = vmul.f32 %v1293, %v1312
        %1316 = vrot.lane.b32.xlu0 %v1314, 32
        %v1317 = vpop.permute.xlu0 %1316
        %vm1319 = vcmask 260102
        %1320 = vst.msk [vmem:[#allocation2] sm:$0x40] %vm1319, %v1317
        %v1321 = vrot.slane %v1314, 6
        %1322 = vrot.lane.b32.xlu0 %v1321, 32
        %v1323 = vpop.permute.xlu0 %1322
        %v1324 = vsel %vm547, %v1323, 0
        %1326 = vmatprep.subr.mxu0 0.0
        %1327 = vmatpush1.msra.mxu0 0.0
        %1328 = vmatprep.subr.mxu0 0.0
        %1329 = vmatpush1.msra.mxu0 0.0
        %1330 = vmatprep.subr.mxu0 0.0
        %1331 = vmatpush1.msra.mxu0 0.0
        %1332 = vmatprep.subr.mxu0 0.0
        %1333 = vmatpush1.msra.mxu0 0.0
        %1334 = vmatprep.subr.mxu0 0.0
        %1335 = vmatpush1.msra.mxu0 0.0
        %1336 = vmatprep.subr.mxu0 0.0
        %1337 = vmatpush1.msra.mxu0 0.0
        %1338 = vmatprep.subr.mxu0 0.0
        %1339 = vmatpush1.msra.mxu0 0.0
        %1340 = vmatprep.subr.mxu0 0.0
        %1341 = vmatpush1.msra.mxu0 0.0
        %1342 = vmatprep.subr.mxu0 0.0
        %1343 = vmatpush1.msra.mxu0 0.0
        %1344 = vmatprep.subr.mxu0 0.0
        %1345 = vmatpush1.msra.mxu0 0.0
        %1346 = vmatprep.subr.mxu0 0.0
        %1347 = vmatpush1.msra.mxu0 0.0
        %1348 = vmatprep.subr.mxu0 0.0
        %1349 = vmatpush1.msra.mxu0 0.0
        %1350 = vmatprep.subr.mxu0 0.0
        %1351 = vmatpush1.msra.mxu0 %v546
        %1352 = vmatprep.subr.mxu0 0.0
        %1353 = vmatpush1.msra.mxu0 %v545
        %1354 = vmatprep.subr.mxu0 0.0
        %1355 = vmatpush1.msra.mxu0 %v544
        %1356 = vmatprep.subr.mxu0 0.0
        %1357 = vmatpush1.msra.mxu0 %v543
        %1358 = vmatprep.subr.mxu0 0.0
        %1359 = vmatpush2.msra.mxu0 0.0
        %1360 = vmatprep.subr.mxu0 0.0
        %1361 = vmatpush2.msra.mxu0 0.0
        %1362 = vmatprep.subr.mxu0 0.0
        %1363 = vmatpush2.msra.mxu0 0.0
        %1364 = vmatprep.subr.mxu0 0.0
        %1365 = vmatpush2.msra.mxu0 0.0
        %1366 = vmatprep.subr.mxu0 0.0
        %1367 = vmatpush2.msra.mxu0 0.0
        %1368 = vmatprep.subr.mxu0 0.0
        %1369 = vmatpush2.msra.mxu0 0.0
        %1370 = vmatprep.subr.mxu0 0.0
        %1371 = vmatpush2.msra.mxu0 0.0
        %1372 = vmatprep.subr.mxu0 0.0
        %1373 = vmatpush2.msra.mxu0 0.0
        %1374 = vmatprep.subr.mxu0 0.0
        %1375 = vmatpush2.msra.mxu0 0.0
        %1376 = vmatprep.subr.mxu0 0.0
        %1377 = vmatpush2.msra.mxu0 0.0
        %1378 = vmatprep.subr.mxu0 0.0
        %1379 = vmatpush2.msra.mxu0 0.0
        %1380 = vmatprep.subr.mxu0 0.0
        %1381 = vmatpush2.msra.mxu0 0.0
        %1382 = vmatprep.subr.mxu0 0.0
        %1383 = vmatpush2.msra.mxu0 0.0
        %1384 = vmatprep.subr.mxu0 0.0
        %1385 = vmatpush2.msra.mxu0 0.0
        %1386 = vmatprep.subr.mxu0 0.0
        %1387 = vmatpush2.msra.mxu0 0.0
        %1388 = vmatprep.subr.mxu0 0.0
        %1389 = vmatpush2.msra.mxu0 0.0
        %1390 = vmatprep.mubr.f32.mxu0 0.0
        %1391 = vmatmul.mubr.f32.gmra.mxu0 %v1324
        %v1392 = vpop.f32.mrf.mxu0
        %v1393 = vadd.f32 0.0, %v1392
        %v1394 = vpop.f32.mrf.mxu0
        %1395 = vdwg.mxu0
        %v1397 = vrot.slane %v1393, 1
        %v1399 = vadd.f32 %v540, %v1397
        %v1400 = vxor.u32 %v1399, 2147483648
        %v1401 = vmul.f32 %v1400, 1.442695
        %v1402 = vpow.pop %v1401
        %v1403 = vadd.f32 %v1402, 1.0
        %v1404 = vrcp.pop %v1403
        %v1405 = vmul.f32 1.0, %v1404
        %v1406 = vtanh.pop %v1399
        %v1408 = vrot.slane %v1308, 7
        %v1410 = vmul.f32 %v1405, %v1408
        %1412 = vrot.lane.b32.xlu0 %v1406, 64
        %v1413 = vpop.permute.xlu0 %1412
        %v1415 = vmul.f32 %v1405, %v1413
        %1417 = vrot.lane.b32.xlu0 %v1415, 32
        %v1418 = vpop.permute.xlu0 %1417
        %v1420 = vadd.f32 %v1410, %v1418
        %v1421 = vtanh.pop %v1420
        %1423 = vrot.lane.b32.xlu0 %v1421, 64
        %v1424 = vpop.permute.xlu0 %1423
        %v1426 = vmul.f32 %v1405, %v1424
        %1428 = vrot.lane.b32.xlu0 %v1426, 32
        %v1429 = vpop.permute.xlu0 %1428
        %vm1431 = vcmask 261127
        %1432 = vst.msk [vmem:[#allocation2] sm:$0x80] %vm1431, %v1429
        %v1433 = vld [vmem:[#allocation2] sm:$0xff]
        %v1434 = vld [vmem:[#allocation8] sm:$0xff]
        %v1435 = vld [vmem:[#allocation8 + $0x8] sm:$0xff]
        %v1436 = vld [vmem:[#allocation8 + $0x10] sm:$0xff]
        %v1437 = vld [vmem:[#allocation8 + $0x18] sm:$0xff]
        %v1438 = vld [vmem:[%s6] sm:$0x1]
        %v1440 = vlaneseq
        %v1441 = vshrl.u32 %v1440, 7
        %v1442 = vsub.s32 0, %v1441
        %v1443 = vrot.slane %v1438, %v1442
        %v1446 = vsel %vm547, %v1433, 0
        %1448 = vmatprep.subr.mxu0 0.0
        %1449 = vmatpush1.msra.mxu0 0.0
        %1450 = vmatprep.subr.mxu0 0.0
        %1451 = vmatpush1.msra.mxu0 0.0
        %1452 = vmatprep.subr.mxu0 0.0
        %1453 = vmatpush1.msra.mxu0 0.0
        %1454 = vmatprep.subr.mxu0 0.0
        %1455 = vmatpush1.msra.mxu0 0.0
        %1456 = vmatprep.subr.mxu0 0.0
        %1457 = vmatpush1.msra.mxu0 0.0
        %1458 = vmatprep.subr.mxu0 0.0
        %1459 = vmatpush1.msra.mxu0 0.0
        %1460 = vmatprep.subr.mxu0 0.0
        %1461 = vmatpush1.msra.mxu0 0.0
        %1462 = vmatprep.subr.mxu0 0.0
        %1463 = vmatpush1.msra.mxu0 0.0
        %1464 = vmatprep.subr.mxu0 0.0
        %1465 = vmatpush1.msra.mxu0 0.0
        %1466 = vmatprep.subr.mxu0 0.0
        %1467 = vmatpush1.msra.mxu0 0.0
        %1468 = vmatprep.subr.mxu0 0.0
        %1469 = vmatpush1.msra.mxu0 0.0
        %1470 = vmatprep.subr.mxu0 0.0
        %1471 = vmatpush1.msra.mxu0 0.0
        %1472 = vmatprep.subr.mxu0 0.0
        %1473 = vmatpush1.msra.mxu0 %v1437
        %1474 = vmatprep.subr.mxu0 0.0
        %1475 = vmatpush1.msra.mxu0 %v1436
        %1476 = vmatprep.subr.mxu0 0.0
        %1477 = vmatpush1.msra.mxu0 %v1435
        %1478 = vmatprep.subr.mxu0 0.0
        %1479 = vmatpush1.msra.mxu0 %v1434
        %1480 = vmatprep.subr.mxu0 0.0
        %1481 = vmatpush2.msra.mxu0 0.0
        %1482 = vmatprep.subr.mxu0 0.0
        %1483 = vmatpush2.msra.mxu0 0.0
        %1484 = vmatprep.subr.mxu0 0.0
        %1485 = vmatpush2.msra.mxu0 0.0
        %1486 = vmatprep.subr.mxu0 0.0
        %1487 = vmatpush2.msra.mxu0 0.0
        %1488 = vmatprep.subr.mxu0 0.0
        %1489 = vmatpush2.msra.mxu0 0.0
        %1490 = vmatprep.subr.mxu0 0.0
        %1491 = vmatpush2.msra.mxu0 0.0
        %1492 = vmatprep.subr.mxu0 0.0
        %1493 = vmatpush2.msra.mxu0 0.0
        %1494 = vmatprep.subr.mxu0 0.0
        %1495 = vmatpush2.msra.mxu0 0.0
        %1496 = vmatprep.subr.mxu0 0.0
        %1497 = vmatpush2.msra.mxu0 0.0
        %1498 = vmatprep.subr.mxu0 0.0
        %1499 = vmatpush2.msra.mxu0 0.0
        %1500 = vmatprep.subr.mxu0 0.0
        %1501 = vmatpush2.msra.mxu0 0.0
        %1502 = vmatprep.subr.mxu0 0.0
        %1503 = vmatpush2.msra.mxu0 0.0
        %1504 = vmatprep.subr.mxu0 0.0
        %1505 = vmatpush2.msra.mxu0 0.0
        %1506 = vmatprep.subr.mxu0 0.0
        %1507 = vmatpush2.msra.mxu0 0.0
        %1508 = vmatprep.subr.mxu0 0.0
        %1509 = vmatpush2.msra.mxu0 0.0
        %1510 = vmatprep.subr.mxu0 0.0
        %1511 = vmatpush2.msra.mxu0 0.0
        %1512 = vmatprep.mubr.f32.mxu0 0.0
        %1513 = vmatmul.mubr.f32.gmra.mxu0 %v1446
        %v1514 = vpop.f32.mrf.mxu0
        %v1515 = vadd.f32 %v1443, %v1514
        %v1516 = vpop.f32.mrf.mxu0
        %1517 = vdwg.mxu0
        %v1518 = vld [vmem:[#allocation9] sm:$0xff]
        %v1519 = vld [vmem:[#allocation9 + $0x8] sm:$0xff]
        %v1520 = vld [vmem:[#allocation9 + $0x10] sm:$0xff]
        %v1521 = vld [vmem:[#allocation9 + $0x18] sm:$0xff]
        %1522 = vmatprep.subr.mxu0 0.0
        %1523 = vmatpush1.msra.mxu0 0.0
        %1524 = vmatprep.subr.mxu0 0.0
        %1525 = vmatpush1.msra.mxu0 0.0
        %1526 = vmatprep.subr.mxu0 0.0
        %1527 = vmatpush1.msra.mxu0 0.0
        %1528 = vmatprep.subr.mxu0 0.0
        %1529 = vmatpush1.msra.mxu0 0.0
        %1530 = vmatprep.subr.mxu0 0.0
        %1531 = vmatpush1.msra.mxu0 0.0
        %1532 = vmatprep.subr.mxu0 0.0
        %1533 = vmatpush1.msra.mxu0 0.0
        %1534 = vmatprep.subr.mxu0 0.0
        %1535 = vmatpush1.msra.mxu0 0.0
        %1536 = vmatprep.subr.mxu0 0.0
        %1537 = vmatpush1.msra.mxu0 0.0
        %1538 = vmatprep.subr.mxu0 0.0
        %1539 = vmatpush1.msra.mxu0 0.0
        %1540 = vmatprep.subr.mxu0 0.0
        %1541 = vmatpush1.msra.mxu0 0.0
        %1542 = vmatprep.subr.mxu0 0.0
        %1543 = vmatpush1.msra.mxu0 0.0
        %1544 = vmatprep.subr.mxu0 0.0
        %1545 = vmatpush1.msra.mxu0 0.0
        %1546 = vmatprep.subr.mxu0 0.0
        %1547 = vmatpush1.msra.mxu0 %v1521
        %1548 = vmatprep.subr.mxu0 0.0
        %1549 = vmatpush1.msra.mxu0 %v1520
        %1550 = vmatprep.subr.mxu0 0.0
        %1551 = vmatpush1.msra.mxu0 %v1519
        %1552 = vmatprep.subr.mxu0 0.0
        %1553 = vmatpush1.msra.mxu0 %v1518
        %1554 = vmatprep.subr.mxu0 0.0
        %1555 = vmatpush2.msra.mxu0 0.0
        %1556 = vmatprep.subr.mxu0 0.0
        %1557 = vmatpush2.msra.mxu0 0.0
        %1558 = vmatprep.subr.mxu0 0.0
        %1559 = vmatpush2.msra.mxu0 0.0
        %1560 = vmatprep.subr.mxu0 0.0
        %1561 = vmatpush2.msra.mxu0 0.0
        %1562 = vmatprep.subr.mxu0 0.0
        %1563 = vmatpush2.msra.mxu0 0.0
        %1564 = vmatprep.subr.mxu0 0.0
        %1565 = vmatpush2.msra.mxu0 0.0
        %1566 = vmatprep.subr.mxu0 0.0
        %1567 = vmatpush2.msra.mxu0 0.0
        %1568 = vmatprep.subr.mxu0 0.0
        %1569 = vmatpush2.msra.mxu0 0.0
        %1570 = vmatprep.subr.mxu0 0.0
        %1571 = vmatpush2.msra.mxu0 0.0
        %1572 = vmatprep.subr.mxu0 0.0
        %1573 = vmatpush2.msra.mxu0 0.0
        %1574 = vmatprep.subr.mxu0 0.0
        %1575 = vmatpush2.msra.mxu0 0.0
        %1576 = vmatprep.subr.mxu0 0.0
        %1577 = vmatpush2.msra.mxu0 0.0
        %1578 = vmatprep.subr.mxu0 0.0
        %1579 = vmatpush2.msra.mxu0 0.0
        %1580 = vmatprep.subr.mxu0 0.0
        %1581 = vmatpush2.msra.mxu0 0.0
        %1582 = vmatprep.subr.mxu0 0.0
        %1583 = vmatpush2.msra.mxu0 0.0
        %1584 = vmatprep.subr.mxu0 0.0
        %1585 = vmatpush2.msra.mxu0 0.0
        %1586 = vmatprep.mubr.f32.mxu0 0.0
        %1587 = vmatmul.mubr.f32.gmra.mxu0 %v549
        %v1588 = vpop.f32.mrf.mxu0
        %v1589 = vadd.f32 0.0, %v1588
        %v1590 = vpop.f32.mrf.mxu0
        %1591 = vdwg.mxu0
        %v1592 = vadd.f32 %v1515, %v1589
        %v1593 = vxor.u32 %v1592, 2147483648
        %v1594 = vmul.f32 %v1593, 1.442695
        %v1595 = vpow.pop %v1594
        %v1596 = vadd.f32 %v1595, 1.0
        %v1597 = vrcp.pop %v1596
        %v1598 = vmul.f32 1.0, %v1597
        %v1599 = vtanh.pop %v1592
        %v1600 = vmul.f32 %v1598, 0.0
        %1602 = vrot.lane.b32.xlu0 %v1599, 64
        %v1603 = vpop.permute.xlu0 %1602
        %v1605 = vmul.f32 %v1598, %v1603
        %1607 = vrot.lane.b32.xlu0 %v1605, 32
        %v1608 = vpop.permute.xlu0 %1607
        %v1610 = vadd.f32 %v1600, %v1608
        %v1611 = vtanh.pop %v1610
        %1613 = vrot.lane.b32.xlu0 %v1611, 64
        %v1614 = vpop.permute.xlu0 %1613
        %v1616 = vmul.f32 %v1598, %v1614
        %1618 = vrot.lane.b32.xlu0 %v1616, 32
        %v1619 = vpop.permute.xlu0 %1618
        %1621 = vst.msk [vmem:[#allocation2] sm:$0x1] %vm650, %v1619
        %v1622 = vsel %vm547, %v1619, 0
        %1624 = vmatprep.subr.mxu0 0.0
        %1625 = vmatpush1.msra.mxu0 0.0
        %1626 = vmatprep.subr.mxu0 0.0
        %1627 = vmatpush1.msra.mxu0 0.0
        %1628 = vmatprep.subr.mxu0 0.0
        %1629 = vmatpush1.msra.mxu0 0.0
        %1630 = vmatprep.subr.mxu0 0.0
        %1631 = vmatpush1.msra.mxu0 0.0
        %1632 = vmatprep.subr.mxu0 0.0
        %1633 = vmatpush1.msra.mxu0 0.0
        %1634 = vmatprep.subr.mxu0 0.0
        %1635 = vmatpush1.msra.mxu0 0.0
        %1636 = vmatprep.subr.mxu0 0.0
        %1637 = vmatpush1.msra.mxu0 0.0
        %1638 = vmatprep.subr.mxu0 0.0
        %1639 = vmatpush1.msra.mxu0 0.0
        %1640 = vmatprep.subr.mxu0 0.0
        %1641 = vmatpush1.msra.mxu0 0.0
        %1642 = vmatprep.subr.mxu0 0.0
        %1643 = vmatpush1.msra.mxu0 0.0
        %1644 = vmatprep.subr.mxu0 0.0
        %1645 = vmatpush1.msra.mxu0 0.0
        %1646 = vmatprep.subr.mxu0 0.0
        %1647 = vmatpush1.msra.mxu0 0.0
        %1648 = vmatprep.subr.mxu0 0.0
        %1649 = vmatpush1.msra.mxu0 %v1521
        %1650 = vmatprep.subr.mxu0 0.0
        %1651 = vmatpush1.msra.mxu0 %v1520
        %1652 = vmatprep.subr.mxu0 0.0
        %1653 = vmatpush1.msra.mxu0 %v1519
        %1654 = vmatprep.subr.mxu0 0.0
        %1655 = vmatpush1.msra.mxu0 %v1518
        %1656 = vmatprep.subr.mxu0 0.0
        %1657 = vmatpush2.msra.mxu0 0.0
        %1658 = vmatprep.subr.mxu0 0.0
        %1659 = vmatpush2.msra.mxu0 0.0
        %1660 = vmatprep.subr.mxu0 0.0
        %1661 = vmatpush2.msra.mxu0 0.0
        %1662 = vmatprep.subr.mxu0 0.0
        %1663 = vmatpush2.msra.mxu0 0.0
        %1664 = vmatprep.subr.mxu0 0.0
        %1665 = vmatpush2.msra.mxu0 0.0
        %1666 = vmatprep.subr.mxu0 0.0
        %1667 = vmatpush2.msra.mxu0 0.0
        %1668 = vmatprep.subr.mxu0 0.0
        %1669 = vmatpush2.msra.mxu0 0.0
        %1670 = vmatprep.subr.mxu0 0.0
        %1671 = vmatpush2.msra.mxu0 0.0
        %1672 = vmatprep.subr.mxu0 0.0
        %1673 = vmatpush2.msra.mxu0 0.0
        %1674 = vmatprep.subr.mxu0 0.0
        %1675 = vmatpush2.msra.mxu0 0.0
        %1676 = vmatprep.subr.mxu0 0.0
        %1677 = vmatpush2.msra.mxu0 0.0
        %1678 = vmatprep.subr.mxu0 0.0
        %1679 = vmatpush2.msra.mxu0 0.0
        %1680 = vmatprep.subr.mxu0 0.0
        %1681 = vmatpush2.msra.mxu0 0.0
        %1682 = vmatprep.subr.mxu0 0.0
        %1683 = vmatpush2.msra.mxu0 0.0
        %1684 = vmatprep.subr.mxu0 0.0
        %1685 = vmatpush2.msra.mxu0 0.0
        %1686 = vmatprep.subr.mxu0 0.0
        %1687 = vmatpush2.msra.mxu0 0.0
        %1688 = vmatprep.mubr.f32.mxu0 0.0
        %1689 = vmatmul.mubr.f32.gmra.mxu0 %v1622
        %v1690 = vpop.f32.mrf.mxu0
        %v1691 = vadd.f32 0.0, %v1690
        %v1692 = vpop.f32.mrf.mxu0
        %1693 = vdwg.mxu0
        %v1695 = vrot.slane %v1691, 7
        %v1697 = vadd.f32 %v1515, %v1695
        %v1698 = vxor.u32 %v1697, 2147483648
        %v1699 = vmul.f32 %v1698, 1.442695
        %v1700 = vpow.pop %v1699
        %v1701 = vadd.f32 %v1700, 1.0
        %v1702 = vrcp.pop %v1701
        %v1703 = vmul.f32 1.0, %v1702
        %v1704 = vtanh.pop %v1697
        %v1706 = vrot.slane %v1610, 7
        %v1708 = vmul.f32 %v1703, %v1706
        %1710 = vrot.lane.b32.xlu0 %v1704, 64
        %v1711 = vpop.permute.xlu0 %1710
        %v1713 = vmul.f32 %v1703, %v1711
        %1715 = vrot.lane.b32.xlu0 %v1713, 32
        %v1716 = vpop.permute.xlu0 %1715
        %v1718 = vadd.f32 %v1708, %v1716
        %v1719 = vtanh.pop %v1718
        %1721 = vrot.lane.b32.xlu0 %v1719, 64
        %v1722 = vpop.permute.xlu0 %1721
        %v1724 = vmul.f32 %v1703, %v1722
        %1726 = vrot.lane.b32.xlu0 %v1724, 32
        %v1727 = vpop.permute.xlu0 %1726
        %1729 = vst.msk [vmem:[#allocation2] sm:$0x2] %vm759, %v1727
        %v1730 = vrot.slane %v1724, 1
        %1731 = vrot.lane.b32.xlu0 %v1730, 32
        %v1732 = vpop.permute.xlu0 %1731
        %v1733 = vsel %vm547, %v1732, 0
        %1735 = vmatprep.subr.mxu0 0.0
        %1736 = vmatpush1.msra.mxu0 0.0
        %1737 = vmatprep.subr.mxu0 0.0
        %1738 = vmatpush1.msra.mxu0 0.0
        %1739 = vmatprep.subr.mxu0 0.0
        %1740 = vmatpush1.msra.mxu0 0.0
        %1741 = vmatprep.subr.mxu0 0.0
        %1742 = vmatpush1.msra.mxu0 0.0
        %1743 = vmatprep.subr.mxu0 0.0
        %1744 = vmatpush1.msra.mxu0 0.0
        %1745 = vmatprep.subr.mxu0 0.0
        %1746 = vmatpush1.msra.mxu0 0.0
        %1747 = vmatprep.subr.mxu0 0.0
        %1748 = vmatpush1.msra.mxu0 0.0
        %1749 = vmatprep.subr.mxu0 0.0
        %1750 = vmatpush1.msra.mxu0 0.0
        %1751 = vmatprep.subr.mxu0 0.0
        %1752 = vmatpush1.msra.mxu0 0.0
        %1753 = vmatprep.subr.mxu0 0.0
        %1754 = vmatpush1.msra.mxu0 0.0
        %1755 = vmatprep.subr.mxu0 0.0
        %1756 = vmatpush1.msra.mxu0 0.0
        %1757 = vmatprep.subr.mxu0 0.0
        %1758 = vmatpush1.msra.mxu0 0.0
        %1759 = vmatprep.subr.mxu0 0.0
        %1760 = vmatpush1.msra.mxu0 %v1521
        %1761 = vmatprep.subr.mxu0 0.0
        %1762 = vmatpush1.msra.mxu0 %v1520
        %1763 = vmatprep.subr.mxu0 0.0
        %1764 = vmatpush1.msra.mxu0 %v1519
        %1765 = vmatprep.subr.mxu0 0.0
        %1766 = vmatpush1.msra.mxu0 %v1518
        %1767 = vmatprep.subr.mxu0 0.0
        %1768 = vmatpush2.msra.mxu0 0.0
        %1769 = vmatprep.subr.mxu0 0.0
        %1770 = vmatpush2.msra.mxu0 0.0
        %1771 = vmatprep.subr.mxu0 0.0
        %1772 = vmatpush2.msra.mxu0 0.0
        %1773 = vmatprep.subr.mxu0 0.0
        %1774 = vmatpush2.msra.mxu0 0.0
        %1775 = vmatprep.subr.mxu0 0.0
        %1776 = vmatpush2.msra.mxu0 0.0
        %1777 = vmatprep.subr.mxu0 0.0
        %1778 = vmatpush2.msra.mxu0 0.0
        %1779 = vmatprep.subr.mxu0 0.0
        %1780 = vmatpush2.msra.mxu0 0.0
        %1781 = vmatprep.subr.mxu0 0.0
        %1782 = vmatpush2.msra.mxu0 0.0
        %1783 = vmatprep.subr.mxu0 0.0
        %1784 = vmatpush2.msra.mxu0 0.0
        %1785 = vmatprep.subr.mxu0 0.0
        %1786 = vmatpush2.msra.mxu0 0.0
        %1787 = vmatprep.subr.mxu0 0.0
        %1788 = vmatpush2.msra.mxu0 0.0
        %1789 = vmatprep.subr.mxu0 0.0
        %1790 = vmatpush2.msra.mxu0 0.0
        %1791 = vmatprep.subr.mxu0 0.0
        %1792 = vmatpush2.msra.mxu0 0.0
        %1793 = vmatprep.subr.mxu0 0.0
        %1794 = vmatpush2.msra.mxu0 0.0
        %1795 = vmatprep.subr.mxu0 0.0
        %1796 = vmatpush2.msra.mxu0 0.0
        %1797 = vmatprep.subr.mxu0 0.0
        %1798 = vmatpush2.msra.mxu0 0.0
        %1799 = vmatprep.mubr.f32.mxu0 0.0
        %1800 = vmatmul.mubr.f32.gmra.mxu0 %v1733
        %v1801 = vpop.f32.mrf.mxu0
        %v1802 = vadd.f32 0.0, %v1801
        %v1803 = vpop.f32.mrf.mxu0
        %1804 = vdwg.mxu0
        %v1806 = vrot.slane %v1802, 6
        %v1808 = vadd.f32 %v1515, %v1806
        %v1809 = vxor.u32 %v1808, 2147483648
        %v1810 = vmul.f32 %v1809, 1.442695
        %v1811 = vpow.pop %v1810
        %v1812 = vadd.f32 %v1811, 1.0
        %v1813 = vrcp.pop %v1812
        %v1814 = vmul.f32 1.0, %v1813
        %v1815 = vtanh.pop %v1808
        %v1817 = vrot.slane %v1718, 7
        %v1819 = vmul.f32 %v1814, %v1817
        %1821 = vrot.lane.b32.xlu0 %v1815, 64
        %v1822 = vpop.permute.xlu0 %1821
        %v1824 = vmul.f32 %v1814, %v1822
        %1826 = vrot.lane.b32.xlu0 %v1824, 32
        %v1827 = vpop.permute.xlu0 %1826
        %v1829 = vadd.f32 %v1819, %v1827
        %v1830 = vtanh.pop %v1829
        %1832 = vrot.lane.b32.xlu0 %v1830, 64
        %v1833 = vpop.permute.xlu0 %1832
        %v1835 = vmul.f32 %v1814, %v1833
        %1837 = vrot.lane.b32.xlu0 %v1835, 32
        %v1838 = vpop.permute.xlu0 %1837
        %1840 = vst.msk [vmem:[#allocation2] sm:$0x4] %vm871, %v1838
        %v1841 = vrot.slane %v1835, 2
        %1842 = vrot.lane.b32.xlu0 %v1841, 32
        %v1843 = vpop.permute.xlu0 %1842
        %v1844 = vsel %vm547, %v1843, 0
        %1846 = vmatprep.subr.mxu0 0.0
        %1847 = vmatpush1.msra.mxu0 0.0
        %1848 = vmatprep.subr.mxu0 0.0
        %1849 = vmatpush1.msra.mxu0 0.0
        %1850 = vmatprep.subr.mxu0 0.0
        %1851 = vmatpush1.msra.mxu0 0.0
        %1852 = vmatprep.subr.mxu0 0.0
        %1853 = vmatpush1.msra.mxu0 0.0
        %1854 = vmatprep.subr.mxu0 0.0
        %1855 = vmatpush1.msra.mxu0 0.0
        %1856 = vmatprep.subr.mxu0 0.0
        %1857 = vmatpush1.msra.mxu0 0.0
        %1858 = vmatprep.subr.mxu0 0.0
        %1859 = vmatpush1.msra.mxu0 0.0
        %1860 = vmatprep.subr.mxu0 0.0
        %1861 = vmatpush1.msra.mxu0 0.0
        %1862 = vmatprep.subr.mxu0 0.0
        %1863 = vmatpush1.msra.mxu0 0.0
        %1864 = vmatprep.subr.mxu0 0.0
        %1865 = vmatpush1.msra.mxu0 0.0
        %1866 = vmatprep.subr.mxu0 0.0
        %1867 = vmatpush1.msra.mxu0 0.0
        %1868 = vmatprep.subr.mxu0 0.0
        %1869 = vmatpush1.msra.mxu0 0.0
        %1870 = vmatprep.subr.mxu0 0.0
        %1871 = vmatpush1.msra.mxu0 %v1521
        %1872 = vmatprep.subr.mxu0 0.0
        %1873 = vmatpush1.msra.mxu0 %v1520
        %1874 = vmatprep.subr.mxu0 0.0
        %1875 = vmatpush1.msra.mxu0 %v1519
        %1876 = vmatprep.subr.mxu0 0.0
        %1877 = vmatpush1.msra.mxu0 %v1518
        %1878 = vmatprep.subr.mxu0 0.0
        %1879 = vmatpush2.msra.mxu0 0.0
        %1880 = vmatprep.subr.mxu0 0.0
        %1881 = vmatpush2.msra.mxu0 0.0
        %1882 = vmatprep.subr.mxu0 0.0
        %1883 = vmatpush2.msra.mxu0 0.0
        %1884 = vmatprep.subr.mxu0 0.0
        %1885 = vmatpush2.msra.mxu0 0.0
        %1886 = vmatprep.subr.mxu0 0.0
        %1887 = vmatpush2.msra.mxu0 0.0
        %1888 = vmatprep.subr.mxu0 0.0
        %1889 = vmatpush2.msra.mxu0 0.0
        %1890 = vmatprep.subr.mxu0 0.0
        %1891 = vmatpush2.msra.mxu0 0.0
        %1892 = vmatprep.subr.mxu0 0.0
        %1893 = vmatpush2.msra.mxu0 0.0
        %1894 = vmatprep.subr.mxu0 0.0
        %1895 = vmatpush2.msra.mxu0 0.0
        %1896 = vmatprep.subr.mxu0 0.0
        %1897 = vmatpush2.msra.mxu0 0.0
        %1898 = vmatprep.subr.mxu0 0.0
        %1899 = vmatpush2.msra.mxu0 0.0
        %1900 = vmatprep.subr.mxu0 0.0
        %1901 = vmatpush2.msra.mxu0 0.0
        %1902 = vmatprep.subr.mxu0 0.0
        %1903 = vmatpush2.msra.mxu0 0.0
        %1904 = vmatprep.subr.mxu0 0.0
        %1905 = vmatpush2.msra.mxu0 0.0
        %1906 = vmatprep.subr.mxu0 0.0
        %1907 = vmatpush2.msra.mxu0 0.0
        %1908 = vmatprep.subr.mxu0 0.0
        %1909 = vmatpush2.msra.mxu0 0.0
        %1910 = vmatprep.mubr.f32.mxu0 0.0
        %1911 = vmatmul.mubr.f32.gmra.mxu0 %v1844
        %v1912 = vpop.f32.mrf.mxu0
        %v1913 = vadd.f32 0.0, %v1912
        %v1914 = vpop.f32.mrf.mxu0
        %1915 = vdwg.mxu0
        %v1917 = vrot.slane %v1913, 5
        %v1919 = vadd.f32 %v1515, %v1917
        %v1920 = vxor.u32 %v1919, 2147483648
        %v1921 = vmul.f32 %v1920, 1.442695
        %v1922 = vpow.pop %v1921
        %v1923 = vadd.f32 %v1922, 1.0
        %v1924 = vrcp.pop %v1923
        %v1925 = vmul.f32 1.0, %v1924
        %v1926 = vtanh.pop %v1919
        %v1928 = vrot.slane %v1829, 7
        %v1930 = vmul.f32 %v1925, %v1928
        %1932 = vrot.lane.b32.xlu0 %v1926, 64
        %v1933 = vpop.permute.xlu0 %1932
        %v1935 = vmul.f32 %v1925, %v1933
        %1937 = vrot.lane.b32.xlu0 %v1935, 32
        %v1938 = vpop.permute.xlu0 %1937
        %v1940 = vadd.f32 %v1930, %v1938
        %v1941 = vtanh.pop %v1940
        %1943 = vrot.lane.b32.xlu0 %v1941, 64
        %v1944 = vpop.permute.xlu0 %1943
        %v1946 = vmul.f32 %v1925, %v1944
        %1948 = vrot.lane.b32.xlu0 %v1946, 32
        %v1949 = vpop.permute.xlu0 %1948
        %1951 = vst.msk [vmem:[#allocation2] sm:$0x8] %vm983, %v1949
        %v1952 = vrot.slane %v1946, 3
        %1953 = vrot.lane.b32.xlu0 %v1952, 32
        %v1954 = vpop.permute.xlu0 %1953
        %v1955 = vsel %vm547, %v1954, 0
        %1957 = vmatprep.subr.mxu0 0.0
        %1958 = vmatpush1.msra.mxu0 0.0
        %1959 = vmatprep.subr.mxu0 0.0
        %1960 = vmatpush1.msra.mxu0 0.0
        %1961 = vmatprep.subr.mxu0 0.0
        %1962 = vmatpush1.msra.mxu0 0.0
        %1963 = vmatprep.subr.mxu0 0.0
        %1964 = vmatpush1.msra.mxu0 0.0
        %1965 = vmatprep.subr.mxu0 0.0
        %1966 = vmatpush1.msra.mxu0 0.0
        %1967 = vmatprep.subr.mxu0 0.0
        %1968 = vmatpush1.msra.mxu0 0.0
        %1969 = vmatprep.subr.mxu0 0.0
        %1970 = vmatpush1.msra.mxu0 0.0
        %1971 = vmatprep.subr.mxu0 0.0
        %1972 = vmatpush1.msra.mxu0 0.0
        %1973 = vmatprep.subr.mxu0 0.0
        %1974 = vmatpush1.msra.mxu0 0.0
        %1975 = vmatprep.subr.mxu0 0.0
        %1976 = vmatpush1.msra.mxu0 0.0
        %1977 = vmatprep.subr.mxu0 0.0
        %1978 = vmatpush1.msra.mxu0 0.0
        %1979 = vmatprep.subr.mxu0 0.0
        %1980 = vmatpush1.msra.mxu0 0.0
        %1981 = vmatprep.subr.mxu0 0.0
        %1982 = vmatpush1.msra.mxu0 %v1521
        %1983 = vmatprep.subr.mxu0 0.0
        %1984 = vmatpush1.msra.mxu0 %v1520
        %1985 = vmatprep.subr.mxu0 0.0
        %1986 = vmatpush1.msra.mxu0 %v1519
        %1987 = vmatprep.subr.mxu0 0.0
        %1988 = vmatpush1.msra.mxu0 %v1518
        %1989 = vmatprep.subr.mxu0 0.0
        %1990 = vmatpush2.msra.mxu0 0.0
        %1991 = vmatprep.subr.mxu0 0.0
        %1992 = vmatpush2.msra.mxu0 0.0
        %1993 = vmatprep.subr.mxu0 0.0
        %1994 = vmatpush2.msra.mxu0 0.0
        %1995 = vmatprep.subr.mxu0 0.0
        %1996 = vmatpush2.msra.mxu0 0.0
        %1997 = vmatprep.subr.mxu0 0.0
        %1998 = vmatpush2.msra.mxu0 0.0
        %1999 = vmatprep.subr.mxu0 0.0
        %2000 = vmatpush2.msra.mxu0 0.0
        %2001 = vmatprep.subr.mxu0 0.0
        %2002 = vmatpush2.msra.mxu0 0.0
        %2003 = vmatprep.subr.mxu0 0.0
        %2004 = vmatpush2.msra.mxu0 0.0
        %2005 = vmatprep.subr.mxu0 0.0
        %2006 = vmatpush2.msra.mxu0 0.0
        %2007 = vmatprep.subr.mxu0 0.0
        %2008 = vmatpush2.msra.mxu0 0.0
        %2009 = vmatprep.subr.mxu0 0.0
        %2010 = vmatpush2.msra.mxu0 0.0
        %2011 = vmatprep.subr.mxu0 0.0
        %2012 = vmatpush2.msra.mxu0 0.0
        %2013 = vmatprep.subr.mxu0 0.0
        %2014 = vmatpush2.msra.mxu0 0.0
        %2015 = vmatprep.subr.mxu0 0.0
        %2016 = vmatpush2.msra.mxu0 0.0
        %2017 = vmatprep.subr.mxu0 0.0
        %2018 = vmatpush2.msra.mxu0 0.0
        %2019 = vmatprep.subr.mxu0 0.0
        %2020 = vmatpush2.msra.mxu0 0.0
        %2021 = vmatprep.mubr.f32.mxu0 0.0
        %2022 = vmatmul.mubr.f32.gmra.mxu0 %v1955
        %v2023 = vpop.f32.mrf.mxu0
        %v2024 = vadd.f32 0.0, %v2023
        %v2025 = vpop.f32.mrf.mxu0
        %2026 = vdwg.mxu0
        %v2028 = vrot.slane %v2024, 4
        %v2030 = vadd.f32 %v1515, %v2028
        %v2031 = vxor.u32 %v2030, 2147483648
        %v2032 = vmul.f32 %v2031, 1.442695
        %v2033 = vpow.pop %v2032
        %v2034 = vadd.f32 %v2033, 1.0
        %v2035 = vrcp.pop %v2034
        %v2036 = vmul.f32 1.0, %v2035
        %v2037 = vtanh.pop %v2030
        %v2039 = vrot.slane %v1940, 7
        %v2041 = vmul.f32 %v2036, %v2039
        %2043 = vrot.lane.b32.xlu0 %v2037, 64
        %v2044 = vpop.permute.xlu0 %2043
        %v2046 = vmul.f32 %v2036, %v2044
        %2048 = vrot.lane.b32.xlu0 %v2046, 32
        %v2049 = vpop.permute.xlu0 %2048
        %v2051 = vadd.f32 %v2041, %v2049
        %v2052 = vtanh.pop %v2051
        %2054 = vrot.lane.b32.xlu0 %v2052, 64
        %v2055 = vpop.permute.xlu0 %2054
        %v2057 = vmul.f32 %v2036, %v2055
        %2059 = vrot.lane.b32.xlu0 %v2057, 32
        %v2060 = vpop.permute.xlu0 %2059
        %2062 = vst.msk [vmem:[#allocation2] sm:$0x10] %vm1095, %v2060
        %v2063 = vrot.slane %v2057, 4
        %2064 = vrot.lane.b32.xlu0 %v2063, 32
        %v2065 = vpop.permute.xlu0 %2064
        %v2066 = vsel %vm547, %v2065, 0
        %2068 = vmatprep.subr.mxu0 0.0
        %2069 = vmatpush1.msra.mxu0 0.0
        %2070 = vmatprep.subr.mxu0 0.0
        %2071 = vmatpush1.msra.mxu0 0.0
        %2072 = vmatprep.subr.mxu0 0.0
        %2073 = vmatpush1.msra.mxu0 0.0
        %2074 = vmatprep.subr.mxu0 0.0
        %2075 = vmatpush1.msra.mxu0 0.0
        %2076 = vmatprep.subr.mxu0 0.0
        %2077 = vmatpush1.msra.mxu0 0.0
        %2078 = vmatprep.subr.mxu0 0.0
        %2079 = vmatpush1.msra.mxu0 0.0
        %2080 = vmatprep.subr.mxu0 0.0
        %2081 = vmatpush1.msra.mxu0 0.0
        %2082 = vmatprep.subr.mxu0 0.0
        %2083 = vmatpush1.msra.mxu0 0.0
        %2084 = vmatprep.subr.mxu0 0.0
        %2085 = vmatpush1.msra.mxu0 0.0
        %2086 = vmatprep.subr.mxu0 0.0
        %2087 = vmatpush1.msra.mxu0 0.0
        %2088 = vmatprep.subr.mxu0 0.0
        %2089 = vmatpush1.msra.mxu0 0.0
        %2090 = vmatprep.subr.mxu0 0.0
        %2091 = vmatpush1.msra.mxu0 0.0
        %2092 = vmatprep.subr.mxu0 0.0
        %2093 = vmatpush1.msra.mxu0 %v1521
        %2094 = vmatprep.subr.mxu0 0.0
        %2095 = vmatpush1.msra.mxu0 %v1520
        %2096 = vmatprep.subr.mxu0 0.0
        %2097 = vmatpush1.msra.mxu0 %v1519
        %2098 = vmatprep.subr.mxu0 0.0
        %2099 = vmatpush1.msra.mxu0 %v1518
        %2100 = vmatprep.subr.mxu0 0.0
        %2101 = vmatpush2.msra.mxu0 0.0
        %2102 = vmatprep.subr.mxu0 0.0
        %2103 = vmatpush2.msra.mxu0 0.0
        %2104 = vmatprep.subr.mxu0 0.0
        %2105 = vmatpush2.msra.mxu0 0.0
        %2106 = vmatprep.subr.mxu0 0.0
        %2107 = vmatpush2.msra.mxu0 0.0
        %2108 = vmatprep.subr.mxu0 0.0
        %2109 = vmatpush2.msra.mxu0 0.0
        %2110 = vmatprep.subr.mxu0 0.0
        %2111 = vmatpush2.msra.mxu0 0.0
        %2112 = vmatprep.subr.mxu0 0.0
        %2113 = vmatpush2.msra.mxu0 0.0
        %2114 = vmatprep.subr.mxu0 0.0
        %2115 = vmatpush2.msra.mxu0 0.0
        %2116 = vmatprep.subr.mxu0 0.0
        %2117 = vmatpush2.msra.mxu0 0.0
        %2118 = vmatprep.subr.mxu0 0.0
        %2119 = vmatpush2.msra.mxu0 0.0
        %2120 = vmatprep.subr.mxu0 0.0
        %2121 = vmatpush2.msra.mxu0 0.0
        %2122 = vmatprep.subr.mxu0 0.0
        %2123 = vmatpush2.msra.mxu0 0.0
        %2124 = vmatprep.subr.mxu0 0.0
        %2125 = vmatpush2.msra.mxu0 0.0
        %2126 = vmatprep.subr.mxu0 0.0
        %2127 = vmatpush2.msra.mxu0 0.0
        %2128 = vmatprep.subr.mxu0 0.0
        %2129 = vmatpush2.msra.mxu0 0.0
        %2130 = vmatprep.subr.mxu0 0.0
        %2131 = vmatpush2.msra.mxu0 0.0
        %2132 = vmatprep.mubr.f32.mxu0 0.0
        %2133 = vmatmul.mubr.f32.gmra.mxu0 %v2066
        %v2134 = vpop.f32.mrf.mxu0
        %v2135 = vadd.f32 0.0, %v2134
        %v2136 = vpop.f32.mrf.mxu0
        %2137 = vdwg.mxu0
        %v2139 = vrot.slane %v2135, 3
        %v2141 = vadd.f32 %v1515, %v2139
        %v2142 = vxor.u32 %v2141, 2147483648
        %v2143 = vmul.f32 %v2142, 1.442695
        %v2144 = vpow.pop %v2143
        %v2145 = vadd.f32 %v2144, 1.0
        %v2146 = vrcp.pop %v2145
        %v2147 = vmul.f32 1.0, %v2146
        %v2148 = vtanh.pop %v2141
        %v2150 = vrot.slane %v2051, 7
        %v2152 = vmul.f32 %v2147, %v2150
        %2154 = vrot.lane.b32.xlu0 %v2148, 64
        %v2155 = vpop.permute.xlu0 %2154
        %v2157 = vmul.f32 %v2147, %v2155
        %2159 = vrot.lane.b32.xlu0 %v2157, 32
        %v2160 = vpop.permute.xlu0 %2159
        %v2162 = vadd.f32 %v2152, %v2160
        %v2163 = vtanh.pop %v2162
        %2165 = vrot.lane.b32.xlu0 %v2163, 64
        %v2166 = vpop.permute.xlu0 %2165
        %v2168 = vmul.f32 %v2147, %v2166
        %2170 = vrot.lane.b32.xlu0 %v2168, 32
        %v2171 = vpop.permute.xlu0 %2170
        %2173 = vst.msk [vmem:[#allocation2] sm:$0x20] %vm1207, %v2171
        %v2174 = vrot.slane %v2168, 5
        %2175 = vrot.lane.b32.xlu0 %v2174, 32
        %v2176 = vpop.permute.xlu0 %2175
        %v2177 = vsel %vm547, %v2176, 0
        %2179 = vmatprep.subr.mxu0 0.0
        %2180 = vmatpush1.msra.mxu0 0.0
        %2181 = vmatprep.subr.mxu0 0.0
        %2182 = vmatpush1.msra.mxu0 0.0
        %2183 = vmatprep.subr.mxu0 0.0
        %2184 = vmatpush1.msra.mxu0 0.0
        %2185 = vmatprep.subr.mxu0 0.0
        %2186 = vmatpush1.msra.mxu0 0.0
        %2187 = vmatprep.subr.mxu0 0.0
        %2188 = vmatpush1.msra.mxu0 0.0
        %2189 = vmatprep.subr.mxu0 0.0
        %2190 = vmatpush1.msra.mxu0 0.0
        %2191 = vmatprep.subr.mxu0 0.0
        %2192 = vmatpush1.msra.mxu0 0.0
        %2193 = vmatprep.subr.mxu0 0.0
        %2194 = vmatpush1.msra.mxu0 0.0
        %2195 = vmatprep.subr.mxu0 0.0
        %2196 = vmatpush1.msra.mxu0 0.0
        %2197 = vmatprep.subr.mxu0 0.0
        %2198 = vmatpush1.msra.mxu0 0.0
        %2199 = vmatprep.subr.mxu0 0.0
        %2200 = vmatpush1.msra.mxu0 0.0
        %2201 = vmatprep.subr.mxu0 0.0
        %2202 = vmatpush1.msra.mxu0 0.0
        %2203 = vmatprep.subr.mxu0 0.0
        %2204 = vmatpush1.msra.mxu0 %v1521
        %2205 = vmatprep.subr.mxu0 0.0
        %2206 = vmatpush1.msra.mxu0 %v1520
        %2207 = vmatprep.subr.mxu0 0.0
        %2208 = vmatpush1.msra.mxu0 %v1519
        %2209 = vmatprep.subr.mxu0 0.0
        %2210 = vmatpush1.msra.mxu0 %v1518
        %2211 = vmatprep.subr.mxu0 0.0
        %2212 = vmatpush2.msra.mxu0 0.0
        %2213 = vmatprep.subr.mxu0 0.0
        %2214 = vmatpush2.msra.mxu0 0.0
        %2215 = vmatprep.subr.mxu0 0.0
        %2216 = vmatpush2.msra.mxu0 0.0
        %2217 = vmatprep.subr.mxu0 0.0
        %2218 = vmatpush2.msra.mxu0 0.0
        %2219 = vmatprep.subr.mxu0 0.0
        %2220 = vmatpush2.msra.mxu0 0.0
        %2221 = vmatprep.subr.mxu0 0.0
        %2222 = vmatpush2.msra.mxu0 0.0
        %2223 = vmatprep.subr.mxu0 0.0
        %2224 = vmatpush2.msra.mxu0 0.0
        %2225 = vmatprep.subr.mxu0 0.0
        %2226 = vmatpush2.msra.mxu0 0.0
        %2227 = vmatprep.subr.mxu0 0.0
        %2228 = vmatpush2.msra.mxu0 0.0
        %2229 = vmatprep.subr.mxu0 0.0
        %2230 = vmatpush2.msra.mxu0 0.0
        %2231 = vmatprep.subr.mxu0 0.0
        %2232 = vmatpush2.msra.mxu0 0.0
        %2233 = vmatprep.subr.mxu0 0.0
        %2234 = vmatpush2.msra.mxu0 0.0
        %2235 = vmatprep.subr.mxu0 0.0
        %2236 = vmatpush2.msra.mxu0 0.0
        %2237 = vmatprep.subr.mxu0 0.0
        %2238 = vmatpush2.msra.mxu0 0.0
        %2239 = vmatprep.subr.mxu0 0.0
        %2240 = vmatpush2.msra.mxu0 0.0
        %2241 = vmatprep.subr.mxu0 0.0
        %2242 = vmatpush2.msra.mxu0 0.0
        %2243 = vmatprep.mubr.f32.mxu0 0.0
        %2244 = vmatmul.mubr.f32.gmra.mxu0 %v2177
        %v2245 = vpop.f32.mrf.mxu0
        %v2246 = vadd.f32 0.0, %v2245
        %v2247 = vpop.f32.mrf.mxu0
        %2248 = vdwg.mxu0
        %v2250 = vrot.slane %v2246, 2
        %v2252 = vadd.f32 %v1515, %v2250
        %v2253 = vxor.u32 %v2252, 2147483648
        %v2254 = vmul.f32 %v2253, 1.442695
        %v2255 = vpow.pop %v2254
        %v2256 = vadd.f32 %v2255, 1.0
        %v2257 = vrcp.pop %v2256
        %v2258 = vmul.f32 1.0, %v2257
        %v2259 = vtanh.pop %v2252
        %v2261 = vrot.slane %v2162, 7
        %v2263 = vmul.f32 %v2258, %v2261
        %2265 = vrot.lane.b32.xlu0 %v2259, 64
        %v2266 = vpop.permute.xlu0 %2265
        %v2268 = vmul.f32 %v2258, %v2266
        %2270 = vrot.lane.b32.xlu0 %v2268, 32
        %v2271 = vpop.permute.xlu0 %2270
        %v2273 = vadd.f32 %v2263, %v2271
        %v2274 = vtanh.pop %v2273
        %2276 = vrot.lane.b32.xlu0 %v2274, 64
        %v2277 = vpop.permute.xlu0 %2276
        %v2279 = vmul.f32 %v2258, %v2277
        %2281 = vrot.lane.b32.xlu0 %v2279, 32
        %v2282 = vpop.permute.xlu0 %2281
        %2284 = vst.msk [vmem:[#allocation2] sm:$0x40] %vm1319, %v2282
        %v2285 = vrot.slane %v2279, 6
        %2286 = vrot.lane.b32.xlu0 %v2285, 32
        %v2287 = vpop.permute.xlu0 %2286
        %v2288 = vsel %vm547, %v2287, 0
        %2290 = vmatprep.subr.mxu0 0.0
        %2291 = vmatpush1.msra.mxu0 0.0
        %2292 = vmatprep.subr.mxu0 0.0
        %2293 = vmatpush1.msra.mxu0 0.0
        %2294 = vmatprep.subr.mxu0 0.0
        %2295 = vmatpush1.msra.mxu0 0.0
        %2296 = vmatprep.subr.mxu0 0.0
        %2297 = vmatpush1.msra.mxu0 0.0
        %2298 = vmatprep.subr.mxu0 0.0
        %2299 = vmatpush1.msra.mxu0 0.0
        %2300 = vmatprep.subr.mxu0 0.0
        %2301 = vmatpush1.msra.mxu0 0.0
        %2302 = vmatprep.subr.mxu0 0.0
        %2303 = vmatpush1.msra.mxu0 0.0
        %2304 = vmatprep.subr.mxu0 0.0
        %2305 = vmatpush1.msra.mxu0 0.0
        %2306 = vmatprep.subr.mxu0 0.0
        %2307 = vmatpush1.msra.mxu0 0.0
        %2308 = vmatprep.subr.mxu0 0.0
        %2309 = vmatpush1.msra.mxu0 0.0
        %2310 = vmatprep.subr.mxu0 0.0
        %2311 = vmatpush1.msra.mxu0 0.0
        %2312 = vmatprep.subr.mxu0 0.0
        %2313 = vmatpush1.msra.mxu0 0.0
        %2314 = vmatprep.subr.mxu0 0.0
        %2315 = vmatpush1.msra.mxu0 %v1521
        %2316 = vmatprep.subr.mxu0 0.0
        %2317 = vmatpush1.msra.mxu0 %v1520
        %2318 = vmatprep.subr.mxu0 0.0
        %2319 = vmatpush1.msra.mxu0 %v1519
        %2320 = vmatprep.subr.mxu0 0.0
        %2321 = vmatpush1.msra.mxu0 %v1518
        %2322 = vmatprep.subr.mxu0 0.0
        %2323 = vmatpush2.msra.mxu0 0.0
        %2324 = vmatprep.subr.mxu0 0.0
        %2325 = vmatpush2.msra.mxu0 0.0
        %2326 = vmatprep.subr.mxu0 0.0
        %2327 = vmatpush2.msra.mxu0 0.0
        %2328 = vmatprep.subr.mxu0 0.0
        %2329 = vmatpush2.msra.mxu0 0.0
        %2330 = vmatprep.subr.mxu0 0.0
        %2331 = vmatpush2.msra.mxu0 0.0
        %2332 = vmatprep.subr.mxu0 0.0
        %2333 = vmatpush2.msra.mxu0 0.0
        %2334 = vmatprep.subr.mxu0 0.0
        %2335 = vmatpush2.msra.mxu0 0.0
        %2336 = vmatprep.subr.mxu0 0.0
        %2337 = vmatpush2.msra.mxu0 0.0
        %2338 = vmatprep.subr.mxu0 0.0
        %2339 = vmatpush2.msra.mxu0 0.0
        %2340 = vmatprep.subr.mxu0 0.0
        %2341 = vmatpush2.msra.mxu0 0.0
        %2342 = vmatprep.subr.mxu0 0.0
        %2343 = vmatpush2.msra.mxu0 0.0
        %2344 = vmatprep.subr.mxu0 0.0
        %2345 = vmatpush2.msra.mxu0 0.0
        %2346 = vmatprep.subr.mxu0 0.0
        %2347 = vmatpush2.msra.mxu0 0.0
        %2348 = vmatprep.subr.mxu0 0.0
        %2349 = vmatpush2.msra.mxu0 0.0
        %2350 = vmatprep.subr.mxu0 0.0
        %2351 = vmatpush2.msra.mxu0 0.0
        %2352 = vmatprep.subr.mxu0 0.0
        %2353 = vmatpush2.msra.mxu0 0.0
        %2354 = vmatprep.mubr.f32.mxu0 0.0
        %2355 = vmatmul.mubr.f32.gmra.mxu0 %v2288
        %v2356 = vpop.f32.mrf.mxu0
        %v2357 = vadd.f32 0.0, %v2356
        %v2358 = vpop.f32.mrf.mxu0
        %2359 = vdwg.mxu0
        %v2361 = vrot.slane %v2357, 1
        %v2363 = vadd.f32 %v1515, %v2361
        %v2364 = vxor.u32 %v2363, 2147483648
        %v2365 = vmul.f32 %v2364, 1.442695
        %v2366 = vpow.pop %v2365
        %v2367 = vadd.f32 %v2366, 1.0
        %v2368 = vrcp.pop %v2367
        %v2369 = vmul.f32 1.0, %v2368
        %v2370 = vtanh.pop %v2363
        %v2372 = vrot.slane %v2273, 7
        %v2374 = vmul.f32 %v2369, %v2372
        %2376 = vrot.lane.b32.xlu0 %v2370, 64
        %v2377 = vpop.permute.xlu0 %2376
        %v2379 = vmul.f32 %v2369, %v2377
        %2381 = vrot.lane.b32.xlu0 %v2379, 32
        %v2382 = vpop.permute.xlu0 %2381
        %v2384 = vadd.f32 %v2374, %v2382
        %v2385 = vtanh.pop %v2384
        %2387 = vrot.lane.b32.xlu0 %v2385, 64
        %v2388 = vpop.permute.xlu0 %2387
        %v2390 = vmul.f32 %v2369, %v2388
        %2392 = vrot.lane.b32.xlu0 %v2390, 32
        %v2393 = vpop.permute.xlu0 %2392
        %2395 = vst.msk [vmem:[#allocation2] sm:$0x80] %vm1431, %v2393
        %v2396 = vld [vmem:[#allocation2 + $0x7] sm:$0x1]
        %v2397 = vld [vmem:[#allocation11] sm:$0xff]
        %v2398 = vld [vmem:[#allocation11 + $0x8] sm:$0xff]
        %v2399 = vld [vmem:[#allocation11 + $0x10] sm:$0xff]
        %v2400 = vld [vmem:[#allocation11 + $0x18] sm:$0xff]
        %v2401 = vld [vmem:[%s8] sm:$0x1]
        %v2403 = vsel %vm547, %v2396, 0
        %2405 = vmatprep.subr.mxu0 0.0
        %2406 = vmatpush1.msra.mxu0 0.0
        %2407 = vmatprep.subr.mxu0 0.0
        %2408 = vmatpush1.msra.mxu0 0.0
        %2409 = vmatprep.subr.mxu0 0.0
        %2410 = vmatpush1.msra.mxu0 0.0
        %2411 = vmatprep.subr.mxu0 0.0
        %2412 = vmatpush1.msra.mxu0 0.0
        %2413 = vmatprep.subr.mxu0 0.0
        %2414 = vmatpush1.msra.mxu0 0.0
        %2415 = vmatprep.subr.mxu0 0.0
        %2416 = vmatpush1.msra.mxu0 0.0
        %2417 = vmatprep.subr.mxu0 0.0
        %2418 = vmatpush1.msra.mxu0 0.0
        %2419 = vmatprep.subr.mxu0 0.0
        %2420 = vmatpush1.msra.mxu0 0.0
        %2421 = vmatprep.subr.mxu0 0.0
        %2422 = vmatpush1.msra.mxu0 0.0
        %2423 = vmatprep.subr.mxu0 0.0
        %2424 = vmatpush1.msra.mxu0 0.0
        %2425 = vmatprep.subr.mxu0 0.0
        %2426 = vmatpush1.msra.mxu0 0.0
        %2427 = vmatprep.subr.mxu0 0.0
        %2428 = vmatpush1.msra.mxu0 0.0
        %2429 = vmatprep.subr.mxu0 0.0
        %2430 = vmatpush1.msra.mxu0 %v2400
        %2431 = vmatprep.subr.mxu0 0.0
        %2432 = vmatpush1.msra.mxu0 %v2399
        %2433 = vmatprep.subr.mxu0 0.0
        %2434 = vmatpush1.msra.mxu0 %v2398
        %2435 = vmatprep.subr.mxu0 0.0
        %2436 = vmatpush1.msra.mxu0 %v2397
        %2437 = vmatprep.subr.mxu0 0.0
        %2438 = vmatpush2.msra.mxu0 0.0
        %2439 = vmatprep.subr.mxu0 0.0
        %2440 = vmatpush2.msra.mxu0 0.0
        %2441 = vmatprep.subr.mxu0 0.0
        %2442 = vmatpush2.msra.mxu0 0.0
        %2443 = vmatprep.subr.mxu0 0.0
        %2444 = vmatpush2.msra.mxu0 0.0
        %2445 = vmatprep.subr.mxu0 0.0
        %2446 = vmatpush2.msra.mxu0 0.0
        %2447 = vmatprep.subr.mxu0 0.0
        %2448 = vmatpush2.msra.mxu0 0.0
        %2449 = vmatprep.subr.mxu0 0.0
        %2450 = vmatpush2.msra.mxu0 0.0
        %2451 = vmatprep.subr.mxu0 0.0
        %2452 = vmatpush2.msra.mxu0 0.0
        %2453 = vmatprep.subr.mxu0 0.0
        %2454 = vmatpush2.msra.mxu0 0.0
        %2455 = vmatprep.subr.mxu0 0.0
        %2456 = vmatpush2.msra.mxu0 0.0
        %2457 = vmatprep.subr.mxu0 0.0
        %2458 = vmatpush2.msra.mxu0 0.0
        %2459 = vmatprep.subr.mxu0 0.0
        %2460 = vmatpush2.msra.mxu0 0.0
        %2461 = vmatprep.subr.mxu0 0.0
        %2462 = vmatpush2.msra.mxu0 0.0
        %2463 = vmatprep.subr.mxu0 0.0
        %2464 = vmatpush2.msra.mxu0 0.0
        %2465 = vmatprep.subr.mxu0 0.0
        %2466 = vmatpush2.msra.mxu0 0.0
        %2467 = vmatprep.subr.mxu0 0.0
        %2468 = vmatpush2.msra.mxu0 0.0
        %2469 = vmatprep.mubr.f32.mxu0 0.0
        %2470 = vmatmul.mubr.f32.gmra.mxu0 %v2403
        %v2471 = vpop.f32.mrf.mxu0
        %v2472 = vadd.f32 %v2401, %v2471
        %v2473 = vpop.f32.mrf.mxu0
        %2474 = vdwg.mxu0
        %v2475 = vmax.f32 %v2472, 0.0
        %v2476 = vld [vmem:[%s9] sm:$0xff]
        %v2477 = vld [vmem:[%s9 + $0x8] sm:$0xff]
        %v2478 = vld [vmem:[%s9 + $0x10] sm:$0xff]
        %v2479 = vld [vmem:[%s9 + $0x18] sm:$0xff]
        %v2480 = vld [vmem:[%s10] sm:$0x1]
        %v2482 = vsel %vm547, %v2475, 0
        %2484 = vmatprep.subr.mxu0 0.0
        %2485 = vmatpush1.msra.mxu0 0.0
        %2486 = vmatprep.subr.mxu0 0.0
        %2487 = vmatpush1.msra.mxu0 0.0
        %2488 = vmatprep.subr.mxu0 0.0
        %2489 = vmatpush1.msra.mxu0 0.0
        %2490 = vmatprep.subr.mxu0 0.0
        %2491 = vmatpush1.msra.mxu0 0.0
        %2492 = vmatprep.subr.mxu0 0.0
        %2493 = vmatpush1.msra.mxu0 0.0
        %2494 = vmatprep.subr.mxu0 0.0
        %2495 = vmatpush1.msra.mxu0 0.0
        %2496 = vmatprep.subr.mxu0 0.0
        %2497 = vmatpush1.msra.mxu0 0.0
        %2498 = vmatprep.subr.mxu0 0.0
        %2499 = vmatpush1.msra.mxu0 0.0
        %2500 = vmatprep.subr.mxu0 0.0
        %2501 = vmatpush1.msra.mxu0 0.0
        %2502 = vmatprep.subr.mxu0 0.0
        %2503 = vmatpush1.msra.mxu0 0.0
        %2504 = vmatprep.subr.mxu0 0.0
        %2505 = vmatpush1.msra.mxu0 0.0
        %2506 = vmatprep.subr.mxu0 0.0
        %2507 = vmatpush1.msra.mxu0 0.0
        %2508 = vmatprep.subr.mxu0 0.0
        %2509 = vmatpush1.msra.mxu0 %v2479
        %2510 = vmatprep.subr.mxu0 0.0
        %2511 = vmatpush1.msra.mxu0 %v2478
        %2512 = vmatprep.subr.mxu0 0.0
        %2513 = vmatpush1.msra.mxu0 %v2477
        %2514 = vmatprep.subr.mxu0 0.0
        %2515 = vmatpush1.msra.mxu0 %v2476
        %2516 = vmatprep.subr.mxu0 0.0
        %2517 = vmatpush2.msra.mxu0 0.0
        %2518 = vmatprep.subr.mxu0 0.0
        %2519 = vmatpush2.msra.mxu0 0.0
        %2520 = vmatprep.subr.mxu0 0.0
        %2521 = vmatpush2.msra.mxu0 0.0
        %2522 = vmatprep.subr.mxu0 0.0
        %2523 = vmatpush2.msra.mxu0 0.0
        %2524 = vmatprep.subr.mxu0 0.0
        %2525 = vmatpush2.msra.mxu0 0.0
        %2526 = vmatprep.subr.mxu0 0.0
        %2527 = vmatpush2.msra.mxu0 0.0
        %2528 = vmatprep.subr.mxu0 0.0
        %2529 = vmatpush2.msra.mxu0 0.0
        %2530 = vmatprep.subr.mxu0 0.0
        %2531 = vmatpush2.msra.mxu0 0.0
        %2532 = vmatprep.subr.mxu0 0.0
        %2533 = vmatpush2.msra.mxu0 0.0
        %2534 = vmatprep.subr.mxu0 0.0
        %2535 = vmatpush2.msra.mxu0 0.0
        %2536 = vmatprep.subr.mxu0 0.0
        %2537 = vmatpush2.msra.mxu0 0.0
        %2538 = vmatprep.subr.mxu0 0.0
        %2539 = vmatpush2.msra.mxu0 0.0
        %2540 = vmatprep.subr.mxu0 0.0
        %2541 = vmatpush2.msra.mxu0 0.0
        %2542 = vmatprep.subr.mxu0 0.0
        %2543 = vmatpush2.msra.mxu0 0.0
        %2544 = vmatprep.subr.mxu0 0.0
        %2545 = vmatpush2.msra.mxu0 0.0
        %2546 = vmatprep.subr.mxu0 0.0
        %2547 = vmatpush2.msra.mxu0 0.0
        %2548 = vmatprep.mubr.f32.mxu0 0.0
        %2549 = vmatmul.mubr.f32.gmra.mxu0 %v2482
        %v2550 = vpop.f32.mrf.mxu0
        %v2551 = vadd.f32 %v2480, %v2550
        %v2552 = vpop.f32.mrf.mxu0
        %2553 = vdwg.mxu0
        %vm2554 = vcmask 24576
        %2555 = vst.msk [vmem:[%s458] sm:$0x1] %vm2554, %v2551
        %s2556 = sand.u32 %s274, 1
        %s2557 = scalar_lea.sflag [#allocation5], %s2556
        %s2558 = sand.u32 %s274, 1
        %s2559 = scalar_lea.vmem [#allocation12], %s2558
        // Predicated region
        $region85: #{tpu_custom_call.1} parent=63 // pred_check
          %p2560 = pneg %p284
        $region86: #{tpu_custom_call.1} parent=63 // pred_check_branch
          %2562 = sbr.rel (%p2560) target = $region88
        $region87: #{tpu_custom_call.1} parent=63 // pred_region
          %s2564 = ssub.s32 16, 16
          %2565 = vsyncadd %s2557, %s2564
          %s2566 = smul.addr %s30, 16
          %s2567 = scalar_lea.hbm %s11, %s2566
          %s2569 = sshll.u32 %s2559, 4
          %s2570 = int_to_ptr.vmem [resolvable:$true] %s2569
          %2572 = dma.vmem_to_hbm [thread:$0]  %s2570, 16, %s2567, %s2557
        $region88: #{tpu_custom_call.1} parent=63 // pred_fallthru
          _
      $region64: #{tpu_custom_call.1} parent=5 // pred_fallthru
        _
      %p2573 = scmp.le.s32.totalorder 2, %s25
      // Predicated region
      $region89: #{tpu_custom_call.1} parent=5 // pred_check
        %p2574 = pneg %p2573
      $region90: #{tpu_custom_call.1} parent=5 // pred_check_branch
        %2576 = sbr.rel (%p2574) target = $region92
      $region91: #{tpu_custom_call.1} parent=5 // pred_region
        %s2577 = ssub.s32 %s25, 2
        // Predicated region
        $region93: #{tpu_custom_call.1} parent=91 // pred_check
          %p2578 = pneg %p290
        $region94: #{tpu_custom_call.1} parent=91 // pred_check_branch
          %2580 = sbr.rel (%p2578) target = $region96
        $region95: #{tpu_custom_call.1} parent=91 // pred_region
          %s2581 = sand.u32 %s275, 1
          %s2582 = scalar_lea.sflag [#allocation5], %s2581
          %s2583 = sand.u32 %s275, 1
          %s2584 = scalar_lea.vmem [#allocation12], %s2583
          %2585 = dma.done %s2582, 16
        $region96: #{tpu_custom_call.1} parent=91 // pred_fallthru
          _
      $region92: #{tpu_custom_call.1} parent=5 // pred_fallthru
        _
    $region6: #{tpu_custom_call.1} parent=1 // loop_footer
      %s29 = sadd.s32 1, %s25
    $region7: #{tpu_custom_call.1} parent=1 // loop_footer_branch
      %24 = sbr.rel target = $region3
    $region8: #{tpu_custom_call.1} parent=1 // loop_exit
      _
    %2586 = vsyncpa [#allocation4], 1
    %s2587 = scalar_lea.sflag [#allocation4], 1
    %2588 = vsyncpa %s2587, 1
    %2589 = vsyncpa [#allocation7], 1
    %2590 = vsyncpa [#allocation10], 1
    %2591 = vsyncpa [#allocation5], 1
    %s2592 = scalar_lea.sflag [#allocation5], 1
    %2593 = vsyncpa %s2592, 1

</llo_original>
